<compile_context>
chip_gen: v7x
topology: tpu7x:2x2x1
jax: 0.10.0
libtpu: 0.0.40
codegen_flags: <defaults>
</compile_context>

<pallas_src>
import jax
import jax.numpy as jnp
from jax.experimental import pallas as pl
from jax.experimental.pallas import tpu as pltpu

GROWTH_RATE = 5
BLOCK_CONFIG = (4, 6, 8)
NUM_INIT_FEATURES = 13
BN_SIZE = 4
FC1_OUT = BN_SIZE * GROWTH_RATE          # 20
NUM_CLASSES = 1
BN_EPS = 1e-5
W_SLAB_WIDTH = 64                        # >= max fan-in (63)


def _round_up(x, m):
    return (x + m - 1) // m * m


def _round8(x):
    return _round_up(x, 8)


# ---------------------------------------------------------------------------
# Static network plan: per-layer shapes + row offsets into the packed slabs.
# (Matrix rows and vector rows are padded to multiples of 8 so all static
#  slices start on sublane-aligned offsets.)
# ---------------------------------------------------------------------------
def _build_plan():
    w_off = [0]
    v_off = [0]

    def take_w(o):
        off = w_off[0]
        w_off[0] += _round8(o)
        return off

    def take_v(c):
        off = v_off[0]
        v_off[0] += _round8(c)
        return off

    plan = []
    nf = NUM_INIT_FEATURES
    for bi, num_layers in enumerate(BLOCK_CONFIG):
        for j in range(num_layers):
            cin = nf + j * GROWTH_RATE
            assert cin <= W_SLAB_WIDTH
            plan.append(dict(kind="dense", cin=cin,
                             s1=take_v(cin), b1=take_v(cin),
                             w1=take_w(FC1_OUT), c1=take_v(FC1_OUT),
                             w2=take_w(GROWTH_RATE), c2=take_v(GROWTH_RATE)))
        nf += num_layers * GROWTH_RATE
        if bi != len(BLOCK_CONFIG) - 1:
            cout = nf // 2
            assert nf <= W_SLAB_WIDTH
            plan.append(dict(kind="trans", cin=nf, cout=cout,
                             s=take_v(nf), b=take_v(nf),
                             w=take_w(cout), c=take_v(cout)))
            nf = cout
    assert nf <= W_SLAB_WIDTH
    plan.append(dict(kind="cls", cin=nf,
                     w=take_w(NUM_CLASSES), b=take_v(NUM_CLASSES)))
    max_feat = max(e["cin"] + (GROWTH_RATE if e["kind"] == "dense" else 0)
                   for e in plan)
    return plan, w_off[0], v_off[0], _round8(max_feat)


PLAN, W_ROWS, V_ROWS, FEAT_ROWS = _build_plan()


# ---------------------------------------------------------------------------
# Parameter init (deterministic, mirrors the PyTorch module's shapes)
# ---------------------------------------------------------------------------
def init_params(key):
    params = []
    keys = iter(jax.random.split(key, 256))

    def bn(c):
        # BatchNorm1d (eval mode) folded to scale/shift.
        g = 1.0 + 0.1 * jax.random.normal(next(keys), (1, c), jnp.float32)
        b = 0.1 * jax.random.normal(next(keys), (1, c), jnp.float32)
        m = 0.1 * jax.random.normal(next(keys), (1, c), jnp.float32)
        v = jax.random.uniform(next(keys), (1, c), jnp.float32, 0.5, 1.5)
        scale = g / jnp.sqrt(v + BN_EPS)
        shift = b - m * scale
        params.extend([scale, shift])

    def linear(cin, cout):
        k = float(cin) ** -0.5
        W = jax.random.uniform(next(keys), (cin, cout), jnp.float32, -k, k)
        b = jax.random.uniform(next(keys), (1, cout), jnp.float32, -k, k)
        params.extend([W, b])

    num_features = NUM_INIT_FEATURES
    for i, num_layers in enumerate(BLOCK_CONFIG):
        for j in range(num_layers):
            cin = num_features + j * GROWTH_RATE
            bn(cin)                                   # norm1
            linear(cin, BN_SIZE * GROWTH_RATE)        # fc1
            bn(BN_SIZE * GROWTH_RATE)                 # norm2
            linear(BN_SIZE * GROWTH_RATE, GROWTH_RATE)  # fc2
        num_features += num_layers * GROWTH_RATE
        if i != len(BLOCK_CONFIG) - 1:
            bn(num_features)                          # transition norm
            linear(num_features, num_features // 2)   # transition fc
            num_features //= 2
    bn(num_features)                                  # norm5
    linear(num_features, NUM_CLASSES)                 # classifier
    return params


# ---------------------------------------------------------------------------
# Host-side fold + pack: BN folding into adjacent Linears, transposed weights,
# everything placed into two contiguous f32 slabs at the static plan offsets.
# ---------------------------------------------------------------------------
def pack_params(params):
    w_slab = jnp.zeros((W_ROWS, W_SLAB_WIDTH), jnp.float32)
    v_slab = jnp.zeros((V_ROWS, 1), jnp.float32)
    it = iter(params)
    nxt = lambda: next(it)

    def put_w(off, mat_t):          # mat_t: (out, in)
        nonlocal w_slab
        o, i = mat_t.shape
        w_slab = w_slab.at[off:off + o, :i].set(mat_t)

    def put_v(off, vec):            # vec: (c,)
        nonlocal v_slab
        c = vec.shape[0]
        v_slab = v_slab.at[off:off + c, 0].set(vec)

    for e in PLAN:
        if e["kind"] == "dense":
            s1, b1 = nxt(), nxt()
            W1, c1 = nxt(), nxt()
            s2, b2 = nxt(), nxt()
            W2, c2 = nxt(), nxt()
            put_v(e["s1"], s1[0]); put_v(e["b1"], b1[0])
            W1f = W1 * s2                          # fold norm2 into fc1 (per out column)
            c1f = c1 * s2 + b2
            put_w(e["w1"], W1f.T); put_v(e["c1"], c1f[0])
            put_w(e["w2"], W2.T);  put_v(e["c2"], c2[0])
        elif e["kind"] == "trans":
            s, b = nxt(), nxt()
            W, c = nxt(), nxt()
            put_v(e["s"], s[0]); put_v(e["b"], b[0])
            put_w(e["w"], W.T);  put_v(e["c"], c[0])
        else:                                       # norm5 folded into classifier
            s5, b5 = nxt(), nxt()
            Wc, bc = nxt(), nxt()
            Wcf = Wc * s5.T                         # diag(s5) @ Wc
            bcf = bc + b5 @ Wc
            put_w(e["w"], Wcf.T); put_v(e["b"], bcf[0])
    return w_slab, v_slab


# ---------------------------------------------------------------------------
# Pure-JAX reference of the ORIGINAL (un-folded, un-packed) graph.
# ---------------------------------------------------------------------------
def _forward_ref(f, weights):
    it = iter(weights)
    nxt = lambda: next(it)
    for i, num_layers in enumerate(BLOCK_CONFIG):
        for _ in range(num_layers):
            s1, b1 = nxt(), nxt()
            W1, c1 = nxt(), nxt()
            s2, b2 = nxt(), nxt()
            W2, c2 = nxt(), nxt()
            h = jnp.tanh(f * s1 + b1)                                      # norm1 + relu1(Tanh)
            h = jnp.dot(h, W1, preferred_element_type=jnp.float32) + c1    # fc1
            h = jnp.tanh(h * s2 + b2)                                      # norm2 + relu2(Tanh)
            nf = jnp.dot(h, W2, preferred_element_type=jnp.float32) + c2   # fc2
            f = jnp.concatenate([f, nf], axis=1)                           # dense concat
        if i != len(BLOCK_CONFIG) - 1:
            s, b = nxt(), nxt()
            W, c = nxt(), nxt()
            h = jnp.tanh(f * s + b)                                        # transition norm + Tanh
            f = jnp.dot(h, W, preferred_element_type=jnp.float32) + c      # transition fc
    s5, b5 = nxt(), nxt()
    feats = f * s5 + b5                                                    # norm5
    Wc, bc = nxt(), nxt()
    return jnp.dot(feats, Wc, preferred_element_type=jnp.float32) + bc     # classifier


# ---------------------------------------------------------------------------
# Pallas kernel: whole forward pass for one batch tile (batch on lanes).
# ---------------------------------------------------------------------------
def densenet_kernel(x_ref, w_ref, v_ref, out_ref, feat_ref):
    def w_at(off, o, i):                 # (out, in) weight tile, static slice (lazy load)
        return w_ref[off:off + o, :i]

    def v_at(off, c):                    # (c, 1) column, broadcasts across batch lanes
        return v_ref[off:off + c, :]

    feat_ref[0:NUM_INIT_FEATURES, :] = x_ref[...]
    for e in PLAN:
        cin = e["cin"]
        f = feat_ref[0:cin, :]
        if e["kind"] == "dense":
            h = jnp.tanh(f * v_at(e["s1"], cin) + v_at(e["b1"], cin))      # norm1 + relu1(Tanh)
            h = jnp.dot(w_at(e["w1"], FC1_OUT, cin), h,                    # fc1 (norm2 pre-folded)
                        preferred_element_type=jnp.float32) + v_at(e["c1"], FC1_OUT)
            h = jnp.tanh(h)                                                # relu2(Tanh)
            nf = jnp.dot(w_at(e["w2"], GROWTH_RATE, FC1_OUT), h,           # fc2
                         preferred_element_type=jnp.float32) + v_at(e["c2"], GROWTH_RATE)
            # drop_rate=0.5 dropout is identity in eval mode.
            # TODO(synk): training-mode dropout (random mask) not implemented.
            feat_ref[cin:cin + GROWTH_RATE, :] = nf                        # dense concat (in-place)
        elif e["kind"] == "trans":
            h = jnp.tanh(f * v_at(e["s"], cin) + v_at(e["b"], cin))        # transition norm + Tanh
            g = jnp.dot(w_at(e["w"], e["cout"], cin), h,                   # transition fc
                        preferred_element_type=jnp.float32) + v_at(e["c"], e["cout"])
            feat_ref[0:e["cout"], :] = g
        else:
            # norm5 pre-folded into the classifier.  The PyTorch forward computes
            # F.Tanh(features) but discards it; the classifier consumes the
            # pre-tanh features, so we do the same.  Output is lane-dense (1, tb).
            out_ref[...] = jnp.dot(w_at(e["w"], NUM_CLASSES, cin), f,
                                   preferred_element_type=jnp.float32) + v_at(e["b"], NUM_CLASSES)


def _cost_estimate(n_rows):
    flops = 0
    transc = 0
    for e in PLAN:
        if e["kind"] == "dense":
            flops += 2 * e["cin"] * FC1_OUT + 2 * FC1_OUT * GROWTH_RATE
            flops += 2 * e["cin"] + 2 * FC1_OUT + GROWTH_RATE
            transc += e["cin"] + FC1_OUT
        elif e["kind"] == "trans":
            flops += 2 * e["cin"] * e["cout"] + 2 * e["cin"] + e["cout"]
            transc += e["cin"]
        else:
            flops += 2 * e["cin"] * NUM_CLASSES + NUM_CLASSES
    param_bytes = (W_ROWS * W_SLAB_WIDTH + V_ROWS) * 4
    bytes_accessed = n_rows * (NUM_INIT_FEATURES + NUM_CLASSES) * 4 + param_bytes
    return int(flops * n_rows), int(transc * n_rows), int(bytes_accessed)


# ---------------------------------------------------------------------------
# Wrapper
# ---------------------------------------------------------------------------
def densenet_forward(x, packed, *, tb=512):
    w_slab, v_slab = packed
    x2 = x.reshape(-1, NUM_INIT_FEATURES).astype(jnp.float32)       # x.view(-1, 13)
    n = x2.shape[0]
    assert tb % 128 == 0, "batch tile must be a multiple of 128 (lane width)"
    tb_eff = min(tb, _round_up(n, 128))
    n_pad = _round_up(n, tb_eff)

    # Batch on the lane axis, zero-padded to a multiple of the batch tile.
    xt = jnp.zeros((NUM_INIT_FEATURES, n_pad), jnp.float32).at[:, :n].set(x2.T)

    flops, transcendentals, bytes_accessed = _cost_estimate(n_pad)
    out = pl.pallas_call(
        densenet_kernel,
        out_shape=jax.ShapeDtypeStruct((1, n_pad), jnp.float32),
        grid_spec=pltpu.PrefetchScalarGridSpec(
            num_scalar_prefetch=0,
            grid=(n_pad // tb_eff,),               # >= 2 steps on big batches (v7x megacore)
            in_specs=[
                pl.BlockSpec((NUM_INIT_FEATURES, tb_eff), lambda i: (0, i)),
                pl.BlockSpec(w_slab.shape, lambda i: (0, 0)),   # VMEM-resident weight slab
                pl.BlockSpec(v_slab.shape, lambda i: (0, 0)),   # VMEM-resident scale/shift/bias slab
            ],
            out_specs=pl.BlockSpec((1, tb_eff), lambda i: (0, i)),  # lane-dense output
            scratch_shapes=[pltpu.VMEM((FEAT_ROWS, tb_eff), jnp.float32)],
        ),
        compiler_params=pltpu.CompilerParams(
            dimension_semantics=("parallel",)),
        cost_estimate=pl.CostEstimate(flops=flops,
                                      transcendentals=transcendentals,
                                      bytes_accessed=bytes_accessed),
    )(xt, w_slab, v_slab)
    return out[0, :n].reshape(n, NUM_CLASSES)


if __name__ == "__main__":
    key = jax.random.PRNGKey(0)
    kx, kp = jax.random.split(key)

    # Input must reshape to (-1, 13); use (16, 13) -> batch 16.
    x = jax.random.normal(kx, (16, NUM_INIT_FEATURES), jnp.float32)
    params = init_params(kp)
    packed = pack_params(params)

    out = densenet_forward(x, packed)
    out = jax.block_until_ready(out)
    assert out.shape == (16, NUM_CLASSES), out.shape

    # Correctness check against the pure-JAX reference of the original
    # (un-folded, un-packed, batch-major) graph.
    ref = _forward_ref(x.reshape(-1, NUM_INIT_FEATURES), params)
    assert jnp.allclose(out, ref, atol=1e-4, rtol=1e-4), "mismatch vs reference"

    print("KERNEL_OK")
</pallas_src>

<mosaic_0001>
module attributes {stable_mosaic.version = 11 : i64} {
  func.func @densenet_kernel(%arg0: i32, %arg1: memref<13x128xf32, #tpu.memory_space<vmem>>, %arg2: memref<624x64xf32, #tpu.memory_space<vmem>>, %arg3: memref<2080x1xf32, #tpu.memory_space<vmem>>, %arg4: memref<1x128xf32, #tpu.memory_space<vmem>>, %arg5: memref<64x128xf32, #tpu.memory_space<vmem>>) attributes {dimension_semantics = [#tpu.dimension_semantics<parallel>], iteration_bounds = array<i64: 1>, scalar_prefetch = 0 : i64, scratch_operands = 1 : i64, tpu.core_type = #tpu.core_type<tc>, window_params = [{transform_indices = @transform_0, window_bounds = array<i64: 13, 128>}, {pipeline_mode = #tpu.pipeline_mode<synchronous>, transform_indices = @transform_1, window_bounds = array<i64: 624, 64>}, {pipeline_mode = #tpu.pipeline_mode<synchronous>, transform_indices = @transform_2, window_bounds = array<i64: 2080, 1>}, {transform_indices = @transform_3, window_bounds = array<i64: 1, 128>}]} {
    %c0 = arith.constant 0 : index
    %c0_0 = arith.constant 0 : index
    %0 = vector.load %arg1[%c0, %c0_0] : memref<13x128xf32, #tpu.memory_space<vmem>>, vector<13x128xf32>
    %c0_1 = arith.constant 0 : index
    %c0_2 = arith.constant 0 : index
    %1 = vector.load %arg5[%c0_1, %c0_2] : memref<64x128xf32, #tpu.memory_space<vmem>>, vector<13x128xf32>
    tpu.vector_store %arg5[%c0_1, %c0_2], %0 {strides = array<i32>} : memref<64x128xf32, #tpu.memory_space<vmem>>, vector<13x128xf32>,
    %c0_3 = arith.constant 0 : index
    %c0_4 = arith.constant 0 : index
    %2 = vector.load %arg5[%c0_3, %c0_4] : memref<64x128xf32, #tpu.memory_space<vmem>>, vector<13x128xf32>
    %c0_5 = arith.constant 0 : index
    %c0_6 = arith.constant 0 : index
    %3 = vector.load %arg3[%c0_5, %c0_6] : memref<2080x1xf32, #tpu.memory_space<vmem>>, vector<13x1xf32>
    %4 = vector.broadcast %3 : vector<13x1xf32> to vector<13x128xf32>
    %5 = arith.mulf %2, %4 : vector<13x128xf32>
    %c16 = arith.constant 16 : index
    %c0_7 = arith.constant 0 : index
    %6 = vector.load %arg3[%c16, %c0_7] : memref<2080x1xf32, #tpu.memory_space<vmem>>, vector<13x1xf32>
    %7 = vector.broadcast %6 : vector<13x1xf32> to vector<13x128xf32>
    %8 = arith.addf %5, %7 : vector<13x128xf32>
    %9 = math.tanh %8 : vector<13x128xf32>
    %c0_8 = arith.constant 0 : index
    %c0_9 = arith.constant 0 : index
    %10 = vector.load %arg2[%c0_8, %c0_9] : memref<624x64xf32, #tpu.memory_space<vmem>>, vector<20x13xf32>
    %cst = arith.constant dense<0.000000e+00> : vector<20x128xf32>
    %11 = tpu.matmul %10, %9, %cst {dimension_numbers = #tpu.dot_dimension_numbers<[1], [0], [0], [1], [0, 0, 1, 1], [], []>} : vector<20x13xf32>, vector<13x128xf32>, vector<20x128xf32> -> vector<20x128xf32>
    %c32 = arith.constant 32 : index
    %c0_10 = arith.constant 0 : index
    %12 = vector.load %arg3[%c32, %c0_10] : memref<2080x1xf32, #tpu.memory_space<vmem>>, vector<20x1xf32>
    %13 = vector.broadcast %12 : vector<20x1xf32> to vector<20x128xf32>
    %14 = arith.addf %11, %13 : vector<20x128xf32>
    %15 = math.tanh %14 : vector<20x128xf32>
    %c24 = arith.constant 24 : index
    %c0_11 = arith.constant 0 : index
    %16 = vector.load %arg2[%c24, %c0_11] : memref<624x64xf32, #tpu.memory_space<vmem>>, vector<5x20xf32>
    %cst_12 = arith.constant dense<0.000000e+00> : vector<5x128xf32>
    %17 = tpu.matmul %16, %15, %cst_12 {dimension_numbers = #tpu.dot_dimension_numbers<[1], [0], [0], [1], [0, 0, 1, 1], [], []>} : vector<5x20xf32>, vector<20x128xf32>, vector<5x128xf32> -> vector<5x128xf32>
    %c56 = arith.constant 56 : index
    %c0_13 = arith.constant 0 : index
    %18 = vector.load %arg3[%c56, %c0_13] : memref<2080x1xf32, #tpu.memory_space<vmem>>, vector<5x1xf32>
    %19 = vector.broadcast %18 : vector<5x1xf32> to vector<5x128xf32>
    %20 = arith.addf %17, %19 : vector<5x128xf32>
    %c13 = arith.constant 13 : index
    %c0_14 = arith.constant 0 : index
    %21 = vector.load %arg5[%c13, %c0_14] : memref<64x128xf32, #tpu.memory_space<vmem>>, vector<5x128xf32>
    tpu.vector_store %arg5[%c13, %c0_14], %20 {strides = array<i32>} : memref<64x128xf32, #tpu.memory_space<vmem>>, vector<5x128xf32>,
    %c0_15 = arith.constant 0 : index
    %c0_16 = arith.constant 0 : index
    %22 = vector.load %arg5[%c0_15, %c0_16] : memref<64x128xf32, #tpu.memory_space<vmem>>, vector<18x128xf32>
    %c64 = arith.constant 64 : index
    %c0_17 = arith.constant 0 : index
    %23 = vector.load %arg3[%c64, %c0_17] : memref<2080x1xf32, #tpu.memory_space<vmem>>, vector<18x1xf32>
    %24 = vector.broadcast %23 : vector<18x1xf32> to vector<18x128xf32>
    %25 = arith.mulf %22, %24 : vector<18x128xf32>
    %c88 = arith.constant 88 : index
    %c0_18 = arith.constant 0 : index
    %26 = vector.load %arg3[%c88, %c0_18] : memref<2080x1xf32, #tpu.memory_space<vmem>>, vector<18x1xf32>
    %27 = vector.broadcast %26 : vector<18x1xf32> to vector<18x128xf32>
    %28 = arith.addf %25, %27 : vector<18x128xf32>
    %29 = math.tanh %28 : vector<18x128xf32>
    %c32_19 = arith.constant 32 : index
    %c0_20 = arith.constant 0 : index
    %30 = vector.load %arg2[%c32_19, %c0_20] : memref<624x64xf32, #tpu.memory_space<vmem>>, vector<20x18xf32>
    %cst_21 = arith.constant dense<0.000000e+00> : vector<20x128xf32>
    %31 = tpu.matmul %30, %29, %cst_21 {dimension_numbers = #tpu.dot_dimension_numbers<[1], [0], [0], [1], [0, 0, 1, 1], [], []>} : vector<20x18xf32>, vector<18x128xf32>, vector<20x128xf32> -> vector<20x128xf32>
    %c112 = arith.constant 112 : index
    %c0_22 = arith.constant 0 : index
    %32 = vector.load %arg3[%c112, %c0_22] : memref<2080x1xf32, #tpu.memory_space<vmem>>, vector<20x1xf32>
    %33 = vector.broadcast %32 : vector<20x1xf32> to vector<20x128xf32>
    %34 = arith.addf %31, %33 : vector<20x128xf32>
    %35 = math.tanh %34 : vector<20x128xf32>
    %c56_23 = arith.constant 56 : index
    %c0_24 = arith.constant 0 : index
    %36 = vector.load %arg2[%c56_23, %c0_24] : memref<624x64xf32, #tpu.memory_space<vmem>>, vector<5x20xf32>
    %cst_25 = arith.constant dense<0.000000e+00> : vector<5x128xf32>
    %37 = tpu.matmul %36, %35, %cst_25 {dimension_numbers = #tpu.dot_dimension_numbers<[1], [0], [0], [1], [0, 0, 1, 1], [], []>} : vector<5x20xf32>, vector<20x128xf32>, vector<5x128xf32> -> vector<5x128xf32>
    %c136 = arith.constant 136 : index
    %c0_26 = arith.constant 0 : index
    %38 = vector.load %arg3[%c136, %c0_26] : memref<2080x1xf32, #tpu.memory_space<vmem>>, vector<5x1xf32>
    %39 = vector.broadcast %38 : vector<5x1xf32> to vector<5x128xf32>
    %40 = arith.addf %37, %39 : vector<5x128xf32>
    %c18 = arith.constant 18 : index
    %c0_27 = arith.constant 0 : index
    %41 = vector.load %arg5[%c18, %c0_27] : memref<64x128xf32, #tpu.memory_space<vmem>>, vector<5x128xf32>
    tpu.vector_store %arg5[%c18, %c0_27], %40 {strides = array<i32>} : memref<64x128xf32, #tpu.memory_space<vmem>>, vector<5x128xf32>,
    %c0_28 = arith.constant 0 : index
    %c0_29 = arith.constant 0 : index
    %42 = vector.load %arg5[%c0_28, %c0_29] : memref<64x128xf32, #tpu.memory_space<vmem>>, vector<23x128xf32>
    %c144 = arith.constant 144 : index
    %c0_30 = arith.constant 0 : index
    %43 = vector.load %arg3[%c144, %c0_30] : memref<2080x1xf32, #tpu.memory_space<vmem>>, vector<23x1xf32>
    %44 = vector.broadcast %43 : vector<23x1xf32> to vector<23x128xf32>
    %45 = arith.mulf %42, %44 : vector<23x128xf32>
    %c168 = arith.constant 168 : index
    %c0_31 = arith.constant 0 : index
    %46 = vector.load %arg3[%c168, %c0_31] : memref<2080x1xf32, #tpu.memory_space<vmem>>, vector<23x1xf32>
    %47 = vector.broadcast %46 : vector<23x1xf32> to vector<23x128xf32>
    %48 = arith.addf %45, %47 : vector<23x128xf32>
    %49 = math.tanh %48 : vector<23x128xf32>
    %c64_32 = arith.constant 64 : index
    %c0_33 = arith.constant 0 : index
    %50 = vector.load %arg2[%c64_32, %c0_33] : memref<624x64xf32, #tpu.memory_space<vmem>>, vector<20x23xf32>
    %cst_34 = arith.constant dense<0.000000e+00> : vector<20x128xf32>
    %51 = tpu.matmul %50, %49, %cst_34 {dimension_numbers = #tpu.dot_dimension_numbers<[1], [0], [0], [1], [0, 0, 1, 1], [], []>} : vector<20x23xf32>, vector<23x128xf32>, vector<20x128xf32> -> vector<20x128xf32>
    %c192 = arith.constant 192 : index
    %c0_35 = arith.constant 0 : index
    %52 = vector.load %arg3[%c192, %c0_35] : memref<2080x1xf32, #tpu.memory_space<vmem>>, vector<20x1xf32>
    %53 = vector.broadcast %52 : vector<20x1xf32> to vector<20x128xf32>
    %54 = arith.addf %51, %53 : vector<20x128xf32>
    %55 = math.tanh %54 : vector<20x128xf32>
    %c88_36 = arith.constant 88 : index
    %c0_37 = arith.constant 0 : index
    %56 = vector.load %arg2[%c88_36, %c0_37] : memref<624x64xf32, #tpu.memory_space<vmem>>, vector<5x20xf32>
    %cst_38 = arith.constant dense<0.000000e+00> : vector<5x128xf32>
    %57 = tpu.matmul %56, %55, %cst_38 {dimension_numbers = #tpu.dot_dimension_numbers<[1], [0], [0], [1], [0, 0, 1, 1], [], []>} : vector<5x20xf32>, vector<20x128xf32>, vector<5x128xf32> -> vector<5x128xf32>
    %c216 = arith.constant 216 : index
    %c0_39 = arith.constant 0 : index
    %58 = vector.load %arg3[%c216, %c0_39] : memref<2080x1xf32, #tpu.memory_space<vmem>>, vector<5x1xf32>
    %59 = vector.broadcast %58 : vector<5x1xf32> to vector<5x128xf32>
    %60 = arith.addf %57, %59 : vector<5x128xf32>
    %c23 = arith.constant 23 : index
    %c0_40 = arith.constant 0 : index
    %61 = vector.load %arg5[%c23, %c0_40] : memref<64x128xf32, #tpu.memory_space<vmem>>, vector<5x128xf32>
    tpu.vector_store %arg5[%c23, %c0_40], %60 {strides = array<i32>} : memref<64x128xf32, #tpu.memory_space<vmem>>, vector<5x128xf32>,
    %c0_41 = arith.constant 0 : index
    %c0_42 = arith.constant 0 : index
    %62 = vector.load %arg5[%c0_41, %c0_42] : memref<64x128xf32, #tpu.memory_space<vmem>>, vector<28x128xf32>
    %c224 = arith.constant 224 : index
    %c0_43 = arith.constant 0 : index
    %63 = vector.load %arg3[%c224, %c0_43] : memref<2080x1xf32, #tpu.memory_space<vmem>>, vector<28x1xf32>
    %64 = vector.broadcast %63 : vector<28x1xf32> to vector<28x128xf32>
    %65 = arith.mulf %62, %64 : vector<28x128xf32>
    %c256 = arith.constant 256 : index
    %c0_44 = arith.constant 0 : index
    %66 = vector.load %arg3[%c256, %c0_44] : memref<2080x1xf32, #tpu.memory_space<vmem>>, vector<28x1xf32>
    %67 = vector.broadcast %66 : vector<28x1xf32> to vector<28x128xf32>
    %68 = arith.addf %65, %67 : vector<28x128xf32>
    %69 = math.tanh %68 : vector<28x128xf32>
    %c96 = arith.constant 96 : index
    %c0_45 = arith.constant 0 : index
    %70 = vector.load %arg2[%c96, %c0_45] : memref<624x64xf32, #tpu.memory_space<vmem>>, vector<20x28xf32>
    %cst_46 = arith.constant dense<0.000000e+00> : vector<20x128xf32>
    %71 = tpu.matmul %70, %69, %cst_46 {dimension_numbers = #tpu.dot_dimension_numbers<[1], [0], [0], [1], [0, 0, 1, 1], [], []>} : vector<20x28xf32>, vector<28x128xf32>, vector<20x128xf32> -> vector<20x128xf32>
    %c288 = arith.constant 288 : index
    %c0_47 = arith.constant 0 : index
    %72 = vector.load %arg3[%c288, %c0_47] : memref<2080x1xf32, #tpu.memory_space<vmem>>, vector<20x1xf32>
    %73 = vector.broadcast %72 : vector<20x1xf32> to vector<20x128xf32>
    %74 = arith.addf %71, %73 : vector<20x128xf32>
    %75 = math.tanh %74 : vector<20x128xf32>
    %c120 = arith.constant 120 : index
    %c0_48 = arith.constant 0 : index
    %76 = vector.load %arg2[%c120, %c0_48] : memref<624x64xf32, #tpu.memory_space<vmem>>, vector<5x20xf32>
    %cst_49 = arith.constant dense<0.000000e+00> : vector<5x128xf32>
    %77 = tpu.matmul %76, %75, %cst_49 {dimension_numbers = #tpu.dot_dimension_numbers<[1], [0], [0], [1], [0, 0, 1, 1], [], []>} : vector<5x20xf32>, vector<20x128xf32>, vector<5x128xf32> -> vector<5x128xf32>
    %c312 = arith.constant 312 : index
    %c0_50 = arith.constant 0 : index
    %78 = vector.load %arg3[%c312, %c0_50] : memref<2080x1xf32, #tpu.memory_space<vmem>>, vector<5x1xf32>
    %79 = vector.broadcast %78 : vector<5x1xf32> to vector<5x128xf32>
    %80 = arith.addf %77, %79 : vector<5x128xf32>
    %c28 = arith.constant 28 : index
    %c0_51 = arith.constant 0 : index
    %81 = vector.load %arg5[%c28, %c0_51] : memref<64x128xf32, #tpu.memory_space<vmem>>, vector<5x128xf32>
    tpu.vector_store %arg5[%c28, %c0_51], %80 {strides = array<i32>} : memref<64x128xf32, #tpu.memory_space<vmem>>, vector<5x128xf32>,
    %c0_52 = arith.constant 0 : index
    %c0_53 = arith.constant 0 : index
    %82 = vector.load %arg5[%c0_52, %c0_53] : memref<64x128xf32, #tpu.memory_space<vmem>>, vector<33x128xf32>
    %c320 = arith.constant 320 : index
    %c0_54 = arith.constant 0 : index
    %83 = vector.load %arg3[%c320, %c0_54] : memref<2080x1xf32, #tpu.memory_space<vmem>>, vector<33x1xf32>
    %84 = vector.broadcast %83 : vector<33x1xf32> to vector<33x128xf32>
    %85 = arith.mulf %82, %84 : vector<33x128xf32>
    %c360 = arith.constant 360 : index
    %c0_55 = arith.constant 0 : index
    %86 = vector.load %arg3[%c360, %c0_55] : memref<2080x1xf32, #tpu.memory_space<vmem>>, vector<33x1xf32>
    %87 = vector.broadcast %86 : vector<33x1xf32> to vector<33x128xf32>
    %88 = arith.addf %85, %87 : vector<33x128xf32>
    %89 = math.tanh %88 : vector<33x128xf32>
    %c128 = arith.constant 128 : index
    %c0_56 = arith.constant 0 : index
    %90 = vector.load %arg2[%c128, %c0_56] : memref<624x64xf32, #tpu.memory_space<vmem>>, vector<16x33xf32>
    %cst_57 = arith.constant dense<0.000000e+00> : vector<16x128xf32>
    %91 = tpu.matmul %90, %89, %cst_57 {dimension_numbers = #tpu.dot_dimension_numbers<[1], [0], [0], [1], [0, 0, 1, 1], [], []>} : vector<16x33xf32>, vector<33x128xf32>, vector<16x128xf32> -> vector<16x128xf32>
    %c400 = arith.constant 400 : index
    %c0_58 = arith.constant 0 : index
    %92 = vector.load %arg3[%c400, %c0_58] : memref<2080x1xf32, #tpu.memory_space<vmem>>, vector<16x1xf32>
    %93 = vector.broadcast %92 : vector<16x1xf32> to vector<16x128xf32>
    %94 = arith.addf %91, %93 : vector<16x128xf32>
    %c0_59 = arith.constant 0 : index
    %c0_60 = arith.constant 0 : index
    %95 = vector.load %arg5[%c0_59, %c0_60] : memref<64x128xf32, #tpu.memory_space<vmem>>, vector<16x128xf32>
    tpu.vector_store %arg5[%c0_59, %c0_60], %94 {strides = array<i32>} : memref<64x128xf32, #tpu.memory_space<vmem>>, vector<16x128xf32>,
    %c0_61 = arith.constant 0 : index
    %c0_62 = arith.constant 0 : index
    %96 = vector.load %arg5[%c0_61, %c0_62] : memref<64x128xf32, #tpu.memory_space<vmem>>, vector<16x128xf32>
    %c416 = arith.constant 416 : index
    %c0_63 = arith.constant 0 : index
    %97 = vector.load %arg3[%c416, %c0_63] : memref<2080x1xf32, #tpu.memory_space<vmem>>, vector<16x1xf32>
    %98 = vector.broadcast %97 : vector<16x1xf32> to vector<16x128xf32>
    %99 = arith.mulf %96, %98 : vector<16x128xf32>
    %c432 = arith.constant 432 : index
    %c0_64 = arith.constant 0 : index
    %100 = vector.load %arg3[%c432, %c0_64] : memref<2080x1xf32, #tpu.memory_space<vmem>>, vector<16x1xf32>
    %101 = vector.broadcast %100 : vector<16x1xf32> to vector<16x128xf32>
    %102 = arith.addf %99, %101 : vector<16x128xf32>
    %103 = math.tanh %102 : vector<16x128xf32>
    %c144_65 = arith.constant 144 : index
    %c0_66 = arith.constant 0 : index
    %104 = vector.load %arg2[%c144_65, %c0_66] : memref<624x64xf32, #tpu.memory_space<vmem>>, vector<20x16xf32>
    %cst_67 = arith.constant dense<0.000000e+00> : vector<20x128xf32>
    %105 = tpu.matmul %104, %103, %cst_67 {dimension_numbers = #tpu.dot_dimension_numbers<[1], [0], [0], [1], [0, 0, 1, 1], [], []>} : vector<20x16xf32>, vector<16x128xf32>, vector<20x128xf32> -> vector<20x128xf32>
    %c448 = arith.constant 448 : index
    %c0_68 = arith.constant 0 : index
    %106 = vector.load %arg3[%c448, %c0_68] : memref<2080x1xf32, #tpu.memory_space<vmem>>, vector<20x1xf32>
    %107 = vector.broadcast %106 : vector<20x1xf32> to vector<20x128xf32>
    %108 = arith.addf %105, %107 : vector<20x128xf32>
    %109 = math.tanh %108 : vector<20x128xf32>
    %c168_69 = arith.constant 168 : index
    %c0_70 = arith.constant 0 : index
    %110 = vector.load %arg2[%c168_69, %c0_70] : memref<624x64xf32, #tpu.memory_space<vmem>>, vector<5x20xf32>
    %cst_71 = arith.constant dense<0.000000e+00> : vector<5x128xf32>
    %111 = tpu.matmul %110, %109, %cst_71 {dimension_numbers = #tpu.dot_dimension_numbers<[1], [0], [0], [1], [0, 0, 1, 1], [], []>} : vector<5x20xf32>, vector<20x128xf32>, vector<5x128xf32> -> vector<5x128xf32>
    %c472 = arith.constant 472 : index
    %c0_72 = arith.constant 0 : index
    %112 = vector.load %arg3[%c472, %c0_72] : memref<2080x1xf32, #tpu.memory_space<vmem>>, vector<5x1xf32>
    %113 = vector.broadcast %112 : vector<5x1xf32> to vector<5x128xf32>
    %114 = arith.addf %111, %113 : vector<5x128xf32>
    %c16_73 = arith.constant 16 : index
    %c0_74 = arith.constant 0 : index
    %115 = vector.load %arg5[%c16_73, %c0_74] : memref<64x128xf32, #tpu.memory_space<vmem>>, vector<5x128xf32>
    tpu.vector_store %arg5[%c16_73, %c0_74], %114 {strides = array<i32>} : memref<64x128xf32, #tpu.memory_space<vmem>>, vector<5x128xf32>,
    %c0_75 = arith.constant 0 : index
    %c0_76 = arith.constant 0 : index
    %116 = vector.load %arg5[%c0_75, %c0_76] : memref<64x128xf32, #tpu.memory_space<vmem>>, vector<21x128xf32>
    %c480 = arith.constant 480 : index
    %c0_77 = arith.constant 0 : index
    %117 = vector.load %arg3[%c480, %c0_77] : memref<2080x1xf32, #tpu.memory_space<vmem>>, vector<21x1xf32>
    %118 = vector.broadcast %117 : vector<21x1xf32> to vector<21x128xf32>
    %119 = arith.mulf %116, %118 : vector<21x128xf32>
    %c504 = arith.constant 504 : index
    %c0_78 = arith.constant 0 : index
    %120 = vector.load %arg3[%c504, %c0_78] : memref<2080x1xf32, #tpu.memory_space<vmem>>, vector<21x1xf32>
    %121 = vector.broadcast %120 : vector<21x1xf32> to vector<21x128xf32>
    %122 = arith.addf %119, %121 : vector<21x128xf32>
    %123 = math.tanh %122 : vector<21x128xf32>
    %c176 = arith.constant 176 : index
    %c0_79 = arith.constant 0 : index
    %124 = vector.load %arg2[%c176, %c0_79] : memref<624x64xf32, #tpu.memory_space<vmem>>, vector<20x21xf32>
    %cst_80 = arith.constant dense<0.000000e+00> : vector<20x128xf32>
    %125 = tpu.matmul %124, %123, %cst_80 {dimension_numbers = #tpu.dot_dimension_numbers<[1], [0], [0], [1], [0, 0, 1, 1], [], []>} : vector<20x21xf32>, vector<21x128xf32>, vector<20x128xf32> -> vector<20x128xf32>
    %c528 = arith.constant 528 : index
    %c0_81 = arith.constant 0 : index
    %126 = vector.load %arg3[%c528, %c0_81] : memref<2080x1xf32, #tpu.memory_space<vmem>>, vector<20x1xf32>
    %127 = vector.broadcast %126 : vector<20x1xf32> to vector<20x128xf32>
    %128 = arith.addf %125, %127 : vector<20x128xf32>
    %129 = math.tanh %128 : vector<20x128xf32>
    %c200 = arith.constant 200 : index
    %c0_82 = arith.constant 0 : index
    %130 = vector.load %arg2[%c200, %c0_82] : memref<624x64xf32, #tpu.memory_space<vmem>>, vector<5x20xf32>
    %cst_83 = arith.constant dense<0.000000e+00> : vector<5x128xf32>
    %131 = tpu.matmul %130, %129, %cst_83 {dimension_numbers = #tpu.dot_dimension_numbers<[1], [0], [0], [1], [0, 0, 1, 1], [], []>} : vector<5x20xf32>, vector<20x128xf32>, vector<5x128xf32> -> vector<5x128xf32>
    %c552 = arith.constant 552 : index
    %c0_84 = arith.constant 0 : index
    %132 = vector.load %arg3[%c552, %c0_84] : memref<2080x1xf32, #tpu.memory_space<vmem>>, vector<5x1xf32>
    %133 = vector.broadcast %132 : vector<5x1xf32> to vector<5x128xf32>
    %134 = arith.addf %131, %133 : vector<5x128xf32>
    %c21 = arith.constant 21 : index
    %c0_85 = arith.constant 0 : index
    %135 = vector.load %arg5[%c21, %c0_85] : memref<64x128xf32, #tpu.memory_space<vmem>>, vector<5x128xf32>
    tpu.vector_store %arg5[%c21, %c0_85], %134 {strides = array<i32>} : memref<64x128xf32, #tpu.memory_space<vmem>>, vector<5x128xf32>,
    %c0_86 = arith.constant 0 : index
    %c0_87 = arith.constant 0 : index
    %136 = vector.load %arg5[%c0_86, %c0_87] : memref<64x128xf32, #tpu.memory_space<vmem>>, vector<26x128xf32>
    %c560 = arith.constant 560 : index
    %c0_88 = arith.constant 0 : index
    %137 = vector.load %arg3[%c560, %c0_88] : memref<2080x1xf32, #tpu.memory_space<vmem>>, vector<26x1xf32>
    %138 = vector.broadcast %137 : vector<26x1xf32> to vector<26x128xf32>
    %139 = arith.mulf %136, %138 : vector<26x128xf32>
    %c592 = arith.constant 592 : index
    %c0_89 = arith.constant 0 : index
    %140 = vector.load %arg3[%c592, %c0_89] : memref<2080x1xf32, #tpu.memory_space<vmem>>, vector<26x1xf32>
    %141 = vector.broadcast %140 : vector<26x1xf32> to vector<26x128xf32>
    %142 = arith.addf %139, %141 : vector<26x128xf32>
    %143 = math.tanh %142 : vector<26x128xf32>
    %c208 = arith.constant 208 : index
    %c0_90 = arith.constant 0 : index
    %144 = vector.load %arg2[%c208, %c0_90] : memref<624x64xf32, #tpu.memory_space<vmem>>, vector<20x26xf32>
    %cst_91 = arith.constant dense<0.000000e+00> : vector<20x128xf32>
    %145 = tpu.matmul %144, %143, %cst_91 {dimension_numbers = #tpu.dot_dimension_numbers<[1], [0], [0], [1], [0, 0, 1, 1], [], []>} : vector<20x26xf32>, vector<26x128xf32>, vector<20x128xf32> -> vector<20x128xf32>
    %c624 = arith.constant 624 : index
    %c0_92 = arith.constant 0 : index
    %146 = vector.load %arg3[%c624, %c0_92] : memref<2080x1xf32, #tpu.memory_space<vmem>>, vector<20x1xf32>
    %147 = vector.broadcast %146 : vector<20x1xf32> to vector<20x128xf32>
    %148 = arith.addf %145, %147 : vector<20x128xf32>
    %149 = math.tanh %148 : vector<20x128xf32>
    %c232 = arith.constant 232 : index
    %c0_93 = arith.constant 0 : index
    %150 = vector.load %arg2[%c232, %c0_93] : memref<624x64xf32, #tpu.memory_space<vmem>>, vector<5x20xf32>
    %cst_94 = arith.constant dense<0.000000e+00> : vector<5x128xf32>
    %151 = tpu.matmul %150, %149, %cst_94 {dimension_numbers = #tpu.dot_dimension_numbers<[1], [0], [0], [1], [0, 0, 1, 1], [], []>} : vector<5x20xf32>, vector<20x128xf32>, vector<5x128xf32> -> vector<5x128xf32>
    %c648 = arith.constant 648 : index
    %c0_95 = arith.constant 0 : index
    %152 = vector.load %arg3[%c648, %c0_95] : memref<2080x1xf32, #tpu.memory_space<vmem>>, vector<5x1xf32>
    %153 = vector.broadcast %152 : vector<5x1xf32> to vector<5x128xf32>
    %154 = arith.addf %151, %153 : vector<5x128xf32>
    %c26 = arith.constant 26 : index
    %c0_96 = arith.constant 0 : index
    %155 = vector.load %arg5[%c26, %c0_96] : memref<64x128xf32, #tpu.memory_space<vmem>>, vector<5x128xf32>
    tpu.vector_store %arg5[%c26, %c0_96], %154 {strides = array<i32>} : memref<64x128xf32, #tpu.memory_space<vmem>>, vector<5x128xf32>,
    %c0_97 = arith.constant 0 : index
    %c0_98 = arith.constant 0 : index
    %156 = vector.load %arg5[%c0_97, %c0_98] : memref<64x128xf32, #tpu.memory_space<vmem>>, vector<31x128xf32>
    %c656 = arith.constant 656 : index
    %c0_99 = arith.constant 0 : index
    %157 = vector.load %arg3[%c656, %c0_99] : memref<2080x1xf32, #tpu.memory_space<vmem>>, vector<31x1xf32>
    %158 = vector.broadcast %157 : vector<31x1xf32> to vector<31x128xf32>
    %159 = arith.mulf %156, %158 : vector<31x128xf32>
    %c688 = arith.constant 688 : index
    %c0_100 = arith.constant 0 : index
    %160 = vector.load %arg3[%c688, %c0_100] : memref<2080x1xf32, #tpu.memory_space<vmem>>, vector<31x1xf32>
    %161 = vector.broadcast %160 : vector<31x1xf32> to vector<31x128xf32>
    %162 = arith.addf %159, %161 : vector<31x128xf32>
    %163 = math.tanh %162 : vector<31x128xf32>
    %c240 = arith.constant 240 : index
    %c0_101 = arith.constant 0 : index
    %164 = vector.load %arg2[%c240, %c0_101] : memref<624x64xf32, #tpu.memory_space<vmem>>, vector<20x31xf32>
    %cst_102 = arith.constant dense<0.000000e+00> : vector<20x128xf32>
    %165 = tpu.matmul %164, %163, %cst_102 {dimension_numbers = #tpu.dot_dimension_numbers<[1], [0], [0], [1], [0, 0, 1, 1], [], []>} : vector<20x31xf32>, vector<31x128xf32>, vector<20x128xf32> -> vector<20x128xf32>
    %c720 = arith.constant 720 : index
    %c0_103 = arith.constant 0 : index
    %166 = vector.load %arg3[%c720, %c0_103] : memref<2080x1xf32, #tpu.memory_space<vmem>>, vector<20x1xf32>
    %167 = vector.broadcast %166 : vector<20x1xf32> to vector<20x128xf32>
    %168 = arith.addf %165, %167 : vector<20x128xf32>
    %169 = math.tanh %168 : vector<20x128xf32>
    %c264 = arith.constant 264 : index
    %c0_104 = arith.constant 0 : index
    %170 = vector.load %arg2[%c264, %c0_104] : memref<624x64xf32, #tpu.memory_space<vmem>>, vector<5x20xf32>
    %cst_105 = arith.constant dense<0.000000e+00> : vector<5x128xf32>
    %171 = tpu.matmul %170, %169, %cst_105 {dimension_numbers = #tpu.dot_dimension_numbers<[1], [0], [0], [1], [0, 0, 1, 1], [], []>} : vector<5x20xf32>, vector<20x128xf32>, vector<5x128xf32> -> vector<5x128xf32>
    %c744 = arith.constant 744 : index
    %c0_106 = arith.constant 0 : index
    %172 = vector.load %arg3[%c744, %c0_106] : memref<2080x1xf32, #tpu.memory_space<vmem>>, vector<5x1xf32>
    %173 = vector.broadcast %172 : vector<5x1xf32> to vector<5x128xf32>
    %174 = arith.addf %171, %173 : vector<5x128xf32>
    %c31 = arith.constant 31 : index
    %c0_107 = arith.constant 0 : index
    %175 = vector.load %arg5[%c31, %c0_107] : memref<64x128xf32, #tpu.memory_space<vmem>>, vector<5x128xf32>
    tpu.vector_store %arg5[%c31, %c0_107], %174 {strides = array<i32>} : memref<64x128xf32, #tpu.memory_space<vmem>>, vector<5x128xf32>,
    %c0_108 = arith.constant 0 : index
    %c0_109 = arith.constant 0 : index
    %176 = vector.load %arg5[%c0_108, %c0_109] : memref<64x128xf32, #tpu.memory_space<vmem>>, vector<36x128xf32>
    %c752 = arith.constant 752 : index
    %c0_110 = arith.constant 0 : index
    %177 = vector.load %arg3[%c752, %c0_110] : memref<2080x1xf32, #tpu.memory_space<vmem>>, vector<36x1xf32>
    %178 = vector.broadcast %177 : vector<36x1xf32> to vector<36x128xf32>
    %179 = arith.mulf %176, %178 : vector<36x128xf32>
    %c792 = arith.constant 792 : index
    %c0_111 = arith.constant 0 : index
    %180 = vector.load %arg3[%c792, %c0_111] : memref<2080x1xf32, #tpu.memory_space<vmem>>, vector<36x1xf32>
    %181 = vector.broadcast %180 : vector<36x1xf32> to vector<36x128xf32>
    %182 = arith.addf %179, %181 : vector<36x128xf32>
    %183 = math.tanh %182 : vector<36x128xf32>
    %c272 = arith.constant 272 : index
    %c0_112 = arith.constant 0 : index
    %184 = vector.load %arg2[%c272, %c0_112] : memref<624x64xf32, #tpu.memory_space<vmem>>, vector<20x36xf32>
    %cst_113 = arith.constant dense<0.000000e+00> : vector<20x128xf32>
    %185 = tpu.matmul %184, %183, %cst_113 {dimension_numbers = #tpu.dot_dimension_numbers<[1], [0], [0], [1], [0, 0, 1, 1], [], []>} : vector<20x36xf32>, vector<36x128xf32>, vector<20x128xf32> -> vector<20x128xf32>
    %c832 = arith.constant 832 : index
    %c0_114 = arith.constant 0 : index
    %186 = vector.load %arg3[%c832, %c0_114] : memref<2080x1xf32, #tpu.memory_space<vmem>>, vector<20x1xf32>
    %187 = vector.broadcast %186 : vector<20x1xf32> to vector<20x128xf32>
    %188 = arith.addf %185, %187 : vector<20x128xf32>
    %189 = math.tanh %188 : vector<20x128xf32>
    %c296 = arith.constant 296 : index
    %c0_115 = arith.constant 0 : index
    %190 = vector.load %arg2[%c296, %c0_115] : memref<624x64xf32, #tpu.memory_space<vmem>>, vector<5x20xf32>
    %cst_116 = arith.constant dense<0.000000e+00> : vector<5x128xf32>
    %191 = tpu.matmul %190, %189, %cst_116 {dimension_numbers = #tpu.dot_dimension_numbers<[1], [0], [0], [1], [0, 0, 1, 1], [], []>} : vector<5x20xf32>, vector<20x128xf32>, vector<5x128xf32> -> vector<5x128xf32>
    %c856 = arith.constant 856 : index
    %c0_117 = arith.constant 0 : index
    %192 = vector.load %arg3[%c856, %c0_117] : memref<2080x1xf32, #tpu.memory_space<vmem>>, vector<5x1xf32>
    %193 = vector.broadcast %192 : vector<5x1xf32> to vector<5x128xf32>
    %194 = arith.addf %191, %193 : vector<5x128xf32>
    %c36 = arith.constant 36 : index
    %c0_118 = arith.constant 0 : index
    %195 = vector.load %arg5[%c36, %c0_118] : memref<64x128xf32, #tpu.memory_space<vmem>>, vector<5x128xf32>
    tpu.vector_store %arg5[%c36, %c0_118], %194 {strides = array<i32>} : memref<64x128xf32, #tpu.memory_space<vmem>>, vector<5x128xf32>,
    %c0_119 = arith.constant 0 : index
    %c0_120 = arith.constant 0 : index
    %196 = vector.load %arg5[%c0_119, %c0_120] : memref<64x128xf32, #tpu.memory_space<vmem>>, vector<41x128xf32>
    %c864 = arith.constant 864 : index
    %c0_121 = arith.constant 0 : index
    %197 = vector.load %arg3[%c864, %c0_121] : memref<2080x1xf32, #tpu.memory_space<vmem>>, vector<41x1xf32>
    %198 = vector.broadcast %197 : vector<41x1xf32> to vector<41x128xf32>
    %199 = arith.mulf %196, %198 : vector<41x128xf32>
    %c912 = arith.constant 912 : index
    %c0_122 = arith.constant 0 : index
    %200 = vector.load %arg3[%c912, %c0_122] : memref<2080x1xf32, #tpu.memory_space<vmem>>, vector<41x1xf32>
    %201 = vector.broadcast %200 : vector<41x1xf32> to vector<41x128xf32>
    %202 = arith.addf %199, %201 : vector<41x128xf32>
    %203 = math.tanh %202 : vector<41x128xf32>
    %c304 = arith.constant 304 : index
    %c0_123 = arith.constant 0 : index
    %204 = vector.load %arg2[%c304, %c0_123] : memref<624x64xf32, #tpu.memory_space<vmem>>, vector<20x41xf32>
    %cst_124 = arith.constant dense<0.000000e+00> : vector<20x128xf32>
    %205 = tpu.matmul %204, %203, %cst_124 {dimension_numbers = #tpu.dot_dimension_numbers<[1], [0], [0], [1], [0, 0, 1, 1], [], []>} : vector<20x41xf32>, vector<41x128xf32>, vector<20x128xf32> -> vector<20x128xf32>
    %c960 = arith.constant 960 : index
    %c0_125 = arith.constant 0 : index
    %206 = vector.load %arg3[%c960, %c0_125] : memref<2080x1xf32, #tpu.memory_space<vmem>>, vector<20x1xf32>
    %207 = vector.broadcast %206 : vector<20x1xf32> to vector<20x128xf32>
    %208 = arith.addf %205, %207 : vector<20x128xf32>
    %209 = math.tanh %208 : vector<20x128xf32>
    %c328 = arith.constant 328 : index
    %c0_126 = arith.constant 0 : index
    %210 = vector.load %arg2[%c328, %c0_126] : memref<624x64xf32, #tpu.memory_space<vmem>>, vector<5x20xf32>
    %cst_127 = arith.constant dense<0.000000e+00> : vector<5x128xf32>
    %211 = tpu.matmul %210, %209, %cst_127 {dimension_numbers = #tpu.dot_dimension_numbers<[1], [0], [0], [1], [0, 0, 1, 1], [], []>} : vector<5x20xf32>, vector<20x128xf32>, vector<5x128xf32> -> vector<5x128xf32>
    %c984 = arith.constant 984 : index
    %c0_128 = arith.constant 0 : index
    %212 = vector.load %arg3[%c984, %c0_128] : memref<2080x1xf32, #tpu.memory_space<vmem>>, vector<5x1xf32>
    %213 = vector.broadcast %212 : vector<5x1xf32> to vector<5x128xf32>
    %214 = arith.addf %211, %213 : vector<5x128xf32>
    %c41 = arith.constant 41 : index
    %c0_129 = arith.constant 0 : index
    %215 = vector.load %arg5[%c41, %c0_129] : memref<64x128xf32, #tpu.memory_space<vmem>>, vector<5x128xf32>
    tpu.vector_store %arg5[%c41, %c0_129], %214 {strides = array<i32>} : memref<64x128xf32, #tpu.memory_space<vmem>>, vector<5x128xf32>,
    %c0_130 = arith.constant 0 : index
    %c0_131 = arith.constant 0 : index
    %216 = vector.load %arg5[%c0_130, %c0_131] : memref<64x128xf32, #tpu.memory_space<vmem>>, vector<46x128xf32>
    %c992 = arith.constant 992 : index
    %c0_132 = arith.constant 0 : index
    %217 = vector.load %arg3[%c992, %c0_132] : memref<2080x1xf32, #tpu.memory_space<vmem>>, vector<46x1xf32>
    %218 = vector.broadcast %217 : vector<46x1xf32> to vector<46x128xf32>
    %219 = arith.mulf %216, %218 : vector<46x128xf32>
    %c1040 = arith.constant 1040 : index
    %c0_133 = arith.constant 0 : index
    %220 = vector.load %arg3[%c1040, %c0_133] : memref<2080x1xf32, #tpu.memory_space<vmem>>, vector<46x1xf32>
    %221 = vector.broadcast %220 : vector<46x1xf32> to vector<46x128xf32>
    %222 = arith.addf %219, %221 : vector<46x128xf32>
    %223 = math.tanh %222 : vector<46x128xf32>
    %c336 = arith.constant 336 : index
    %c0_134 = arith.constant 0 : index
    %224 = vector.load %arg2[%c336, %c0_134] : memref<624x64xf32, #tpu.memory_space<vmem>>, vector<23x46xf32>
    %cst_135 = arith.constant dense<0.000000e+00> : vector<23x128xf32>
    %225 = tpu.matmul %224, %223, %cst_135 {dimension_numbers = #tpu.dot_dimension_numbers<[1], [0], [0], [1], [0, 0, 1, 1], [], []>} : vector<23x46xf32>, vector<46x128xf32>, vector<23x128xf32> -> vector<23x128xf32>
    %c1088 = arith.constant 1088 : index
    %c0_136 = arith.constant 0 : index
    %226 = vector.load %arg3[%c1088, %c0_136] : memref<2080x1xf32, #tpu.memory_space<vmem>>, vector<23x1xf32>
    %227 = vector.broadcast %226 : vector<23x1xf32> to vector<23x128xf32>
    %228 = arith.addf %225, %227 : vector<23x128xf32>
    %c0_137 = arith.constant 0 : index
    %c0_138 = arith.constant 0 : index
    %229 = vector.load %arg5[%c0_137, %c0_138] : memref<64x128xf32, #tpu.memory_space<vmem>>, vector<23x128xf32>
    tpu.vector_store %arg5[%c0_137, %c0_138], %228 {strides = array<i32>} : memref<64x128xf32, #tpu.memory_space<vmem>>, vector<23x128xf32>,
    %c0_139 = arith.constant 0 : index
    %c0_140 = arith.constant 0 : index
    %230 = vector.load %arg5[%c0_139, %c0_140] : memref<64x128xf32, #tpu.memory_space<vmem>>, vector<23x128xf32>
    %c1112 = arith.constant 1112 : index
    %c0_141 = arith.constant 0 : index
    %231 = vector.load %arg3[%c1112, %c0_141] : memref<2080x1xf32, #tpu.memory_space<vmem>>, vector<23x1xf32>
    %232 = vector.broadcast %231 : vector<23x1xf32> to vector<23x128xf32>
    %233 = arith.mulf %230, %232 : vector<23x128xf32>
    %c1136 = arith.constant 1136 : index
    %c0_142 = arith.constant 0 : index
    %234 = vector.load %arg3[%c1136, %c0_142] : memref<2080x1xf32, #tpu.memory_space<vmem>>, vector<23x1xf32>
    %235 = vector.broadcast %234 : vector<23x1xf32> to vector<23x128xf32>
    %236 = arith.addf %233, %235 : vector<23x128xf32>
    %237 = math.tanh %236 : vector<23x128xf32>
    %c360_143 = arith.constant 360 : index
    %c0_144 = arith.constant 0 : index
    %238 = vector.load %arg2[%c360_143, %c0_144] : memref<624x64xf32, #tpu.memory_space<vmem>>, vector<20x23xf32>
    %cst_145 = arith.constant dense<0.000000e+00> : vector<20x128xf32>
    %239 = tpu.matmul %238, %237, %cst_145 {dimension_numbers = #tpu.dot_dimension_numbers<[1], [0], [0], [1], [0, 0, 1, 1], [], []>} : vector<20x23xf32>, vector<23x128xf32>, vector<20x128xf32> -> vector<20x128xf32>
    %c1160 = arith.constant 1160 : index
    %c0_146 = arith.constant 0 : index
    %240 = vector.load %arg3[%c1160, %c0_146] : memref<2080x1xf32, #tpu.memory_space<vmem>>, vector<20x1xf32>
    %241 = vector.broadcast %240 : vector<20x1xf32> to vector<20x128xf32>
    %242 = arith.addf %239, %241 : vector<20x128xf32>
    %243 = math.tanh %242 : vector<20x128xf32>
    %c384 = arith.constant 384 : index
    %c0_147 = arith.constant 0 : index
    %244 = vector.load %arg2[%c384, %c0_147] : memref<624x64xf32, #tpu.memory_space<vmem>>, vector<5x20xf32>
    %cst_148 = arith.constant dense<0.000000e+00> : vector<5x128xf32>
    %245 = tpu.matmul %244, %243, %cst_148 {dimension_numbers = #tpu.dot_dimension_numbers<[1], [0], [0], [1], [0, 0, 1, 1], [], []>} : vector<5x20xf32>, vector<20x128xf32>, vector<5x128xf32> -> vector<5x128xf32>
    %c1184 = arith.constant 1184 : index
    %c0_149 = arith.constant 0 : index
    %246 = vector.load %arg3[%c1184, %c0_149] : memref<2080x1xf32, #tpu.memory_space<vmem>>, vector<5x1xf32>
    %247 = vector.broadcast %246 : vector<5x1xf32> to vector<5x128xf32>
    %248 = arith.addf %245, %247 : vector<5x128xf32>
    %c23_150 = arith.constant 23 : index
    %c0_151 = arith.constant 0 : index
    %249 = vector.load %arg5[%c23_150, %c0_151] : memref<64x128xf32, #tpu.memory_space<vmem>>, vector<5x128xf32>
    tpu.vector_store %arg5[%c23_150, %c0_151], %248 {strides = array<i32>} : memref<64x128xf32, #tpu.memory_space<vmem>>, vector<5x128xf32>,
    %c0_152 = arith.constant 0 : index
    %c0_153 = arith.constant 0 : index
    %250 = vector.load %arg5[%c0_152, %c0_153] : memref<64x128xf32, #tpu.memory_space<vmem>>, vector<28x128xf32>
    %c1192 = arith.constant 1192 : index
    %c0_154 = arith.constant 0 : index
    %251 = vector.load %arg3[%c1192, %c0_154] : memref<2080x1xf32, #tpu.memory_space<vmem>>, vector<28x1xf32>
    %252 = vector.broadcast %251 : vector<28x1xf32> to vector<28x128xf32>
    %253 = arith.mulf %250, %252 : vector<28x128xf32>
    %c1224 = arith.constant 1224 : index
    %c0_155 = arith.constant 0 : index
    %254 = vector.load %arg3[%c1224, %c0_155] : memref<2080x1xf32, #tpu.memory_space<vmem>>, vector<28x1xf32>
    %255 = vector.broadcast %254 : vector<28x1xf32> to vector<28x128xf32>
    %256 = arith.addf %253, %255 : vector<28x128xf32>
    %257 = math.tanh %256 : vector<28x128xf32>
    %c392 = arith.constant 392 : index
    %c0_156 = arith.constant 0 : index
    %258 = vector.load %arg2[%c392, %c0_156] : memref<624x64xf32, #tpu.memory_space<vmem>>, vector<20x28xf32>
    %cst_157 = arith.constant dense<0.000000e+00> : vector<20x128xf32>
    %259 = tpu.matmul %258, %257, %cst_157 {dimension_numbers = #tpu.dot_dimension_numbers<[1], [0], [0], [1], [0, 0, 1, 1], [], []>} : vector<20x28xf32>, vector<28x128xf32>, vector<20x128xf32> -> vector<20x128xf32>
    %c1256 = arith.constant 1256 : index
    %c0_158 = arith.constant 0 : index
    %260 = vector.load %arg3[%c1256, %c0_158] : memref<2080x1xf32, #tpu.memory_space<vmem>>, vector<20x1xf32>
    %261 = vector.broadcast %260 : vector<20x1xf32> to vector<20x128xf32>
    %262 = arith.addf %259, %261 : vector<20x128xf32>
    %263 = math.tanh %262 : vector<20x128xf32>
    %c416_159 = arith.constant 416 : index
    %c0_160 = arith.constant 0 : index
    %264 = vector.load %arg2[%c416_159, %c0_160] : memref<624x64xf32, #tpu.memory_space<vmem>>, vector<5x20xf32>
    %cst_161 = arith.constant dense<0.000000e+00> : vector<5x128xf32>
    %265 = tpu.matmul %264, %263, %cst_161 {dimension_numbers = #tpu.dot_dimension_numbers<[1], [0], [0], [1], [0, 0, 1, 1], [], []>} : vector<5x20xf32>, vector<20x128xf32>, vector<5x128xf32> -> vector<5x128xf32>
    %c1280 = arith.constant 1280 : index
    %c0_162 = arith.constant 0 : index
    %266 = vector.load %arg3[%c1280, %c0_162] : memref<2080x1xf32, #tpu.memory_space<vmem>>, vector<5x1xf32>
    %267 = vector.broadcast %266 : vector<5x1xf32> to vector<5x128xf32>
    %268 = arith.addf %265, %267 : vector<5x128xf32>
    %c28_163 = arith.constant 28 : index
    %c0_164 = arith.constant 0 : index
    %269 = vector.load %arg5[%c28_163, %c0_164] : memref<64x128xf32, #tpu.memory_space<vmem>>, vector<5x128xf32>
    tpu.vector_store %arg5[%c28_163, %c0_164], %268 {strides = array<i32>} : memref<64x128xf32, #tpu.memory_space<vmem>>, vector<5x128xf32>,
    %c0_165 = arith.constant 0 : index
    %c0_166 = arith.constant 0 : index
    %270 = vector.load %arg5[%c0_165, %c0_166] : memref<64x128xf32, #tpu.memory_space<vmem>>, vector<33x128xf32>
    %c1288 = arith.constant 1288 : index
    %c0_167 = arith.constant 0 : index
    %271 = vector.load %arg3[%c1288, %c0_167] : memref<2080x1xf32, #tpu.memory_space<vmem>>, vector<33x1xf32>
    %272 = vector.broadcast %271 : vector<33x1xf32> to vector<33x128xf32>
    %273 = arith.mulf %270, %272 : vector<33x128xf32>
    %c1328 = arith.constant 1328 : index
    %c0_168 = arith.constant 0 : index
    %274 = vector.load %arg3[%c1328, %c0_168] : memref<2080x1xf32, #tpu.memory_space<vmem>>, vector<33x1xf32>
    %275 = vector.broadcast %274 : vector<33x1xf32> to vector<33x128xf32>
    %276 = arith.addf %273, %275 : vector<33x128xf32>
    %277 = math.tanh %276 : vector<33x128xf32>
    %c424 = arith.constant 424 : index
    %c0_169 = arith.constant 0 : index
    %278 = vector.load %arg2[%c424, %c0_169] : memref<624x64xf32, #tpu.memory_space<vmem>>, vector<20x33xf32>
    %cst_170 = arith.constant dense<0.000000e+00> : vector<20x128xf32>
    %279 = tpu.matmul %278, %277, %cst_170 {dimension_numbers = #tpu.dot_dimension_numbers<[1], [0], [0], [1], [0, 0, 1, 1], [], []>} : vector<20x33xf32>, vector<33x128xf32>, vector<20x128xf32> -> vector<20x128xf32>
    %c1368 = arith.constant 1368 : index
    %c0_171 = arith.constant 0 : index
    %280 = vector.load %arg3[%c1368, %c0_171] : memref<2080x1xf32, #tpu.memory_space<vmem>>, vector<20x1xf32>
    %281 = vector.broadcast %280 : vector<20x1xf32> to vector<20x128xf32>
    %282 = arith.addf %279, %281 : vector<20x128xf32>
    %283 = math.tanh %282 : vector<20x128xf32>
    %c448_172 = arith.constant 448 : index
    %c0_173 = arith.constant 0 : index
    %284 = vector.load %arg2[%c448_172, %c0_173] : memref<624x64xf32, #tpu.memory_space<vmem>>, vector<5x20xf32>
    %cst_174 = arith.constant dense<0.000000e+00> : vector<5x128xf32>
    %285 = tpu.matmul %284, %283, %cst_174 {dimension_numbers = #tpu.dot_dimension_numbers<[1], [0], [0], [1], [0, 0, 1, 1], [], []>} : vector<5x20xf32>, vector<20x128xf32>, vector<5x128xf32> -> vector<5x128xf32>
    %c1392 = arith.constant 1392 : index
    %c0_175 = arith.constant 0 : index
    %286 = vector.load %arg3[%c1392, %c0_175] : memref<2080x1xf32, #tpu.memory_space<vmem>>, vector<5x1xf32>
    %287 = vector.broadcast %286 : vector<5x1xf32> to vector<5x128xf32>
    %288 = arith.addf %285, %287 : vector<5x128xf32>
    %c33 = arith.constant 33 : index
    %c0_176 = arith.constant 0 : index
    %289 = vector.load %arg5[%c33, %c0_176] : memref<64x128xf32, #tpu.memory_space<vmem>>, vector<5x128xf32>
    tpu.vector_store %arg5[%c33, %c0_176], %288 {strides = array<i32>} : memref<64x128xf32, #tpu.memory_space<vmem>>, vector<5x128xf32>,
    %c0_177 = arith.constant 0 : index
    %c0_178 = arith.constant 0 : index
    %290 = vector.load %arg5[%c0_177, %c0_178] : memref<64x128xf32, #tpu.memory_space<vmem>>, vector<38x128xf32>
    %c1400 = arith.constant 1400 : index
    %c0_179 = arith.constant 0 : index
    %291 = vector.load %arg3[%c1400, %c0_179] : memref<2080x1xf32, #tpu.memory_space<vmem>>, vector<38x1xf32>
    %292 = vector.broadcast %291 : vector<38x1xf32> to vector<38x128xf32>
    %293 = arith.mulf %290, %292 : vector<38x128xf32>
    %c1440 = arith.constant 1440 : index
    %c0_180 = arith.constant 0 : index
    %294 = vector.load %arg3[%c1440, %c0_180] : memref<2080x1xf32, #tpu.memory_space<vmem>>, vector<38x1xf32>
    %295 = vector.broadcast %294 : vector<38x1xf32> to vector<38x128xf32>
    %296 = arith.addf %293, %295 : vector<38x128xf32>
    %297 = math.tanh %296 : vector<38x128xf32>
    %c456 = arith.constant 456 : index
    %c0_181 = arith.constant 0 : index
    %298 = vector.load %arg2[%c456, %c0_181] : memref<624x64xf32, #tpu.memory_space<vmem>>, vector<20x38xf32>
    %cst_182 = arith.constant dense<0.000000e+00> : vector<20x128xf32>
    %299 = tpu.matmul %298, %297, %cst_182 {dimension_numbers = #tpu.dot_dimension_numbers<[1], [0], [0], [1], [0, 0, 1, 1], [], []>} : vector<20x38xf32>, vector<38x128xf32>, vector<20x128xf32> -> vector<20x128xf32>
    %c1480 = arith.constant 1480 : index
    %c0_183 = arith.constant 0 : index
    %300 = vector.load %arg3[%c1480, %c0_183] : memref<2080x1xf32, #tpu.memory_space<vmem>>, vector<20x1xf32>
    %301 = vector.broadcast %300 : vector<20x1xf32> to vector<20x128xf32>
    %302 = arith.addf %299, %301 : vector<20x128xf32>
    %303 = math.tanh %302 : vector<20x128xf32>
    %c480_184 = arith.constant 480 : index
    %c0_185 = arith.constant 0 : index
    %304 = vector.load %arg2[%c480_184, %c0_185] : memref<624x64xf32, #tpu.memory_space<vmem>>, vector<5x20xf32>
    %cst_186 = arith.constant dense<0.000000e+00> : vector<5x128xf32>
    %305 = tpu.matmul %304, %303, %cst_186 {dimension_numbers = #tpu.dot_dimension_numbers<[1], [0], [0], [1], [0, 0, 1, 1], [], []>} : vector<5x20xf32>, vector<20x128xf32>, vector<5x128xf32> -> vector<5x128xf32>
    %c1504 = arith.constant 1504 : index
    %c0_187 = arith.constant 0 : index
    %306 = vector.load %arg3[%c1504, %c0_187] : memref<2080x1xf32, #tpu.memory_space<vmem>>, vector<5x1xf32>
    %307 = vector.broadcast %306 : vector<5x1xf32> to vector<5x128xf32>
    %308 = arith.addf %305, %307 : vector<5x128xf32>
    %c38 = arith.constant 38 : index
    %c0_188 = arith.constant 0 : index
    %309 = vector.load %arg5[%c38, %c0_188] : memref<64x128xf32, #tpu.memory_space<vmem>>, vector<5x128xf32>
    tpu.vector_store %arg5[%c38, %c0_188], %308 {strides = array<i32>} : memref<64x128xf32, #tpu.memory_space<vmem>>, vector<5x128xf32>,
    %c0_189 = arith.constant 0 : index
    %c0_190 = arith.constant 0 : index
    %310 = vector.load %arg5[%c0_189, %c0_190] : memref<64x128xf32, #tpu.memory_space<vmem>>, vector<43x128xf32>
    %c1512 = arith.constant 1512 : index
    %c0_191 = arith.constant 0 : index
    %311 = vector.load %arg3[%c1512, %c0_191] : memref<2080x1xf32, #tpu.memory_space<vmem>>, vector<43x1xf32>
    %312 = vector.broadcast %311 : vector<43x1xf32> to vector<43x128xf32>
    %313 = arith.mulf %310, %312 : vector<43x128xf32>
    %c1560 = arith.constant 1560 : index
    %c0_192 = arith.constant 0 : index
    %314 = vector.load %arg3[%c1560, %c0_192] : memref<2080x1xf32, #tpu.memory_space<vmem>>, vector<43x1xf32>
    %315 = vector.broadcast %314 : vector<43x1xf32> to vector<43x128xf32>
    %316 = arith.addf %313, %315 : vector<43x128xf32>
    %317 = math.tanh %316 : vector<43x128xf32>
    %c488 = arith.constant 488 : index
    %c0_193 = arith.constant 0 : index
    %318 = vector.load %arg2[%c488, %c0_193] : memref<624x64xf32, #tpu.memory_space<vmem>>, vector<20x43xf32>
    %cst_194 = arith.constant dense<0.000000e+00> : vector<20x128xf32>
    %319 = tpu.matmul %318, %317, %cst_194 {dimension_numbers = #tpu.dot_dimension_numbers<[1], [0], [0], [1], [0, 0, 1, 1], [], []>} : vector<20x43xf32>, vector<43x128xf32>, vector<20x128xf32> -> vector<20x128xf32>
    %c1608 = arith.constant 1608 : index
    %c0_195 = arith.constant 0 : index
    %320 = vector.load %arg3[%c1608, %c0_195] : memref<2080x1xf32, #tpu.memory_space<vmem>>, vector<20x1xf32>
    %321 = vector.broadcast %320 : vector<20x1xf32> to vector<20x128xf32>
    %322 = arith.addf %319, %321 : vector<20x128xf32>
    %323 = math.tanh %322 : vector<20x128xf32>
    %c512 = arith.constant 512 : index
    %c0_196 = arith.constant 0 : index
    %324 = vector.load %arg2[%c512, %c0_196] : memref<624x64xf32, #tpu.memory_space<vmem>>, vector<5x20xf32>
    %cst_197 = arith.constant dense<0.000000e+00> : vector<5x128xf32>
    %325 = tpu.matmul %324, %323, %cst_197 {dimension_numbers = #tpu.dot_dimension_numbers<[1], [0], [0], [1], [0, 0, 1, 1], [], []>} : vector<5x20xf32>, vector<20x128xf32>, vector<5x128xf32> -> vector<5x128xf32>
    %c1632 = arith.constant 1632 : index
    %c0_198 = arith.constant 0 : index
    %326 = vector.load %arg3[%c1632, %c0_198] : memref<2080x1xf32, #tpu.memory_space<vmem>>, vector<5x1xf32>
    %327 = vector.broadcast %326 : vector<5x1xf32> to vector<5x128xf32>
    %328 = arith.addf %325, %327 : vector<5x128xf32>
    %c43 = arith.constant 43 : index
    %c0_199 = arith.constant 0 : index
    %329 = vector.load %arg5[%c43, %c0_199] : memref<64x128xf32, #tpu.memory_space<vmem>>, vector<5x128xf32>
    tpu.vector_store %arg5[%c43, %c0_199], %328 {strides = array<i32>} : memref<64x128xf32, #tpu.memory_space<vmem>>, vector<5x128xf32>,
    %c0_200 = arith.constant 0 : index
    %c0_201 = arith.constant 0 : index
    %330 = vector.load %arg5[%c0_200, %c0_201] : memref<64x128xf32, #tpu.memory_space<vmem>>, vector<48x128xf32>
    %c1640 = arith.constant 1640 : index
    %c0_202 = arith.constant 0 : index
    %331 = vector.load %arg3[%c1640, %c0_202] : memref<2080x1xf32, #tpu.memory_space<vmem>>, vector<48x1xf32>
    %332 = vector.broadcast %331 : vector<48x1xf32> to vector<48x128xf32>
    %333 = arith.mulf %330, %332 : vector<48x128xf32>
    %c1688 = arith.constant 1688 : index
    %c0_203 = arith.constant 0 : index
    %334 = vector.load %arg3[%c1688, %c0_203] : memref<2080x1xf32, #tpu.memory_space<vmem>>, vector<48x1xf32>
    %335 = vector.broadcast %334 : vector<48x1xf32> to vector<48x128xf32>
    %336 = arith.addf %333, %335 : vector<48x128xf32>
    %337 = math.tanh %336 : vector<48x128xf32>
    %c520 = arith.constant 520 : index
    %c0_204 = arith.constant 0 : index
    %338 = vector.load %arg2[%c520, %c0_204] : memref<624x64xf32, #tpu.memory_space<vmem>>, vector<20x48xf32>
    %cst_205 = arith.constant dense<0.000000e+00> : vector<20x128xf32>
    %339 = tpu.matmul %338, %337, %cst_205 {dimension_numbers = #tpu.dot_dimension_numbers<[1], [0], [0], [1], [0, 0, 1, 1], [], []>} : vector<20x48xf32>, vector<48x128xf32>, vector<20x128xf32> -> vector<20x128xf32>
    %c1736 = arith.constant 1736 : index
    %c0_206 = arith.constant 0 : index
    %340 = vector.load %arg3[%c1736, %c0_206] : memref<2080x1xf32, #tpu.memory_space<vmem>>, vector<20x1xf32>
    %341 = vector.broadcast %340 : vector<20x1xf32> to vector<20x128xf32>
    %342 = arith.addf %339, %341 : vector<20x128xf32>
    %343 = math.tanh %342 : vector<20x128xf32>
    %c544 = arith.constant 544 : index
    %c0_207 = arith.constant 0 : index
    %344 = vector.load %arg2[%c544, %c0_207] : memref<624x64xf32, #tpu.memory_space<vmem>>, vector<5x20xf32>
    %cst_208 = arith.constant dense<0.000000e+00> : vector<5x128xf32>
    %345 = tpu.matmul %344, %343, %cst_208 {dimension_numbers = #tpu.dot_dimension_numbers<[1], [0], [0], [1], [0, 0, 1, 1], [], []>} : vector<5x20xf32>, vector<20x128xf32>, vector<5x128xf32> -> vector<5x128xf32>
    %c1760 = arith.constant 1760 : index
    %c0_209 = arith.constant 0 : index
    %346 = vector.load %arg3[%c1760, %c0_209] : memref<2080x1xf32, #tpu.memory_space<vmem>>, vector<5x1xf32>
    %347 = vector.broadcast %346 : vector<5x1xf32> to vector<5x128xf32>
    %348 = arith.addf %345, %347 : vector<5x128xf32>
    %c48 = arith.constant 48 : index
    %c0_210 = arith.constant 0 : index
    %349 = vector.load %arg5[%c48, %c0_210] : memref<64x128xf32, #tpu.memory_space<vmem>>, vector<5x128xf32>
    tpu.vector_store %arg5[%c48, %c0_210], %348 {strides = array<i32>} : memref<64x128xf32, #tpu.memory_space<vmem>>, vector<5x128xf32>,
    %c0_211 = arith.constant 0 : index
    %c0_212 = arith.constant 0 : index
    %350 = vector.load %arg5[%c0_211, %c0_212] : memref<64x128xf32, #tpu.memory_space<vmem>>, vector<53x128xf32>
    %c1768 = arith.constant 1768 : index
    %c0_213 = arith.constant 0 : index
    %351 = vector.load %arg3[%c1768, %c0_213] : memref<2080x1xf32, #tpu.memory_space<vmem>>, vector<53x1xf32>
    %352 = vector.broadcast %351 : vector<53x1xf32> to vector<53x128xf32>
    %353 = arith.mulf %350, %352 : vector<53x128xf32>
    %c1824 = arith.constant 1824 : index
    %c0_214 = arith.constant 0 : index
    %354 = vector.load %arg3[%c1824, %c0_214] : memref<2080x1xf32, #tpu.memory_space<vmem>>, vector<53x1xf32>
    %355 = vector.broadcast %354 : vector<53x1xf32> to vector<53x128xf32>
    %356 = arith.addf %353, %355 : vector<53x128xf32>
    %357 = math.tanh %356 : vector<53x128xf32>
    %c552_215 = arith.constant 552 : index
    %c0_216 = arith.constant 0 : index
    %358 = vector.load %arg2[%c552_215, %c0_216] : memref<624x64xf32, #tpu.memory_space<vmem>>, vector<20x53xf32>
    %cst_217 = arith.constant dense<0.000000e+00> : vector<20x128xf32>
    %359 = tpu.matmul %358, %357, %cst_217 {dimension_numbers = #tpu.dot_dimension_numbers<[1], [0], [0], [1], [0, 0, 1, 1], [], []>} : vector<20x53xf32>, vector<53x128xf32>, vector<20x128xf32> -> vector<20x128xf32>
    %c1880 = arith.constant 1880 : index
    %c0_218 = arith.constant 0 : index
    %360 = vector.load %arg3[%c1880, %c0_218] : memref<2080x1xf32, #tpu.memory_space<vmem>>, vector<20x1xf32>
    %361 = vector.broadcast %360 : vector<20x1xf32> to vector<20x128xf32>
    %362 = arith.addf %359, %361 : vector<20x128xf32>
    %363 = math.tanh %362 : vector<20x128xf32>
    %c576 = arith.constant 576 : index
    %c0_219 = arith.constant 0 : index
    %364 = vector.load %arg2[%c576, %c0_219] : memref<624x64xf32, #tpu.memory_space<vmem>>, vector<5x20xf32>
    %cst_220 = arith.constant dense<0.000000e+00> : vector<5x128xf32>
    %365 = tpu.matmul %364, %363, %cst_220 {dimension_numbers = #tpu.dot_dimension_numbers<[1], [0], [0], [1], [0, 0, 1, 1], [], []>} : vector<5x20xf32>, vector<20x128xf32>, vector<5x128xf32> -> vector<5x128xf32>
    %c1904 = arith.constant 1904 : index
    %c0_221 = arith.constant 0 : index
    %366 = vector.load %arg3[%c1904, %c0_221] : memref<2080x1xf32, #tpu.memory_space<vmem>>, vector<5x1xf32>
    %367 = vector.broadcast %366 : vector<5x1xf32> to vector<5x128xf32>
    %368 = arith.addf %365, %367 : vector<5x128xf32>
    %c53 = arith.constant 53 : index
    %c0_222 = arith.constant 0 : index
    %369 = vector.load %arg5[%c53, %c0_222] : memref<64x128xf32, #tpu.memory_space<vmem>>, vector<5x128xf32>
    tpu.vector_store %arg5[%c53, %c0_222], %368 {strides = array<i32>} : memref<64x128xf32, #tpu.memory_space<vmem>>, vector<5x128xf32>,
    %c0_223 = arith.constant 0 : index
    %c0_224 = arith.constant 0 : index
    %370 = vector.load %arg5[%c0_223, %c0_224] : memref<64x128xf32, #tpu.memory_space<vmem>>, vector<58x128xf32>
    %c1912 = arith.constant 1912 : index
    %c0_225 = arith.constant 0 : index
    %371 = vector.load %arg3[%c1912, %c0_225] : memref<2080x1xf32, #tpu.memory_space<vmem>>, vector<58x1xf32>
    %372 = vector.broadcast %371 : vector<58x1xf32> to vector<58x128xf32>
    %373 = arith.mulf %370, %372 : vector<58x128xf32>
    %c1976 = arith.constant 1976 : index
    %c0_226 = arith.constant 0 : index
    %374 = vector.load %arg3[%c1976, %c0_226] : memref<2080x1xf32, #tpu.memory_space<vmem>>, vector<58x1xf32>
    %375 = vector.broadcast %374 : vector<58x1xf32> to vector<58x128xf32>
    %376 = arith.addf %373, %375 : vector<58x128xf32>
    %377 = math.tanh %376 : vector<58x128xf32>
    %c584 = arith.constant 584 : index
    %c0_227 = arith.constant 0 : index
    %378 = vector.load %arg2[%c584, %c0_227] : memref<624x64xf32, #tpu.memory_space<vmem>>, vector<20x58xf32>
    %cst_228 = arith.constant dense<0.000000e+00> : vector<20x128xf32>
    %379 = tpu.matmul %378, %377, %cst_228 {dimension_numbers = #tpu.dot_dimension_numbers<[1], [0], [0], [1], [0, 0, 1, 1], [], []>} : vector<20x58xf32>, vector<58x128xf32>, vector<20x128xf32> -> vector<20x128xf32>
    %c2040 = arith.constant 2040 : index
    %c0_229 = arith.constant 0 : index
    %380 = vector.load %arg3[%c2040, %c0_229] : memref<2080x1xf32, #tpu.memory_space<vmem>>, vector<20x1xf32>
    %381 = vector.broadcast %380 : vector<20x1xf32> to vector<20x128xf32>
    %382 = arith.addf %379, %381 : vector<20x128xf32>
    %383 = math.tanh %382 : vector<20x128xf32>
    %c608 = arith.constant 608 : index
    %c0_230 = arith.constant 0 : index
    %384 = vector.load %arg2[%c608, %c0_230] : memref<624x64xf32, #tpu.memory_space<vmem>>, vector<5x20xf32>
    %cst_231 = arith.constant dense<0.000000e+00> : vector<5x128xf32>
    %385 = tpu.matmul %384, %383, %cst_231 {dimension_numbers = #tpu.dot_dimension_numbers<[1], [0], [0], [1], [0, 0, 1, 1], [], []>} : vector<5x20xf32>, vector<20x128xf32>, vector<5x128xf32> -> vector<5x128xf32>
    %c2064 = arith.constant 2064 : index
    %c0_232 = arith.constant 0 : index
    %386 = vector.load %arg3[%c2064, %c0_232] : memref<2080x1xf32, #tpu.memory_space<vmem>>, vector<5x1xf32>
    %387 = vector.broadcast %386 : vector<5x1xf32> to vector<5x128xf32>
    %388 = arith.addf %385, %387 : vector<5x128xf32>
    %c58 = arith.constant 58 : index
    %c0_233 = arith.constant 0 : index
    %389 = vector.load %arg5[%c58, %c0_233] : memref<64x128xf32, #tpu.memory_space<vmem>>, vector<5x128xf32>
    tpu.vector_store %arg5[%c58, %c0_233], %388 {strides = array<i32>} : memref<64x128xf32, #tpu.memory_space<vmem>>, vector<5x128xf32>,
    %c0_234 = arith.constant 0 : index
    %c0_235 = arith.constant 0 : index
    %390 = vector.load %arg5[%c0_234, %c0_235] : memref<64x128xf32, #tpu.memory_space<vmem>>, vector<63x128xf32>
    %c616 = arith.constant 616 : index
    %c0_236 = arith.constant 0 : index
    %391 = vector.load %arg2[%c616, %c0_236] : memref<624x64xf32, #tpu.memory_space<vmem>>, vector<1x63xf32>
    %cst_237 = arith.constant dense<0.000000e+00> : vector<1x128xf32>
    %392 = tpu.matmul %391, %390, %cst_237 {dimension_numbers = #tpu.dot_dimension_numbers<[1], [0], [0], [1], [0, 0, 1, 1], [], []>} : vector<1x63xf32>, vector<63x128xf32>, vector<1x128xf32> -> vector<1x128xf32>
    %c2072 = arith.constant 2072 : index
    %c0_238 = arith.constant 0 : index
    %393 = vector.load %arg3[%c2072, %c0_238] : memref<2080x1xf32, #tpu.memory_space<vmem>>, vector<1x1xf32>
    %394 = vector.broadcast %393 : vector<1x1xf32> to vector<1x128xf32>
    %395 = arith.addf %392, %394 : vector<1x128xf32>
    %c0_239 = arith.constant 0 : index
    %c0_240 = arith.constant 0 : index
    %396 = vector.load %arg4[%c0_239, %c0_240] : memref<1x128xf32, #tpu.memory_space<vmem>>, vector<1x128xf32>
    tpu.vector_store %arg4[%c0_239, %c0_240], %395 {strides = array<i32>} : memref<1x128xf32, #tpu.memory_space<vmem>>, vector<1x128xf32>,
    return
  }
  func.func @transform_0(%arg0: i32) -> (i32, i32) {
    %c0_i32 = arith.constant 0 : i32
    %c0_i32_0 = arith.constant 0 : i32
    return %c0_i32, %arg0 : i32, i32
  }
  func.func @transform_1(%arg0: i32) -> (i32, i32) {
    %c0_i32 = arith.constant 0 : i32
    %c0_i32_0 = arith.constant 0 : i32
    %c0_i32_1 = arith.constant 0 : i32
    return %c0_i32, %c0_i32_0 : i32, i32
  }
  func.func @transform_2(%arg0: i32) -> (i32, i32) {
    %c0_i32 = arith.constant 0 : i32
    %c0_i32_0 = arith.constant 0 : i32
    %c0_i32_1 = arith.constant 0 : i32
    return %c0_i32, %c0_i32_0 : i32, i32
  }
  func.func @transform_3(%arg0: i32) -> (i32, i32) {
    %c0_i32 = arith.constant 0 : i32
    %c0_i32_0 = arith.constant 0 : i32
    return %c0_i32, %arg0 : i32, i32
  }
}

</mosaic_0001>

<llo_original>
// kernel: tpu_custom_call.1
$region0: #{tpu_custom_call.1}
  #allocation0 [shape = 'u32[]', space=smem, size = 0x4, offset = 0x4, fixed_abs, tag = 'smem constant byte address 0x4 - core index']
  #allocation1 [shape = 'u32[144,128]{1,0:T(1,128)}', space=vmem, size = 0x12000, scoped, tag = 'internal scratch']
  #allocation2 [shape = 'f32[64,128]{1,0:T(8,128)}', space=vmem, size = 0x8000, scoped, tag = 'scratch operand']
  %s0 = inlined_call_operand.vmem [shape: f32[13,128], index: 0, kind: input, shape index: {}]
  %s1 = inlined_call_operand.vmem [shape: f32[624,64], index: 1, kind: input, shape index: {}]
  %s2 = inlined_call_operand.vmem [shape: f32[2080,1], index: 2, kind: input, shape index: {}]
  %s3 = inlined_call_operand.hbm [shape: f32[1,128], index: 3, kind: output, shape index: {}]
  %s4 = sld [smem:[#allocation0]]
  $region22: #{tpu_custom_call.1} parent=0
    _
  %s6 = ssub.s32 1, %s4
  %s7 = scalar_select 0, %s6, %s4
  $region1: #{tpu_custom_call.1} parent=0
    #allocation3 [shape = 'u8[512]{0}', space=vmem, size = 0x400, scoped, tag = 'output window, operand 0, single buffered']
    #allocation4 [shape = 's32[1]{0}', space=sflag, size = 0x4, scoped, tag = 'scoped memory for tpu_custom_call.1']
    %8 = vsyncpa [#allocation4], 0
    // Predicated region
    $region2: #{tpu_custom_call.1} parent=1 // pred_check
      _
    $region3: #{tpu_custom_call.1} parent=1 // pred_check_branch
      %10 = sbr.rel (0) target = $region5
    $region4: #{tpu_custom_call.1} parent=1 // pred_region
      _
    $region5: #{tpu_custom_call.1} parent=1 // pred_fallthru
      _
    // Predicated region
    $region6: #{tpu_custom_call.1} parent=1 // pred_check
      _
    $region7: #{tpu_custom_call.1} parent=1 // pred_check_branch
      %12 = sbr.rel (0) target = $region9
    $region8: #{tpu_custom_call.1} parent=1 // pred_region
      _
    $region9: #{tpu_custom_call.1} parent=1 // pred_fallthru
      _
    // Predicated region
    $region10: #{tpu_custom_call.1} parent=1 // pred_check
      _
    $region11: #{tpu_custom_call.1} parent=1 // pred_check_branch
      %14 = sbr.rel (0) target = $region13
    $region12: #{tpu_custom_call.1} parent=1 // pred_region
      _
    $region13: #{tpu_custom_call.1} parent=1 // pred_fallthru
      _
    %v15 = vld [vmem:[%s0] sm:$0xff]
    %v16 = vld [vmem:[%s0 + $0x8] sm:$0x1f]
    %17 = vst [vmem:[#allocation2] sm:$0xff] %v15
    %18 = vst [vmem:[#allocation2 + $0x8] sm:$0x1f] %v16
    %v19 = vld [vmem:[#allocation2] sm:$0xff]
    %v20 = vld [vmem:[#allocation2 + $0x8] sm:$0x1f]
    %v21 = vld [vmem:[%s2] sm:$0xff]
    %v22 = vld [vmem:[%s2 + $0x8] sm:$0x1f]
    %24 = vset.pattern.permute.xlu0 0
    %25 = vperm.xlu0 %24, %v21
    %v26 = vpop.permute.xlu0 %25
    %29 = vset.pattern.permute.xlu0 0
    %30 = vperm.xlu0 %29, %v22
    %v31 = vpop.permute.xlu0 %30
    %v33 = vmul.f32 %v19, %v26
    %v34 = vmul.f32 %v20, %v31
    %v35 = vld [vmem:[%s2 + $0x10] sm:$0xff]
    %v36 = vld [vmem:[%s2 + $0x18] sm:$0x1f]
    %38 = vset.pattern.permute.xlu0 0
    %39 = vperm.xlu0 %38, %v35
    %v40 = vpop.permute.xlu0 %39
    %43 = vset.pattern.permute.xlu0 0
    %44 = vperm.xlu0 %43, %v36
    %v45 = vpop.permute.xlu0 %44
    %v47 = vadd.f32 %v33, %v40
    %v48 = vadd.f32 %v34, %v45
    %v49 = vtanh.pop %v47
    %v50 = vtanh.pop %v48
    %v51 = vld [vmem:[%s1] sm:$0xff]
    %v52 = vld [vmem:[%s1 + $0x8] sm:$0xff]
    %v53 = vld [vmem:[%s1 + $0x10] sm:$0xf]
    %v54 = vld [vmem:[%s2 + $0x20] sm:$0xff]
    %v55 = vld [vmem:[%s2 + $0x28] sm:$0xff]
    %v56 = vld [vmem:[%s2 + $0x30] sm:$0xf]
    %58 = vset.pattern.permute.xlu0 0
    %59 = vperm.xlu0 %58, %v54
    %v60 = vpop.permute.xlu0 %59
    %63 = vset.pattern.permute.xlu0 0
    %64 = vperm.xlu0 %63, %v55
    %v65 = vpop.permute.xlu0 %64
    %68 = vset.pattern.permute.xlu0 0
    %69 = vperm.xlu0 %68, %v56
    %v70 = vpop.permute.xlu0 %69
    %vm72 = vcmask 105472
    %v74 = vsel %vm72, %v51, 0
    %v77 = vsel %vm72, %v52, 0
    %v80 = vsel %vm72, %v53, 0
    %vm82 = vcmask 1044480
    %v84 = vsel %vm82, %v50, 0
    %86 = vmatprep.subr.mxu0 0.0
    %87 = vmatpush1.msra.mxu0 %v49
    %88 = vmatprep.subr.mxu0 0.0
    %89 = vmatpush1.msra.mxu0 %v84
    %90 = vmatprep.subr.mxu0 0.0
    %91 = vmatpush1.msra.mxu0 0.0
    %92 = vmatprep.subr.mxu0 0.0
    %93 = vmatpush1.msra.mxu0 0.0
    %94 = vmatprep.subr.mxu0 0.0
    %95 = vmatpush1.msra.mxu0 0.0
    %96 = vmatprep.subr.mxu0 0.0
    %97 = vmatpush1.msra.mxu0 0.0
    %98 = vmatprep.subr.mxu0 0.0
    %99 = vmatpush1.msra.mxu0 0.0
    %100 = vmatprep.subr.mxu0 0.0
    %101 = vmatpush1.msra.mxu0 0.0
    %102 = vmatprep.subr.mxu0 0.0
    %103 = vmatpush1.msra.mxu0 0.0
    %104 = vmatprep.subr.mxu0 0.0
    %105 = vmatpush1.msra.mxu0 0.0
    %106 = vmatprep.subr.mxu0 0.0
    %107 = vmatpush1.msra.mxu0 0.0
    %108 = vmatprep.subr.mxu0 0.0
    %109 = vmatpush1.msra.mxu0 0.0
    %110 = vmatprep.subr.mxu0 0.0
    %111 = vmatpush1.msra.mxu0 0.0
    %112 = vmatprep.subr.mxu0 0.0
    %113 = vmatpush1.msra.mxu0 0.0
    %114 = vmatprep.subr.mxu0 0.0
    %115 = vmatpush1.msra.mxu0 0.0
    %116 = vmatprep.subr.mxu0 0.0
    %117 = vmatpush1.msra.mxu0 0.0
    %118 = vmatprep.subr.mxu0 0.0
    %119 = vmatpush1.msra.mxu0 0.0
    %120 = vmatprep.subr.mxu0 0.0
    %121 = vmatpush1.msra.mxu0 0.0
    %122 = vmatprep.subr.mxu0 0.0
    %123 = vmatpush1.msra.mxu0 0.0
    %124 = vmatprep.subr.mxu0 0.0
    %125 = vmatpush1.msra.mxu0 0.0
    %126 = vmatprep.subr.mxu0 0.0
    %127 = vmatpush1.msra.mxu0 0.0
    %128 = vmatprep.subr.mxu0 0.0
    %129 = vmatpush1.msra.mxu0 0.0
    %130 = vmatprep.subr.mxu0 0.0
    %131 = vmatpush1.msra.mxu0 0.0
    %132 = vmatprep.subr.mxu0 0.0
    %133 = vmatpush1.msra.mxu0 0.0
    %134 = vmatprep.subr.mxu0 0.0
    %135 = vmatpush1.msra.mxu0 0.0
    %136 = vmatprep.subr.mxu0 0.0
    %137 = vmatpush1.msra.mxu0 0.0
    %138 = vmatprep.subr.mxu0 0.0
    %139 = vmatpush1.msra.mxu0 0.0
    %140 = vmatprep.subr.mxu0 0.0
    %141 = vmatpush1.msra.mxu0 0.0
    %142 = vmatprep.subr.mxu0 0.0
    %143 = vmatpush1.msra.mxu0 0.0
    %144 = vmatprep.subr.mxu0 0.0
    %145 = vmatpush1.msra.mxu0 0.0
    %146 = vmatprep.subr.mxu0 0.0
    %147 = vmatpush1.msra.mxu0 0.0
    %148 = vmatprep.subr.mxu0 0.0
    %149 = vmatpush1.msra.mxu0 0.0
    %150 = vmatprep.mubr.f32.mxu0 0.0
    %151 = vmatmul.mubr.f32.gmra.mrb[0].mxu0 %v74
    %v152 = vpop.f32.mrb[0].mxu0
    %v153 = vadd.f32 %v60, %v152
    %v154 = vpop.f32.mrb[0].mxu0
    %155 = vmatprep.mubr.f32.mxu0 0.0
    %156 = vmatmul.mubr.f32.gmra.mrb[0].mxu0 %v77
    %v157 = vpop.f32.mrb[0].mxu0
    %v158 = vadd.f32 %v65, %v157
    %v159 = vpop.f32.mrb[0].mxu0
    %160 = vmatprep.mubr.f32.mxu0 0.0
    %161 = vmatmul.mubr.f32.gmra.mrb[0].mxu0 %v80
    %v162 = vpop.f32.mrb[0].mxu0
    %v163 = vadd.f32 %v70, %v162
    %v164 = vpop.f32.mrb[0].mxu0
    %165 = vdwg.mxu0
    %v166 = vtanh.pop %v153
    %v167 = vtanh.pop %v158
    %v168 = vtanh.pop %v163
    %v169 = vld [vmem:[%s1 + $0x18] sm:$0x1f]
    %v170 = vld [vmem:[%s2 + $0x38] sm:$0x1f]
    %172 = vset.pattern.permute.xlu0 0
    %173 = vperm.xlu0 %172, %v170
    %v174 = vpop.permute.xlu0 %173
    %vm176 = vcmask 162816
    %v178 = vsel %vm176, %v169, 0
    %vm180 = vcmask 1043456
    %v182 = vsel %vm180, %v168, 0
    %184 = vmatprep.subr.mxu0 0.0
    %185 = vmatpush1.msra.mxu0 %v166
    %186 = vmatprep.subr.mxu0 0.0
    %187 = vmatpush1.msra.mxu0 %v167
    %188 = vmatprep.subr.mxu0 0.0
    %189 = vmatpush1.msra.mxu0 %v182
    %190 = vmatprep.subr.mxu0 0.0
    %191 = vmatpush1.msra.mxu0 0.0
    %192 = vmatprep.subr.mxu0 0.0
    %193 = vmatpush1.msra.mxu0 0.0
    %194 = vmatprep.subr.mxu0 0.0
    %195 = vmatpush1.msra.mxu0 0.0
    %196 = vmatprep.subr.mxu0 0.0
    %197 = vmatpush1.msra.mxu0 0.0
    %198 = vmatprep.subr.mxu0 0.0
    %199 = vmatpush1.msra.mxu0 0.0
    %200 = vmatprep.subr.mxu0 0.0
    %201 = vmatpush1.msra.mxu0 0.0
    %202 = vmatprep.subr.mxu0 0.0
    %203 = vmatpush1.msra.mxu0 0.0
    %204 = vmatprep.subr.mxu0 0.0
    %205 = vmatpush1.msra.mxu0 0.0
    %206 = vmatprep.subr.mxu0 0.0
    %207 = vmatpush1.msra.mxu0 0.0
    %208 = vmatprep.subr.mxu0 0.0
    %209 = vmatpush1.msra.mxu0 0.0
    %210 = vmatprep.subr.mxu0 0.0
    %211 = vmatpush1.msra.mxu0 0.0
    %212 = vmatprep.subr.mxu0 0.0
    %213 = vmatpush1.msra.mxu0 0.0
    %214 = vmatprep.subr.mxu0 0.0
    %215 = vmatpush1.msra.mxu0 0.0
    %216 = vmatprep.subr.mxu0 0.0
    %217 = vmatpush1.msra.mxu0 0.0
    %218 = vmatprep.subr.mxu0 0.0
    %219 = vmatpush1.msra.mxu0 0.0
    %220 = vmatprep.subr.mxu0 0.0
    %221 = vmatpush1.msra.mxu0 0.0
    %222 = vmatprep.subr.mxu0 0.0
    %223 = vmatpush1.msra.mxu0 0.0
    %224 = vmatprep.subr.mxu0 0.0
    %225 = vmatpush1.msra.mxu0 0.0
    %226 = vmatprep.subr.mxu0 0.0
    %227 = vmatpush1.msra.mxu0 0.0
    %228 = vmatprep.subr.mxu0 0.0
    %229 = vmatpush1.msra.mxu0 0.0
    %230 = vmatprep.subr.mxu0 0.0
    %231 = vmatpush1.msra.mxu0 0.0
    %232 = vmatprep.subr.mxu0 0.0
    %233 = vmatpush1.msra.mxu0 0.0
    %234 = vmatprep.subr.mxu0 0.0
    %235 = vmatpush1.msra.mxu0 0.0
    %236 = vmatprep.subr.mxu0 0.0
    %237 = vmatpush1.msra.mxu0 0.0
    %238 = vmatprep.subr.mxu0 0.0
    %239 = vmatpush1.msra.mxu0 0.0
    %240 = vmatprep.subr.mxu0 0.0
    %241 = vmatpush1.msra.mxu0 0.0
    %242 = vmatprep.subr.mxu0 0.0
    %243 = vmatpush1.msra.mxu0 0.0
    %244 = vmatprep.subr.mxu0 0.0
    %245 = vmatpush1.msra.mxu0 0.0
    %246 = vmatprep.subr.mxu0 0.0
    %247 = vmatpush1.msra.mxu0 0.0
    %248 = vmatprep.mubr.f32.mxu0 0.0
    %249 = vmatmul.mubr.f32.gmra.mrb[0].mxu0 %v178
    %v250 = vpop.f32.mrb[0].mxu0
    %v251 = vadd.f32 %v174, %v250
    %v252 = vpop.f32.mrb[0].mxu0
    %253 = vdwg.mxu0
    %254 = vst [vmem:[#allocation2 + $0xd] sm:$0x1f] %v251
    %v255 = vld [vmem:[#allocation2] sm:$0xff]
    %v256 = vld [vmem:[#allocation2 + $0x8] sm:$0xff]
    %v257 = vld [vmem:[#allocation2 + $0x10] sm:$0x3]
    %v258 = vld [vmem:[%s2 + $0x40] sm:$0xff]
    %v259 = vld [vmem:[%s2 + $0x48] sm:$0xff]
    %v260 = vld [vmem:[%s2 + $0x50] sm:$0x3]
    %262 = vset.pattern.permute.xlu0 0
    %263 = vperm.xlu0 %262, %v258
    %v264 = vpop.permute.xlu0 %263
    %267 = vset.pattern.permute.xlu0 0
    %268 = vperm.xlu0 %267, %v259
    %v269 = vpop.permute.xlu0 %268
    %272 = vset.pattern.permute.xlu0 0
    %273 = vperm.xlu0 %272, %v260
    %v274 = vpop.permute.xlu0 %273
    %v276 = vmul.f32 %v255, %v264
    %v277 = vmul.f32 %v256, %v269
    %v278 = vmul.f32 %v257, %v274
    %v279 = vld [vmem:[%s2 + $0x58] sm:$0xff]
    %v280 = vld [vmem:[%s2 + $0x60] sm:$0xff]
    %v281 = vld [vmem:[%s2 + $0x68] sm:$0x3]
    %283 = vset.pattern.permute.xlu0 0
    %284 = vperm.xlu0 %283, %v279
    %v285 = vpop.permute.xlu0 %284
    %288 = vset.pattern.permute.xlu0 0
    %289 = vperm.xlu0 %288, %v280
    %v290 = vpop.permute.xlu0 %289
    %293 = vset.pattern.permute.xlu0 0
    %294 = vperm.xlu0 %293, %v281
    %v295 = vpop.permute.xlu0 %294
    %v297 = vadd.f32 %v276, %v285
    %v298 = vadd.f32 %v277, %v290
    %v299 = vadd.f32 %v278, %v295
    %v300 = vtanh.pop %v297
    %v301 = vtanh.pop %v298
    %v302 = vtanh.pop %v299
    %v303 = vld [vmem:[%s1 + $0x20] sm:$0xff]
    %v304 = vld [vmem:[%s1 + $0x28] sm:$0xff]
    %v305 = vld [vmem:[%s1 + $0x30] sm:$0xf]
    %v306 = vld [vmem:[%s2 + $0x70] sm:$0xff]
    %v307 = vld [vmem:[%s2 + $0x78] sm:$0xff]
    %v308 = vld [vmem:[%s2 + $0x80] sm:$0xf]
    %310 = vset.pattern.permute.xlu0 0
    %311 = vperm.xlu0 %310, %v306
    %v312 = vpop.permute.xlu0 %311
    %315 = vset.pattern.permute.xlu0 0
    %316 = vperm.xlu0 %315, %v307
    %v317 = vpop.permute.xlu0 %316
    %320 = vset.pattern.permute.xlu0 0
    %321 = vperm.xlu0 %320, %v308
    %v322 = vpop.permute.xlu0 %321
    %vm324 = vcmask 146432
    %v326 = vsel %vm324, %v303, 0
    %v329 = vsel %vm324, %v304, 0
    %v332 = vsel %vm324, %v305, 0
    %vm334 = vcmask 1041408
    %v336 = vsel %vm334, %v302, 0
    %338 = vmatprep.subr.mxu0 0.0
    %339 = vmatpush1.msra.mxu0 %v300
    %340 = vmatprep.subr.mxu0 0.0
    %341 = vmatpush1.msra.mxu0 %v301
    %342 = vmatprep.subr.mxu0 0.0
    %343 = vmatpush1.msra.mxu0 %v336
    %344 = vmatprep.subr.mxu0 0.0
    %345 = vmatpush1.msra.mxu0 0.0
    %346 = vmatprep.subr.mxu0 0.0
    %347 = vmatpush1.msra.mxu0 0.0
    %348 = vmatprep.subr.mxu0 0.0
    %349 = vmatpush1.msra.mxu0 0.0
    %350 = vmatprep.subr.mxu0 0.0
    %351 = vmatpush1.msra.mxu0 0.0
    %352 = vmatprep.subr.mxu0 0.0
    %353 = vmatpush1.msra.mxu0 0.0
    %354 = vmatprep.subr.mxu0 0.0
    %355 = vmatpush1.msra.mxu0 0.0
    %356 = vmatprep.subr.mxu0 0.0
    %357 = vmatpush1.msra.mxu0 0.0
    %358 = vmatprep.subr.mxu0 0.0
    %359 = vmatpush1.msra.mxu0 0.0
    %360 = vmatprep.subr.mxu0 0.0
    %361 = vmatpush1.msra.mxu0 0.0
    %362 = vmatprep.subr.mxu0 0.0
    %363 = vmatpush1.msra.mxu0 0.0
    %364 = vmatprep.subr.mxu0 0.0
    %365 = vmatpush1.msra.mxu0 0.0
    %366 = vmatprep.subr.mxu0 0.0
    %367 = vmatpush1.msra.mxu0 0.0
    %368 = vmatprep.subr.mxu0 0.0
    %369 = vmatpush1.msra.mxu0 0.0
    %370 = vmatprep.subr.mxu0 0.0
    %371 = vmatpush1.msra.mxu0 0.0
    %372 = vmatprep.subr.mxu0 0.0
    %373 = vmatpush1.msra.mxu0 0.0
    %374 = vmatprep.subr.mxu0 0.0
    %375 = vmatpush1.msra.mxu0 0.0
    %376 = vmatprep.subr.mxu0 0.0
    %377 = vmatpush1.msra.mxu0 0.0
    %378 = vmatprep.subr.mxu0 0.0
    %379 = vmatpush1.msra.mxu0 0.0
    %380 = vmatprep.subr.mxu0 0.0
    %381 = vmatpush1.msra.mxu0 0.0
    %382 = vmatprep.subr.mxu0 0.0
    %383 = vmatpush1.msra.mxu0 0.0
    %384 = vmatprep.subr.mxu0 0.0
    %385 = vmatpush1.msra.mxu0 0.0
    %386 = vmatprep.subr.mxu0 0.0
    %387 = vmatpush1.msra.mxu0 0.0
    %388 = vmatprep.subr.mxu0 0.0
    %389 = vmatpush1.msra.mxu0 0.0
    %390 = vmatprep.subr.mxu0 0.0
    %391 = vmatpush1.msra.mxu0 0.0
    %392 = vmatprep.subr.mxu0 0.0
    %393 = vmatpush1.msra.mxu0 0.0
    %394 = vmatprep.subr.mxu0 0.0
    %395 = vmatpush1.msra.mxu0 0.0
    %396 = vmatprep.subr.mxu0 0.0
    %397 = vmatpush1.msra.mxu0 0.0
    %398 = vmatprep.subr.mxu0 0.0
    %399 = vmatpush1.msra.mxu0 0.0
    %400 = vmatprep.subr.mxu0 0.0
    %401 = vmatpush1.msra.mxu0 0.0
    %402 = vmatprep.mubr.f32.mxu0 0.0
    %403 = vmatmul.mubr.f32.gmra.mrb[0].mxu0 %v326
    %v404 = vpop.f32.mrb[0].mxu0
    %v405 = vadd.f32 %v312, %v404
    %v406 = vpop.f32.mrb[0].mxu0
    %407 = vmatprep.mubr.f32.mxu0 0.0
    %408 = vmatmul.mubr.f32.gmra.mrb[0].mxu0 %v329
    %v409 = vpop.f32.mrb[0].mxu0
    %v410 = vadd.f32 %v317, %v409
    %v411 = vpop.f32.mrb[0].mxu0
    %412 = vmatprep.mubr.f32.mxu0 0.0
    %413 = vmatmul.mubr.f32.gmra.mrb[0].mxu0 %v332
    %v414 = vpop.f32.mrb[0].mxu0
    %v415 = vadd.f32 %v322, %v414
    %v416 = vpop.f32.mrb[0].mxu0
    %417 = vdwg.mxu0
    %v418 = vtanh.pop %v405
    %v419 = vtanh.pop %v410
    %v420 = vtanh.pop %v415
    %v421 = vld [vmem:[%s1 + $0x38] sm:$0x1f]
    %v422 = vld [vmem:[%s2 + $0x88] sm:$0x1f]
    %424 = vset.pattern.permute.xlu0 0
    %425 = vperm.xlu0 %424, %v422
    %v426 = vpop.permute.xlu0 %425
    %v429 = vsel %vm176, %v421, 0
    %v432 = vsel %vm180, %v420, 0
    %434 = vmatprep.subr.mxu0 0.0
    %435 = vmatpush1.msra.mxu0 %v418
    %436 = vmatprep.subr.mxu0 0.0
    %437 = vmatpush1.msra.mxu0 %v419
    %438 = vmatprep.subr.mxu0 0.0
    %439 = vmatpush1.msra.mxu0 %v432
    %440 = vmatprep.subr.mxu0 0.0
    %441 = vmatpush1.msra.mxu0 0.0
    %442 = vmatprep.subr.mxu0 0.0
    %443 = vmatpush1.msra.mxu0 0.0
    %444 = vmatprep.subr.mxu0 0.0
    %445 = vmatpush1.msra.mxu0 0.0
    %446 = vmatprep.subr.mxu0 0.0
    %447 = vmatpush1.msra.mxu0 0.0
    %448 = vmatprep.subr.mxu0 0.0
    %449 = vmatpush1.msra.mxu0 0.0
    %450 = vmatprep.subr.mxu0 0.0
    %451 = vmatpush1.msra.mxu0 0.0
    %452 = vmatprep.subr.mxu0 0.0
    %453 = vmatpush1.msra.mxu0 0.0
    %454 = vmatprep.subr.mxu0 0.0
    %455 = vmatpush1.msra.mxu0 0.0
    %456 = vmatprep.subr.mxu0 0.0
    %457 = vmatpush1.msra.mxu0 0.0
    %458 = vmatprep.subr.mxu0 0.0
    %459 = vmatpush1.msra.mxu0 0.0
    %460 = vmatprep.subr.mxu0 0.0
    %461 = vmatpush1.msra.mxu0 0.0
    %462 = vmatprep.subr.mxu0 0.0
    %463 = vmatpush1.msra.mxu0 0.0
    %464 = vmatprep.subr.mxu0 0.0
    %465 = vmatpush1.msra.mxu0 0.0
    %466 = vmatprep.subr.mxu0 0.0
    %467 = vmatpush1.msra.mxu0 0.0
    %468 = vmatprep.subr.mxu0 0.0
    %469 = vmatpush1.msra.mxu0 0.0
    %470 = vmatprep.subr.mxu0 0.0
    %471 = vmatpush1.msra.mxu0 0.0
    %472 = vmatprep.subr.mxu0 0.0
    %473 = vmatpush1.msra.mxu0 0.0
    %474 = vmatprep.subr.mxu0 0.0
    %475 = vmatpush1.msra.mxu0 0.0
    %476 = vmatprep.subr.mxu0 0.0
    %477 = vmatpush1.msra.mxu0 0.0
    %478 = vmatprep.subr.mxu0 0.0
    %479 = vmatpush1.msra.mxu0 0.0
    %480 = vmatprep.subr.mxu0 0.0
    %481 = vmatpush1.msra.mxu0 0.0
    %482 = vmatprep.subr.mxu0 0.0
    %483 = vmatpush1.msra.mxu0 0.0
    %484 = vmatprep.subr.mxu0 0.0
    %485 = vmatpush1.msra.mxu0 0.0
    %486 = vmatprep.subr.mxu0 0.0
    %487 = vmatpush1.msra.mxu0 0.0
    %488 = vmatprep.subr.mxu0 0.0
    %489 = vmatpush1.msra.mxu0 0.0
    %490 = vmatprep.subr.mxu0 0.0
    %491 = vmatpush1.msra.mxu0 0.0
    %492 = vmatprep.subr.mxu0 0.0
    %493 = vmatpush1.msra.mxu0 0.0
    %494 = vmatprep.subr.mxu0 0.0
    %495 = vmatpush1.msra.mxu0 0.0
    %496 = vmatprep.subr.mxu0 0.0
    %497 = vmatpush1.msra.mxu0 0.0
    %498 = vmatprep.mubr.f32.mxu0 0.0
    %499 = vmatmul.mubr.f32.gmra.mrb[0].mxu0 %v429
    %v500 = vpop.f32.mrb[0].mxu0
    %v501 = vadd.f32 %v426, %v500
    %v502 = vpop.f32.mrb[0].mxu0
    %503 = vdwg.mxu0
    %504 = vst [vmem:[#allocation2 + $0x12] sm:$0x1f] %v501
    %v505 = vld [vmem:[#allocation2] sm:$0xff]
    %v506 = vld [vmem:[#allocation2 + $0x8] sm:$0xff]
    %v507 = vld [vmem:[#allocation2 + $0x10] sm:$0x7f]
    %v508 = vld [vmem:[%s2 + $0x90] sm:$0xff]
    %v509 = vld [vmem:[%s2 + $0x98] sm:$0xff]
    %v510 = vld [vmem:[%s2 + $0xa0] sm:$0x7f]
    %512 = vset.pattern.permute.xlu0 0
    %513 = vperm.xlu0 %512, %v508
    %v514 = vpop.permute.xlu0 %513
    %517 = vset.pattern.permute.xlu0 0
    %518 = vperm.xlu0 %517, %v509
    %v519 = vpop.permute.xlu0 %518
    %522 = vset.pattern.permute.xlu0 0
    %523 = vperm.xlu0 %522, %v510
    %v524 = vpop.permute.xlu0 %523
    %v526 = vmul.f32 %v505, %v514
    %v527 = vmul.f32 %v506, %v519
    %v528 = vmul.f32 %v507, %v524
    %v529 = vld [vmem:[%s2 + $0xa8] sm:$0xff]
    %v530 = vld [vmem:[%s2 + $0xb0] sm:$0xff]
    %v531 = vld [vmem:[%s2 + $0xb8] sm:$0x7f]
    %533 = vset.pattern.permute.xlu0 0
    %534 = vperm.xlu0 %533, %v529
    %v535 = vpop.permute.xlu0 %534
    %538 = vset.pattern.permute.xlu0 0
    %539 = vperm.xlu0 %538, %v530
    %v540 = vpop.permute.xlu0 %539
    %543 = vset.pattern.permute.xlu0 0
    %544 = vperm.xlu0 %543, %v531
    %v545 = vpop.permute.xlu0 %544
    %v547 = vadd.f32 %v526, %v535
    %v548 = vadd.f32 %v527, %v540
    %v549 = vadd.f32 %v528, %v545
    %v550 = vtanh.pop %v547
    %v551 = vtanh.pop %v548
    %v552 = vtanh.pop %v549
    %v553 = vld [vmem:[%s1 + $0x40] sm:$0xff]
    %v554 = vld [vmem:[%s1 + $0x48] sm:$0xff]
    %v555 = vld [vmem:[%s1 + $0x50] sm:$0xf]
    %v556 = vld [vmem:[%s2 + $0xc0] sm:$0xff]
    %v557 = vld [vmem:[%s2 + $0xc8] sm:$0xff]
    %v558 = vld [vmem:[%s2 + $0xd0] sm:$0xf]
    %560 = vset.pattern.permute.xlu0 0
    %561 = vperm.xlu0 %560, %v556
    %v562 = vpop.permute.xlu0 %561
    %565 = vset.pattern.permute.xlu0 0
    %566 = vperm.xlu0 %565, %v557
    %v567 = vpop.permute.xlu0 %566
    %570 = vset.pattern.permute.xlu0 0
    %571 = vperm.xlu0 %570, %v558
    %v572 = vpop.permute.xlu0 %571
    %vm574 = vcmask 187392
    %v576 = vsel %vm574, %v553, 0
    %v579 = vsel %vm574, %v554, 0
    %v582 = vsel %vm574, %v555, 0
    %vm584 = vcmask 1046528
    %v586 = vsel %vm584, %v552, 0
    %588 = vmatprep.subr.mxu0 0.0
    %589 = vmatpush1.msra.mxu0 %v550
    %590 = vmatprep.subr.mxu0 0.0
    %591 = vmatpush1.msra.mxu0 %v551
    %592 = vmatprep.subr.mxu0 0.0
    %593 = vmatpush1.msra.mxu0 %v586
    %594 = vmatprep.subr.mxu0 0.0
    %595 = vmatpush1.msra.mxu0 0.0
    %596 = vmatprep.subr.mxu0 0.0
    %597 = vmatpush1.msra.mxu0 0.0
    %598 = vmatprep.subr.mxu0 0.0
    %599 = vmatpush1.msra.mxu0 0.0
    %600 = vmatprep.subr.mxu0 0.0
    %601 = vmatpush1.msra.mxu0 0.0
    %602 = vmatprep.subr.mxu0 0.0
    %603 = vmatpush1.msra.mxu0 0.0
    %604 = vmatprep.subr.mxu0 0.0
    %605 = vmatpush1.msra.mxu0 0.0
    %606 = vmatprep.subr.mxu0 0.0
    %607 = vmatpush1.msra.mxu0 0.0
    %608 = vmatprep.subr.mxu0 0.0
    %609 = vmatpush1.msra.mxu0 0.0
    %610 = vmatprep.subr.mxu0 0.0
    %611 = vmatpush1.msra.mxu0 0.0
    %612 = vmatprep.subr.mxu0 0.0
    %613 = vmatpush1.msra.mxu0 0.0
    %614 = vmatprep.subr.mxu0 0.0
    %615 = vmatpush1.msra.mxu0 0.0
    %616 = vmatprep.subr.mxu0 0.0
    %617 = vmatpush1.msra.mxu0 0.0
    %618 = vmatprep.subr.mxu0 0.0
    %619 = vmatpush1.msra.mxu0 0.0
    %620 = vmatprep.subr.mxu0 0.0
    %621 = vmatpush1.msra.mxu0 0.0
    %622 = vmatprep.subr.mxu0 0.0
    %623 = vmatpush1.msra.mxu0 0.0
    %624 = vmatprep.subr.mxu0 0.0
    %625 = vmatpush1.msra.mxu0 0.0
    %626 = vmatprep.subr.mxu0 0.0
    %627 = vmatpush1.msra.mxu0 0.0
    %628 = vmatprep.subr.mxu0 0.0
    %629 = vmatpush1.msra.mxu0 0.0
    %630 = vmatprep.subr.mxu0 0.0
    %631 = vmatpush1.msra.mxu0 0.0
    %632 = vmatprep.subr.mxu0 0.0
    %633 = vmatpush1.msra.mxu0 0.0
    %634 = vmatprep.subr.mxu0 0.0
    %635 = vmatpush1.msra.mxu0 0.0
    %636 = vmatprep.subr.mxu0 0.0
    %637 = vmatpush1.msra.mxu0 0.0
    %638 = vmatprep.subr.mxu0 0.0
    %639 = vmatpush1.msra.mxu0 0.0
    %640 = vmatprep.subr.mxu0 0.0
    %641 = vmatpush1.msra.mxu0 0.0
    %642 = vmatprep.subr.mxu0 0.0
    %643 = vmatpush1.msra.mxu0 0.0
    %644 = vmatprep.subr.mxu0 0.0
    %645 = vmatpush1.msra.mxu0 0.0
    %646 = vmatprep.subr.mxu0 0.0
    %647 = vmatpush1.msra.mxu0 0.0
    %648 = vmatprep.subr.mxu0 0.0
    %649 = vmatpush1.msra.mxu0 0.0
    %650 = vmatprep.subr.mxu0 0.0
    %651 = vmatpush1.msra.mxu0 0.0
    %652 = vmatprep.mubr.f32.mxu0 0.0
    %653 = vmatmul.mubr.f32.gmra.mrb[0].mxu0 %v576
    %v654 = vpop.f32.mrb[0].mxu0
    %v655 = vadd.f32 %v562, %v654
    %v656 = vpop.f32.mrb[0].mxu0
    %657 = vmatprep.mubr.f32.mxu0 0.0
    %658 = vmatmul.mubr.f32.gmra.mrb[0].mxu0 %v579
    %v659 = vpop.f32.mrb[0].mxu0
    %v660 = vadd.f32 %v567, %v659
    %v661 = vpop.f32.mrb[0].mxu0
    %662 = vmatprep.mubr.f32.mxu0 0.0
    %663 = vmatmul.mubr.f32.gmra.mrb[0].mxu0 %v582
    %v664 = vpop.f32.mrb[0].mxu0
    %v665 = vadd.f32 %v572, %v664
    %v666 = vpop.f32.mrb[0].mxu0
    %667 = vdwg.mxu0
    %v668 = vtanh.pop %v655
    %v669 = vtanh.pop %v660
    %v670 = vtanh.pop %v665
    %v671 = vld [vmem:[%s1 + $0x58] sm:$0x1f]
    %v672 = vld [vmem:[%s2 + $0xd8] sm:$0x1f]
    %674 = vset.pattern.permute.xlu0 0
    %675 = vperm.xlu0 %674, %v672
    %v676 = vpop.permute.xlu0 %675
    %v679 = vsel %vm176, %v671, 0
    %v682 = vsel %vm180, %v670, 0
    %684 = vmatprep.subr.mxu0 0.0
    %685 = vmatpush1.msra.mxu0 %v668
    %686 = vmatprep.subr.mxu0 0.0
    %687 = vmatpush1.msra.mxu0 %v669
    %688 = vmatprep.subr.mxu0 0.0
    %689 = vmatpush1.msra.mxu0 %v682
    %690 = vmatprep.subr.mxu0 0.0
    %691 = vmatpush1.msra.mxu0 0.0
    %692 = vmatprep.subr.mxu0 0.0
    %693 = vmatpush1.msra.mxu0 0.0
    %694 = vmatprep.subr.mxu0 0.0
    %695 = vmatpush1.msra.mxu0 0.0
    %696 = vmatprep.subr.mxu0 0.0
    %697 = vmatpush1.msra.mxu0 0.0
    %698 = vmatprep.subr.mxu0 0.0
    %699 = vmatpush1.msra.mxu0 0.0
    %700 = vmatprep.subr.mxu0 0.0
    %701 = vmatpush1.msra.mxu0 0.0
    %702 = vmatprep.subr.mxu0 0.0
    %703 = vmatpush1.msra.mxu0 0.0
    %704 = vmatprep.subr.mxu0 0.0
    %705 = vmatpush1.msra.mxu0 0.0
    %706 = vmatprep.subr.mxu0 0.0
    %707 = vmatpush1.msra.mxu0 0.0
    %708 = vmatprep.subr.mxu0 0.0
    %709 = vmatpush1.msra.mxu0 0.0
    %710 = vmatprep.subr.mxu0 0.0
    %711 = vmatpush1.msra.mxu0 0.0
    %712 = vmatprep.subr.mxu0 0.0
    %713 = vmatpush1.msra.mxu0 0.0
    %714 = vmatprep.subr.mxu0 0.0
    %715 = vmatpush1.msra.mxu0 0.0
    %716 = vmatprep.subr.mxu0 0.0
    %717 = vmatpush1.msra.mxu0 0.0
    %718 = vmatprep.subr.mxu0 0.0
    %719 = vmatpush1.msra.mxu0 0.0
    %720 = vmatprep.subr.mxu0 0.0
    %721 = vmatpush1.msra.mxu0 0.0
    %722 = vmatprep.subr.mxu0 0.0
    %723 = vmatpush1.msra.mxu0 0.0
    %724 = vmatprep.subr.mxu0 0.0
    %725 = vmatpush1.msra.mxu0 0.0
    %726 = vmatprep.subr.mxu0 0.0
    %727 = vmatpush1.msra.mxu0 0.0
    %728 = vmatprep.subr.mxu0 0.0
    %729 = vmatpush1.msra.mxu0 0.0
    %730 = vmatprep.subr.mxu0 0.0
    %731 = vmatpush1.msra.mxu0 0.0
    %732 = vmatprep.subr.mxu0 0.0
    %733 = vmatpush1.msra.mxu0 0.0
    %734 = vmatprep.subr.mxu0 0.0
    %735 = vmatpush1.msra.mxu0 0.0
    %736 = vmatprep.subr.mxu0 0.0
    %737 = vmatpush1.msra.mxu0 0.0
    %738 = vmatprep.subr.mxu0 0.0
    %739 = vmatpush1.msra.mxu0 0.0
    %740 = vmatprep.subr.mxu0 0.0
    %741 = vmatpush1.msra.mxu0 0.0
    %742 = vmatprep.subr.mxu0 0.0
    %743 = vmatpush1.msra.mxu0 0.0
    %744 = vmatprep.subr.mxu0 0.0
    %745 = vmatpush1.msra.mxu0 0.0
    %746 = vmatprep.subr.mxu0 0.0
    %747 = vmatpush1.msra.mxu0 0.0
    %748 = vmatprep.mubr.f32.mxu0 0.0
    %749 = vmatmul.mubr.f32.gmra.mrb[0].mxu0 %v679
    %v750 = vpop.f32.mrb[0].mxu0
    %v751 = vadd.f32 %v676, %v750
    %v752 = vpop.f32.mrb[0].mxu0
    %753 = vdwg.mxu0
    %754 = vst [vmem:[#allocation2 + $0x17] sm:$0x1f] %v751
    %v755 = vld [vmem:[#allocation2] sm:$0xff]
    %v756 = vld [vmem:[#allocation2 + $0x8] sm:$0xff]
    %v757 = vld [vmem:[#allocation2 + $0x10] sm:$0xff]
    %v758 = vld [vmem:[#allocation2 + $0x18] sm:$0xf]
    %v759 = vld [vmem:[%s2 + $0xe0] sm:$0xff]
    %v760 = vld [vmem:[%s2 + $0xe8] sm:$0xff]
    %v761 = vld [vmem:[%s2 + $0xf0] sm:$0xff]
    %v762 = vld [vmem:[%s2 + $0xf8] sm:$0xf]
    %764 = vset.pattern.permute.xlu0 0
    %765 = vperm.xlu0 %764, %v759
    %v766 = vpop.permute.xlu0 %765
    %769 = vset.pattern.permute.xlu0 0
    %770 = vperm.xlu0 %769, %v760
    %v771 = vpop.permute.xlu0 %770
    %774 = vset.pattern.permute.xlu0 0
    %775 = vperm.xlu0 %774, %v761
    %v776 = vpop.permute.xlu0 %775
    %779 = vset.pattern.permute.xlu0 0
    %780 = vperm.xlu0 %779, %v762
    %v781 = vpop.permute.xlu0 %780
    %v783 = vmul.f32 %v755, %v766
    %v784 = vmul.f32 %v756, %v771
    %v785 = vmul.f32 %v757, %v776
    %v786 = vmul.f32 %v758, %v781
    %v787 = vld [vmem:[%s2 + $0x100] sm:$0xff]
    %v788 = vld [vmem:[%s2 + $0x108] sm:$0xff]
    %v789 = vld [vmem:[%s2 + $0x110] sm:$0xff]
    %v790 = vld [vmem:[%s2 + $0x118] sm:$0xf]
    %792 = vset.pattern.permute.xlu0 0
    %793 = vperm.xlu0 %792, %v787
    %v794 = vpop.permute.xlu0 %793
    %797 = vset.pattern.permute.xlu0 0
    %798 = vperm.xlu0 %797, %v788
    %v799 = vpop.permute.xlu0 %798
    %802 = vset.pattern.permute.xlu0 0
    %803 = vperm.xlu0 %802, %v789
    %v804 = vpop.permute.xlu0 %803
    %807 = vset.pattern.permute.xlu0 0
    %808 = vperm.xlu0 %807, %v790
    %v809 = vpop.permute.xlu0 %808
    %v811 = vadd.f32 %v783, %v794
    %v812 = vadd.f32 %v784, %v799
    %v813 = vadd.f32 %v785, %v804
    %v814 = vadd.f32 %v786, %v809
    %v815 = vtanh.pop %v811
    %v816 = vtanh.pop %v812
    %v817 = vtanh.pop %v813
    %v818 = vtanh.pop %v814
    %v819 = vld [vmem:[%s1 + $0x60] sm:$0xff]
    %v820 = vld [vmem:[%s1 + $0x68] sm:$0xff]
    %v821 = vld [vmem:[%s1 + $0x70] sm:$0xf]
    %v822 = vld [vmem:[%s2 + $0x120] sm:$0xff]
    %v823 = vld [vmem:[%s2 + $0x128] sm:$0xff]
    %v824 = vld [vmem:[%s2 + $0x130] sm:$0xf]
    %826 = vset.pattern.permute.xlu0 0
    %827 = vperm.xlu0 %826, %v822
    %v828 = vpop.permute.xlu0 %827
    %831 = vset.pattern.permute.xlu0 0
    %832 = vperm.xlu0 %831, %v823
    %v833 = vpop.permute.xlu0 %832
    %836 = vset.pattern.permute.xlu0 0
    %837 = vperm.xlu0 %836, %v824
    %v838 = vpop.permute.xlu0 %837
    %vm840 = vcmask 228352
    %v842 = vsel %vm840, %v819, 0
    %v845 = vsel %vm840, %v820, 0
    %v848 = vsel %vm840, %v821, 0
    %v851 = vsel %vm180, %v818, 0
    %853 = vmatprep.subr.mxu0 0.0
    %854 = vmatpush1.msra.mxu0 %v815
    %855 = vmatprep.subr.mxu0 0.0
    %856 = vmatpush1.msra.mxu0 %v816
    %857 = vmatprep.subr.mxu0 0.0
    %858 = vmatpush1.msra.mxu0 %v817
    %859 = vmatprep.subr.mxu0 0.0
    %860 = vmatpush1.msra.mxu0 %v851
    %861 = vmatprep.subr.mxu0 0.0
    %862 = vmatpush1.msra.mxu0 0.0
    %863 = vmatprep.subr.mxu0 0.0
    %864 = vmatpush1.msra.mxu0 0.0
    %865 = vmatprep.subr.mxu0 0.0
    %866 = vmatpush1.msra.mxu0 0.0
    %867 = vmatprep.subr.mxu0 0.0
    %868 = vmatpush1.msra.mxu0 0.0
    %869 = vmatprep.subr.mxu0 0.0
    %870 = vmatpush1.msra.mxu0 0.0
    %871 = vmatprep.subr.mxu0 0.0
    %872 = vmatpush1.msra.mxu0 0.0
    %873 = vmatprep.subr.mxu0 0.0
    %874 = vmatpush1.msra.mxu0 0.0
    %875 = vmatprep.subr.mxu0 0.0
    %876 = vmatpush1.msra.mxu0 0.0
    %877 = vmatprep.subr.mxu0 0.0
    %878 = vmatpush1.msra.mxu0 0.0
    %879 = vmatprep.subr.mxu0 0.0
    %880 = vmatpush1.msra.mxu0 0.0
    %881 = vmatprep.subr.mxu0 0.0
    %882 = vmatpush1.msra.mxu0 0.0
    %883 = vmatprep.subr.mxu0 0.0
    %884 = vmatpush1.msra.mxu0 0.0
    %885 = vmatprep.subr.mxu0 0.0
    %886 = vmatpush1.msra.mxu0 0.0
    %887 = vmatprep.subr.mxu0 0.0
    %888 = vmatpush1.msra.mxu0 0.0
    %889 = vmatprep.subr.mxu0 0.0
    %890 = vmatpush1.msra.mxu0 0.0
    %891 = vmatprep.subr.mxu0 0.0
    %892 = vmatpush1.msra.mxu0 0.0
    %893 = vmatprep.subr.mxu0 0.0
    %894 = vmatpush1.msra.mxu0 0.0
    %895 = vmatprep.subr.mxu0 0.0
    %896 = vmatpush1.msra.mxu0 0.0
    %897 = vmatprep.subr.mxu0 0.0
    %898 = vmatpush1.msra.mxu0 0.0
    %899 = vmatprep.subr.mxu0 0.0
    %900 = vmatpush1.msra.mxu0 0.0
    %901 = vmatprep.subr.mxu0 0.0
    %902 = vmatpush1.msra.mxu0 0.0
    %903 = vmatprep.subr.mxu0 0.0
    %904 = vmatpush1.msra.mxu0 0.0
    %905 = vmatprep.subr.mxu0 0.0
    %906 = vmatpush1.msra.mxu0 0.0
    %907 = vmatprep.subr.mxu0 0.0
    %908 = vmatpush1.msra.mxu0 0.0
    %909 = vmatprep.subr.mxu0 0.0
    %910 = vmatpush1.msra.mxu0 0.0
    %911 = vmatprep.subr.mxu0 0.0
    %912 = vmatpush1.msra.mxu0 0.0
    %913 = vmatprep.subr.mxu0 0.0
    %914 = vmatpush1.msra.mxu0 0.0
    %915 = vmatprep.subr.mxu0 0.0
    %916 = vmatpush1.msra.mxu0 0.0
    %917 = vmatprep.mubr.f32.mxu0 0.0
    %918 = vmatmul.mubr.f32.gmra.mrb[0].mxu0 %v842
    %v919 = vpop.f32.mrb[0].mxu0
    %v920 = vadd.f32 %v828, %v919
    %v921 = vpop.f32.mrb[0].mxu0
    %922 = vmatprep.mubr.f32.mxu0 0.0
    %923 = vmatmul.mubr.f32.gmra.mrb[0].mxu0 %v845
    %v924 = vpop.f32.mrb[0].mxu0
    %v925 = vadd.f32 %v833, %v924
    %v926 = vpop.f32.mrb[0].mxu0
    %927 = vmatprep.mubr.f32.mxu0 0.0
    %928 = vmatmul.mubr.f32.gmra.mrb[0].mxu0 %v848
    %v929 = vpop.f32.mrb[0].mxu0
    %v930 = vadd.f32 %v838, %v929
    %v931 = vpop.f32.mrb[0].mxu0
    %932 = vdwg.mxu0
    %v933 = vtanh.pop %v920
    %v934 = vtanh.pop %v925
    %v935 = vtanh.pop %v930
    %v936 = vld [vmem:[%s1 + $0x78] sm:$0x1f]
    %v937 = vld [vmem:[%s2 + $0x138] sm:$0x1f]
    %939 = vset.pattern.permute.xlu0 0
    %940 = vperm.xlu0 %939, %v937
    %v941 = vpop.permute.xlu0 %940
    %v944 = vsel %vm176, %v936, 0
    %v947 = vsel %vm180, %v935, 0
    %949 = vmatprep.subr.mxu0 0.0
    %950 = vmatpush1.msra.mxu0 %v933
    %951 = vmatprep.subr.mxu0 0.0
    %952 = vmatpush1.msra.mxu0 %v934
    %953 = vmatprep.subr.mxu0 0.0
    %954 = vmatpush1.msra.mxu0 %v947
    %955 = vmatprep.subr.mxu0 0.0
    %956 = vmatpush1.msra.mxu0 0.0
    %957 = vmatprep.subr.mxu0 0.0
    %958 = vmatpush1.msra.mxu0 0.0
    %959 = vmatprep.subr.mxu0 0.0
    %960 = vmatpush1.msra.mxu0 0.0
    %961 = vmatprep.subr.mxu0 0.0
    %962 = vmatpush1.msra.mxu0 0.0
    %963 = vmatprep.subr.mxu0 0.0
    %964 = vmatpush1.msra.mxu0 0.0
    %965 = vmatprep.subr.mxu0 0.0
    %966 = vmatpush1.msra.mxu0 0.0
    %967 = vmatprep.subr.mxu0 0.0
    %968 = vmatpush1.msra.mxu0 0.0
    %969 = vmatprep.subr.mxu0 0.0
    %970 = vmatpush1.msra.mxu0 0.0
    %971 = vmatprep.subr.mxu0 0.0
    %972 = vmatpush1.msra.mxu0 0.0
    %973 = vmatprep.subr.mxu0 0.0
    %974 = vmatpush1.msra.mxu0 0.0
    %975 = vmatprep.subr.mxu0 0.0
    %976 = vmatpush1.msra.mxu0 0.0
    %977 = vmatprep.subr.mxu0 0.0
    %978 = vmatpush1.msra.mxu0 0.0
    %979 = vmatprep.subr.mxu0 0.0
    %980 = vmatpush1.msra.mxu0 0.0
    %981 = vmatprep.subr.mxu0 0.0
    %982 = vmatpush1.msra.mxu0 0.0
    %983 = vmatprep.subr.mxu0 0.0
    %984 = vmatpush1.msra.mxu0 0.0
    %985 = vmatprep.subr.mxu0 0.0
    %986 = vmatpush1.msra.mxu0 0.0
    %987 = vmatprep.subr.mxu0 0.0
    %988 = vmatpush1.msra.mxu0 0.0
    %989 = vmatprep.subr.mxu0 0.0
    %990 = vmatpush1.msra.mxu0 0.0
    %991 = vmatprep.subr.mxu0 0.0
    %992 = vmatpush1.msra.mxu0 0.0
    %993 = vmatprep.subr.mxu0 0.0
    %994 = vmatpush1.msra.mxu0 0.0
    %995 = vmatprep.subr.mxu0 0.0
    %996 = vmatpush1.msra.mxu0 0.0
    %997 = vmatprep.subr.mxu0 0.0
    %998 = vmatpush1.msra.mxu0 0.0
    %999 = vmatprep.subr.mxu0 0.0
    %1000 = vmatpush1.msra.mxu0 0.0
    %1001 = vmatprep.subr.mxu0 0.0
    %1002 = vmatpush1.msra.mxu0 0.0
    %1003 = vmatprep.subr.mxu0 0.0
    %1004 = vmatpush1.msra.mxu0 0.0
    %1005 = vmatprep.subr.mxu0 0.0
    %1006 = vmatpush1.msra.mxu0 0.0
    %1007 = vmatprep.subr.mxu0 0.0
    %1008 = vmatpush1.msra.mxu0 0.0
    %1009 = vmatprep.subr.mxu0 0.0
    %1010 = vmatpush1.msra.mxu0 0.0
    %1011 = vmatprep.subr.mxu0 0.0
    %1012 = vmatpush1.msra.mxu0 0.0
    %1013 = vmatprep.mubr.f32.mxu0 0.0
    %1014 = vmatmul.mubr.f32.gmra.mrb[0].mxu0 %v944
    %v1015 = vpop.f32.mrb[0].mxu0
    %v1016 = vadd.f32 %v941, %v1015
    %v1017 = vpop.f32.mrb[0].mxu0
    %1018 = vdwg.mxu0
    %1019 = vst [vmem:[#allocation2 + $0x1c] sm:$0x1f] %v1016
    %v1020 = vld [vmem:[#allocation2] sm:$0xff]
    %v1021 = vld [vmem:[#allocation2 + $0x8] sm:$0xff]
    %v1022 = vld [vmem:[#allocation2 + $0x10] sm:$0xff]
    %v1023 = vld [vmem:[#allocation2 + $0x18] sm:$0xff]
    %v1024 = vld [vmem:[#allocation2 + $0x20] sm:$0x1]
    %v1025 = vld [vmem:[%s2 + $0x140] sm:$0xff]
    %v1026 = vld [vmem:[%s2 + $0x148] sm:$0xff]
    %v1027 = vld [vmem:[%s2 + $0x150] sm:$0xff]
    %v1028 = vld [vmem:[%s2 + $0x158] sm:$0xff]
    %v1029 = vld [vmem:[%s2 + $0x160] sm:$0x1]
    %1031 = vset.pattern.permute.xlu0 0
    %1032 = vperm.xlu0 %1031, %v1025
    %v1033 = vpop.permute.xlu0 %1032
    %1036 = vset.pattern.permute.xlu0 0
    %1037 = vperm.xlu0 %1036, %v1026
    %v1038 = vpop.permute.xlu0 %1037
    %1041 = vset.pattern.permute.xlu0 0
    %1042 = vperm.xlu0 %1041, %v1027
    %v1043 = vpop.permute.xlu0 %1042
    %1046 = vset.pattern.permute.xlu0 0
    %1047 = vperm.xlu0 %1046, %v1028
    %v1048 = vpop.permute.xlu0 %1047
    %1051 = vset.pattern.permute.xlu0 0
    %1052 = vperm.xlu0 %1051, %v1029
    %v1053 = vpop.permute.xlu0 %1052
    %v1055 = vmul.f32 %v1020, %v1033
    %v1056 = vmul.f32 %v1021, %v1038
    %v1057 = vmul.f32 %v1022, %v1043
    %v1058 = vmul.f32 %v1023, %v1048
    %v1059 = vmul.f32 %v1024, %v1053
    %v1060 = vld [vmem:[%s2 + $0x168] sm:$0xff]
    %v1061 = vld [vmem:[%s2 + $0x170] sm:$0xff]
    %v1062 = vld [vmem:[%s2 + $0x178] sm:$0xff]
    %v1063 = vld [vmem:[%s2 + $0x180] sm:$0xff]
    %v1064 = vld [vmem:[%s2 + $0x188] sm:$0x1]
    %1066 = vset.pattern.permute.xlu0 0
    %1067 = vperm.xlu0 %1066, %v1060
    %v1068 = vpop.permute.xlu0 %1067
    %1071 = vset.pattern.permute.xlu0 0
    %1072 = vperm.xlu0 %1071, %v1061
    %v1073 = vpop.permute.xlu0 %1072
    %1076 = vset.pattern.permute.xlu0 0
    %1077 = vperm.xlu0 %1076, %v1062
    %v1078 = vpop.permute.xlu0 %1077
    %1081 = vset.pattern.permute.xlu0 0
    %1082 = vperm.xlu0 %1081, %v1063
    %v1083 = vpop.permute.xlu0 %1082
    %1086 = vset.pattern.permute.xlu0 0
    %1087 = vperm.xlu0 %1086, %v1064
    %v1088 = vpop.permute.xlu0 %1087
    %v1090 = vadd.f32 %v1055, %v1068
    %v1091 = vadd.f32 %v1056, %v1073
    %v1092 = vadd.f32 %v1057, %v1078
    %v1093 = vadd.f32 %v1058, %v1083
    %v1094 = vadd.f32 %v1059, %v1088
    %v1095 = vtanh.pop %v1090
    %v1096 = vtanh.pop %v1091
    %v1097 = vtanh.pop %v1092
    %v1098 = vtanh.pop %v1093
    %v1099 = vtanh.pop %v1094
    %v1100 = vld [vmem:[%s1 + $0x80] sm:$0xff]
    %v1101 = vld [vmem:[%s1 + $0x88] sm:$0xff]
    %v1102 = vld [vmem:[%s2 + $0x190] sm:$0xff]
    %v1103 = vld [vmem:[%s2 + $0x198] sm:$0xff]
    %1105 = vset.pattern.permute.xlu0 0
    %1106 = vperm.xlu0 %1105, %v1102
    %v1107 = vpop.permute.xlu0 %1106
    %1110 = vset.pattern.permute.xlu0 0
    %1111 = vperm.xlu0 %1110, %v1103
    %v1112 = vpop.permute.xlu0 %1111
    %vm1114 = vcmask 269312
    %v1116 = vsel %vm1114, %v1100, 0
    %v1119 = vsel %vm1114, %v1101, 0
    %vm1121 = vcmask 1040384
    %v1123 = vsel %vm1121, %v1099, 0
    %1125 = vmatprep.subr.mxu0 0.0
    %1126 = vmatpush1.msra.mxu0 %v1095
    %1127 = vmatprep.subr.mxu0 0.0
    %1128 = vmatpush1.msra.mxu0 %v1096
    %1129 = vmatprep.subr.mxu0 0.0
    %1130 = vmatpush1.msra.mxu0 %v1097
    %1131 = vmatprep.subr.mxu0 0.0
    %1132 = vmatpush1.msra.mxu0 %v1098
    %1133 = vmatprep.subr.mxu0 0.0
    %1134 = vmatpush1.msra.mxu0 %v1123
    %1135 = vmatprep.subr.mxu0 0.0
    %1136 = vmatpush1.msra.mxu0 0.0
    %1137 = vmatprep.subr.mxu0 0.0
    %1138 = vmatpush1.msra.mxu0 0.0
    %1139 = vmatprep.subr.mxu0 0.0
    %1140 = vmatpush1.msra.mxu0 0.0
    %1141 = vmatprep.subr.mxu0 0.0
    %1142 = vmatpush1.msra.mxu0 0.0
    %1143 = vmatprep.subr.mxu0 0.0
    %1144 = vmatpush1.msra.mxu0 0.0
    %1145 = vmatprep.subr.mxu0 0.0
    %1146 = vmatpush1.msra.mxu0 0.0
    %1147 = vmatprep.subr.mxu0 0.0
    %1148 = vmatpush1.msra.mxu0 0.0
    %1149 = vmatprep.subr.mxu0 0.0
    %1150 = vmatpush1.msra.mxu0 0.0
    %1151 = vmatprep.subr.mxu0 0.0
    %1152 = vmatpush1.msra.mxu0 0.0
    %1153 = vmatprep.subr.mxu0 0.0
    %1154 = vmatpush1.msra.mxu0 0.0
    %1155 = vmatprep.subr.mxu0 0.0
    %1156 = vmatpush1.msra.mxu0 0.0
    %1157 = vmatprep.subr.mxu0 0.0
    %1158 = vmatpush1.msra.mxu0 0.0
    %1159 = vmatprep.subr.mxu0 0.0
    %1160 = vmatpush1.msra.mxu0 0.0
    %1161 = vmatprep.subr.mxu0 0.0
    %1162 = vmatpush1.msra.mxu0 0.0
    %1163 = vmatprep.subr.mxu0 0.0
    %1164 = vmatpush1.msra.mxu0 0.0
    %1165 = vmatprep.subr.mxu0 0.0
    %1166 = vmatpush1.msra.mxu0 0.0
    %1167 = vmatprep.subr.mxu0 0.0
    %1168 = vmatpush1.msra.mxu0 0.0
    %1169 = vmatprep.subr.mxu0 0.0
    %1170 = vmatpush1.msra.mxu0 0.0
    %1171 = vmatprep.subr.mxu0 0.0
    %1172 = vmatpush1.msra.mxu0 0.0
    %1173 = vmatprep.subr.mxu0 0.0
    %1174 = vmatpush1.msra.mxu0 0.0
    %1175 = vmatprep.subr.mxu0 0.0
    %1176 = vmatpush1.msra.mxu0 0.0
    %1177 = vmatprep.subr.mxu0 0.0
    %1178 = vmatpush1.msra.mxu0 0.0
    %1179 = vmatprep.subr.mxu0 0.0
    %1180 = vmatpush1.msra.mxu0 0.0
    %1181 = vmatprep.subr.mxu0 0.0
    %1182 = vmatpush1.msra.mxu0 0.0
    %1183 = vmatprep.subr.mxu0 0.0
    %1184 = vmatpush1.msra.mxu0 0.0
    %1185 = vmatprep.subr.mxu0 0.0
    %1186 = vmatpush1.msra.mxu0 0.0
    %1187 = vmatprep.subr.mxu0 0.0
    %1188 = vmatpush1.msra.mxu0 0.0
    %1189 = vmatprep.mubr.f32.mxu0 0.0
    %1190 = vmatmul.mubr.f32.gmra.mrb[0].mxu0 %v1116
    %v1191 = vpop.f32.mrb[0].mxu0
    %v1192 = vadd.f32 %v1107, %v1191
    %v1193 = vpop.f32.mrb[0].mxu0
    %1194 = vmatprep.mubr.f32.mxu0 0.0
    %1195 = vmatmul.mubr.f32.gmra.mrb[0].mxu0 %v1119
    %v1196 = vpop.f32.mrb[0].mxu0
    %v1197 = vadd.f32 %v1112, %v1196
    %v1198 = vpop.f32.mrb[0].mxu0
    %1199 = vdwg.mxu0
    %1200 = vst [vmem:[#allocation2] sm:$0xff] %v1192
    %1201 = vst [vmem:[#allocation2 + $0x8] sm:$0xff] %v1197
    %v1202 = vld [vmem:[#allocation2] sm:$0xff]
    %v1203 = vld [vmem:[#allocation2 + $0x8] sm:$0xff]
    %v1204 = vld [vmem:[%s2 + $0x1a0] sm:$0xff]
    %v1205 = vld [vmem:[%s2 + $0x1a8] sm:$0xff]
    %1207 = vset.pattern.permute.xlu0 0
    %1208 = vperm.xlu0 %1207, %v1204
    %v1209 = vpop.permute.xlu0 %1208
    %1212 = vset.pattern.permute.xlu0 0
    %1213 = vperm.xlu0 %1212, %v1205
    %v1214 = vpop.permute.xlu0 %1213
    %v1216 = vmul.f32 %v1202, %v1209
    %v1217 = vmul.f32 %v1203, %v1214
    %v1218 = vld [vmem:[%s2 + $0x1b0] sm:$0xff]
    %v1219 = vld [vmem:[%s2 + $0x1b8] sm:$0xff]
    %1221 = vset.pattern.permute.xlu0 0
    %1222 = vperm.xlu0 %1221, %v1218
    %v1223 = vpop.permute.xlu0 %1222
    %1226 = vset.pattern.permute.xlu0 0
    %1227 = vperm.xlu0 %1226, %v1219
    %v1228 = vpop.permute.xlu0 %1227
    %v1230 = vadd.f32 %v1216, %v1223
    %v1231 = vadd.f32 %v1217, %v1228
    %v1232 = vtanh.pop %v1230
    %v1233 = vtanh.pop %v1231
    %v1234 = vld [vmem:[%s1 + $0x90] sm:$0xff]
    %v1235 = vld [vmem:[%s1 + $0x98] sm:$0xff]
    %v1236 = vld [vmem:[%s1 + $0xa0] sm:$0xf]
    %v1237 = vld [vmem:[%s2 + $0x1c0] sm:$0xff]
    %v1238 = vld [vmem:[%s2 + $0x1c8] sm:$0xff]
    %v1239 = vld [vmem:[%s2 + $0x1d0] sm:$0xf]
    %1241 = vset.pattern.permute.xlu0 0
    %1242 = vperm.xlu0 %1241, %v1237
    %v1243 = vpop.permute.xlu0 %1242
    %1246 = vset.pattern.permute.xlu0 0
    %1247 = vperm.xlu0 %1246, %v1238
    %v1248 = vpop.permute.xlu0 %1247
    %1251 = vset.pattern.permute.xlu0 0
    %1252 = vperm.xlu0 %1251, %v1239
    %v1253 = vpop.permute.xlu0 %1252
    %vm1255 = vcmask 130048
    %v1257 = vsel %vm1255, %v1234, 0
    %v1260 = vsel %vm1255, %v1235, 0
    %v1263 = vsel %vm1255, %v1236, 0
    %1265 = vmatprep.subr.mxu0 0.0
    %1266 = vmatpush1.msra.mxu0 %v1232
    %1267 = vmatprep.subr.mxu0 0.0
    %1268 = vmatpush1.msra.mxu0 %v1233
    %1269 = vmatprep.subr.mxu0 0.0
    %1270 = vmatpush1.msra.mxu0 0.0
    %1271 = vmatprep.subr.mxu0 0.0
    %1272 = vmatpush1.msra.mxu0 0.0
    %1273 = vmatprep.subr.mxu0 0.0
    %1274 = vmatpush1.msra.mxu0 0.0
    %1275 = vmatprep.subr.mxu0 0.0
    %1276 = vmatpush1.msra.mxu0 0.0
    %1277 = vmatprep.subr.mxu0 0.0
    %1278 = vmatpush1.msra.mxu0 0.0
    %1279 = vmatprep.subr.mxu0 0.0
    %1280 = vmatpush1.msra.mxu0 0.0
    %1281 = vmatprep.subr.mxu0 0.0
    %1282 = vmatpush1.msra.mxu0 0.0
    %1283 = vmatprep.subr.mxu0 0.0
    %1284 = vmatpush1.msra.mxu0 0.0
    %1285 = vmatprep.subr.mxu0 0.0
    %1286 = vmatpush1.msra.mxu0 0.0
    %1287 = vmatprep.subr.mxu0 0.0
    %1288 = vmatpush1.msra.mxu0 0.0
    %1289 = vmatprep.subr.mxu0 0.0
    %1290 = vmatpush1.msra.mxu0 0.0
    %1291 = vmatprep.subr.mxu0 0.0
    %1292 = vmatpush1.msra.mxu0 0.0
    %1293 = vmatprep.subr.mxu0 0.0
    %1294 = vmatpush1.msra.mxu0 0.0
    %1295 = vmatprep.subr.mxu0 0.0
    %1296 = vmatpush1.msra.mxu0 0.0
    %1297 = vmatprep.subr.mxu0 0.0
    %1298 = vmatpush1.msra.mxu0 0.0
    %1299 = vmatprep.subr.mxu0 0.0
    %1300 = vmatpush1.msra.mxu0 0.0
    %1301 = vmatprep.subr.mxu0 0.0
    %1302 = vmatpush1.msra.mxu0 0.0
    %1303 = vmatprep.subr.mxu0 0.0
    %1304 = vmatpush1.msra.mxu0 0.0
    %1305 = vmatprep.subr.mxu0 0.0
    %1306 = vmatpush1.msra.mxu0 0.0
    %1307 = vmatprep.subr.mxu0 0.0
    %1308 = vmatpush1.msra.mxu0 0.0
    %1309 = vmatprep.subr.mxu0 0.0
    %1310 = vmatpush1.msra.mxu0 0.0
    %1311 = vmatprep.subr.mxu0 0.0
    %1312 = vmatpush1.msra.mxu0 0.0
    %1313 = vmatprep.subr.mxu0 0.0
    %1314 = vmatpush1.msra.mxu0 0.0
    %1315 = vmatprep.subr.mxu0 0.0
    %1316 = vmatpush1.msra.mxu0 0.0
    %1317 = vmatprep.subr.mxu0 0.0
    %1318 = vmatpush1.msra.mxu0 0.0
    %1319 = vmatprep.subr.mxu0 0.0
    %1320 = vmatpush1.msra.mxu0 0.0
    %1321 = vmatprep.subr.mxu0 0.0
    %1322 = vmatpush1.msra.mxu0 0.0
    %1323 = vmatprep.subr.mxu0 0.0
    %1324 = vmatpush1.msra.mxu0 0.0
    %1325 = vmatprep.subr.mxu0 0.0
    %1326 = vmatpush1.msra.mxu0 0.0
    %1327 = vmatprep.subr.mxu0 0.0
    %1328 = vmatpush1.msra.mxu0 0.0
    %1329 = vmatprep.mubr.f32.mxu0 0.0
    %1330 = vmatmul.mubr.f32.gmra.mrb[0].mxu0 %v1257
    %v1331 = vpop.f32.mrb[0].mxu0
    %v1332 = vadd.f32 %v1243, %v1331
    %v1333 = vpop.f32.mrb[0].mxu0
    %1334 = vmatprep.mubr.f32.mxu0 0.0
    %1335 = vmatmul.mubr.f32.gmra.mrb[0].mxu0 %v1260
    %v1336 = vpop.f32.mrb[0].mxu0
    %v1337 = vadd.f32 %v1248, %v1336
    %v1338 = vpop.f32.mrb[0].mxu0
    %1339 = vmatprep.mubr.f32.mxu0 0.0
    %1340 = vmatmul.mubr.f32.gmra.mrb[0].mxu0 %v1263
    %v1341 = vpop.f32.mrb[0].mxu0
    %v1342 = vadd.f32 %v1253, %v1341
    %v1343 = vpop.f32.mrb[0].mxu0
    %1344 = vdwg.mxu0
    %v1345 = vtanh.pop %v1332
    %v1346 = vtanh.pop %v1337
    %v1347 = vtanh.pop %v1342
    %v1348 = vld [vmem:[%s1 + $0xa8] sm:$0x1f]
    %v1349 = vld [vmem:[%s2 + $0x1d8] sm:$0x1f]
    %1351 = vset.pattern.permute.xlu0 0
    %1352 = vperm.xlu0 %1351, %v1349
    %v1353 = vpop.permute.xlu0 %1352
    %v1356 = vsel %vm176, %v1348, 0
    %v1359 = vsel %vm180, %v1347, 0
    %1361 = vmatprep.subr.mxu0 0.0
    %1362 = vmatpush1.msra.mxu0 %v1345
    %1363 = vmatprep.subr.mxu0 0.0
    %1364 = vmatpush1.msra.mxu0 %v1346
    %1365 = vmatprep.subr.mxu0 0.0
    %1366 = vmatpush1.msra.mxu0 %v1359
    %1367 = vmatprep.subr.mxu0 0.0
    %1368 = vmatpush1.msra.mxu0 0.0
    %1369 = vmatprep.subr.mxu0 0.0
    %1370 = vmatpush1.msra.mxu0 0.0
    %1371 = vmatprep.subr.mxu0 0.0
    %1372 = vmatpush1.msra.mxu0 0.0
    %1373 = vmatprep.subr.mxu0 0.0
    %1374 = vmatpush1.msra.mxu0 0.0
    %1375 = vmatprep.subr.mxu0 0.0
    %1376 = vmatpush1.msra.mxu0 0.0
    %1377 = vmatprep.subr.mxu0 0.0
    %1378 = vmatpush1.msra.mxu0 0.0
    %1379 = vmatprep.subr.mxu0 0.0
    %1380 = vmatpush1.msra.mxu0 0.0
    %1381 = vmatprep.subr.mxu0 0.0
    %1382 = vmatpush1.msra.mxu0 0.0
    %1383 = vmatprep.subr.mxu0 0.0
    %1384 = vmatpush1.msra.mxu0 0.0
    %1385 = vmatprep.subr.mxu0 0.0
    %1386 = vmatpush1.msra.mxu0 0.0
    %1387 = vmatprep.subr.mxu0 0.0
    %1388 = vmatpush1.msra.mxu0 0.0
    %1389 = vmatprep.subr.mxu0 0.0
    %1390 = vmatpush1.msra.mxu0 0.0
    %1391 = vmatprep.subr.mxu0 0.0
    %1392 = vmatpush1.msra.mxu0 0.0
    %1393 = vmatprep.subr.mxu0 0.0
    %1394 = vmatpush1.msra.mxu0 0.0
    %1395 = vmatprep.subr.mxu0 0.0
    %1396 = vmatpush1.msra.mxu0 0.0
    %1397 = vmatprep.subr.mxu0 0.0
    %1398 = vmatpush1.msra.mxu0 0.0
    %1399 = vmatprep.subr.mxu0 0.0
    %1400 = vmatpush1.msra.mxu0 0.0
    %1401 = vmatprep.subr.mxu0 0.0
    %1402 = vmatpush1.msra.mxu0 0.0
    %1403 = vmatprep.subr.mxu0 0.0
    %1404 = vmatpush1.msra.mxu0 0.0
    %1405 = vmatprep.subr.mxu0 0.0
    %1406 = vmatpush1.msra.mxu0 0.0
    %1407 = vmatprep.subr.mxu0 0.0
    %1408 = vmatpush1.msra.mxu0 0.0
    %1409 = vmatprep.subr.mxu0 0.0
    %1410 = vmatpush1.msra.mxu0 0.0
    %1411 = vmatprep.subr.mxu0 0.0
    %1412 = vmatpush1.msra.mxu0 0.0
    %1413 = vmatprep.subr.mxu0 0.0
    %1414 = vmatpush1.msra.mxu0 0.0
    %1415 = vmatprep.subr.mxu0 0.0
    %1416 = vmatpush1.msra.mxu0 0.0
    %1417 = vmatprep.subr.mxu0 0.0
    %1418 = vmatpush1.msra.mxu0 0.0
    %1419 = vmatprep.subr.mxu0 0.0
    %1420 = vmatpush1.msra.mxu0 0.0
    %1421 = vmatprep.subr.mxu0 0.0
    %1422 = vmatpush1.msra.mxu0 0.0
    %1423 = vmatprep.subr.mxu0 0.0
    %1424 = vmatpush1.msra.mxu0 0.0
    %1425 = vmatprep.mubr.f32.mxu0 0.0
    %1426 = vmatmul.mubr.f32.gmra.mrb[0].mxu0 %v1356
    %v1427 = vpop.f32.mrb[0].mxu0
    %v1428 = vadd.f32 %v1353, %v1427
    %v1429 = vpop.f32.mrb[0].mxu0
    %1430 = vdwg.mxu0
    %1431 = vst [vmem:[#allocation2 + $0x10] sm:$0x1f] %v1428
    %v1432 = vld [vmem:[#allocation2] sm:$0xff]
    %v1433 = vld [vmem:[#allocation2 + $0x8] sm:$0xff]
    %v1434 = vld [vmem:[#allocation2 + $0x10] sm:$0x1f]
    %v1435 = vld [vmem:[%s2 + $0x1e0] sm:$0xff]
    %v1436 = vld [vmem:[%s2 + $0x1e8] sm:$0xff]
    %v1437 = vld [vmem:[%s2 + $0x1f0] sm:$0x1f]
    %1439 = vset.pattern.permute.xlu0 0
    %1440 = vperm.xlu0 %1439, %v1435
    %v1441 = vpop.permute.xlu0 %1440
    %1444 = vset.pattern.permute.xlu0 0
    %1445 = vperm.xlu0 %1444, %v1436
    %v1446 = vpop.permute.xlu0 %1445
    %1449 = vset.pattern.permute.xlu0 0
    %1450 = vperm.xlu0 %1449, %v1437
    %v1451 = vpop.permute.xlu0 %1450
    %v1453 = vmul.f32 %v1432, %v1441
    %v1454 = vmul.f32 %v1433, %v1446
    %v1455 = vmul.f32 %v1434, %v1451
    %v1456 = vld [vmem:[%s2 + $0x1f8] sm:$0xff]
    %v1457 = vld [vmem:[%s2 + $0x200] sm:$0xff]
    %v1458 = vld [vmem:[%s2 + $0x208] sm:$0x1f]
    %1460 = vset.pattern.permute.xlu0 0
    %1461 = vperm.xlu0 %1460, %v1456
    %v1462 = vpop.permute.xlu0 %1461
    %1465 = vset.pattern.permute.xlu0 0
    %1466 = vperm.xlu0 %1465, %v1457
    %v1467 = vpop.permute.xlu0 %1466
    %1470 = vset.pattern.permute.xlu0 0
    %1471 = vperm.xlu0 %1470, %v1458
    %v1472 = vpop.permute.xlu0 %1471
    %v1474 = vadd.f32 %v1453, %v1462
    %v1475 = vadd.f32 %v1454, %v1467
    %v1476 = vadd.f32 %v1455, %v1472
    %v1477 = vtanh.pop %v1474
    %v1478 = vtanh.pop %v1475
    %v1479 = vtanh.pop %v1476
    %v1480 = vld [vmem:[%s1 + $0xb0] sm:$0xff]
    %v1481 = vld [vmem:[%s1 + $0xb8] sm:$0xff]
    %v1482 = vld [vmem:[%s1 + $0xc0] sm:$0xf]
    %v1483 = vld [vmem:[%s2 + $0x210] sm:$0xff]
    %v1484 = vld [vmem:[%s2 + $0x218] sm:$0xff]
    %v1485 = vld [vmem:[%s2 + $0x220] sm:$0xf]
    %1487 = vset.pattern.permute.xlu0 0
    %1488 = vperm.xlu0 %1487, %v1483
    %v1489 = vpop.permute.xlu0 %1488
    %1492 = vset.pattern.permute.xlu0 0
    %1493 = vperm.xlu0 %1492, %v1484
    %v1494 = vpop.permute.xlu0 %1493
    %1497 = vset.pattern.permute.xlu0 0
    %1498 = vperm.xlu0 %1497, %v1485
    %v1499 = vpop.permute.xlu0 %1498
    %vm1501 = vcmask 171008
    %v1503 = vsel %vm1501, %v1480, 0
    %v1506 = vsel %vm1501, %v1481, 0
    %v1509 = vsel %vm1501, %v1482, 0
    %v1512 = vsel %vm82, %v1479, 0
    %1514 = vmatprep.subr.mxu0 0.0
    %1515 = vmatpush1.msra.mxu0 %v1477
    %1516 = vmatprep.subr.mxu0 0.0
    %1517 = vmatpush1.msra.mxu0 %v1478
    %1518 = vmatprep.subr.mxu0 0.0
    %1519 = vmatpush1.msra.mxu0 %v1512
    %1520 = vmatprep.subr.mxu0 0.0
    %1521 = vmatpush1.msra.mxu0 0.0
    %1522 = vmatprep.subr.mxu0 0.0
    %1523 = vmatpush1.msra.mxu0 0.0
    %1524 = vmatprep.subr.mxu0 0.0
    %1525 = vmatpush1.msra.mxu0 0.0
    %1526 = vmatprep.subr.mxu0 0.0
    %1527 = vmatpush1.msra.mxu0 0.0
    %1528 = vmatprep.subr.mxu0 0.0
    %1529 = vmatpush1.msra.mxu0 0.0
    %1530 = vmatprep.subr.mxu0 0.0
    %1531 = vmatpush1.msra.mxu0 0.0
    %1532 = vmatprep.subr.mxu0 0.0
    %1533 = vmatpush1.msra.mxu0 0.0
    %1534 = vmatprep.subr.mxu0 0.0
    %1535 = vmatpush1.msra.mxu0 0.0
    %1536 = vmatprep.subr.mxu0 0.0
    %1537 = vmatpush1.msra.mxu0 0.0
    %1538 = vmatprep.subr.mxu0 0.0
    %1539 = vmatpush1.msra.mxu0 0.0
    %1540 = vmatprep.subr.mxu0 0.0
    %1541 = vmatpush1.msra.mxu0 0.0
    %1542 = vmatprep.subr.mxu0 0.0
    %1543 = vmatpush1.msra.mxu0 0.0
    %1544 = vmatprep.subr.mxu0 0.0
    %1545 = vmatpush1.msra.mxu0 0.0
    %1546 = vmatprep.subr.mxu0 0.0
    %1547 = vmatpush1.msra.mxu0 0.0
    %1548 = vmatprep.subr.mxu0 0.0
    %1549 = vmatpush1.msra.mxu0 0.0
    %1550 = vmatprep.subr.mxu0 0.0
    %1551 = vmatpush1.msra.mxu0 0.0
    %1552 = vmatprep.subr.mxu0 0.0
    %1553 = vmatpush1.msra.mxu0 0.0
    %1554 = vmatprep.subr.mxu0 0.0
    %1555 = vmatpush1.msra.mxu0 0.0
    %1556 = vmatprep.subr.mxu0 0.0
    %1557 = vmatpush1.msra.mxu0 0.0
    %1558 = vmatprep.subr.mxu0 0.0
    %1559 = vmatpush1.msra.mxu0 0.0
    %1560 = vmatprep.subr.mxu0 0.0
    %1561 = vmatpush1.msra.mxu0 0.0
    %1562 = vmatprep.subr.mxu0 0.0
    %1563 = vmatpush1.msra.mxu0 0.0
    %1564 = vmatprep.subr.mxu0 0.0
    %1565 = vmatpush1.msra.mxu0 0.0
    %1566 = vmatprep.subr.mxu0 0.0
    %1567 = vmatpush1.msra.mxu0 0.0
    %1568 = vmatprep.subr.mxu0 0.0
    %1569 = vmatpush1.msra.mxu0 0.0
    %1570 = vmatprep.subr.mxu0 0.0
    %1571 = vmatpush1.msra.mxu0 0.0
    %1572 = vmatprep.subr.mxu0 0.0
    %1573 = vmatpush1.msra.mxu0 0.0
    %1574 = vmatprep.subr.mxu0 0.0
    %1575 = vmatpush1.msra.mxu0 0.0
    %1576 = vmatprep.subr.mxu0 0.0
    %1577 = vmatpush1.msra.mxu0 0.0
    %1578 = vmatprep.mubr.f32.mxu0 0.0
    %1579 = vmatmul.mubr.f32.gmra.mrb[0].mxu0 %v1503
    %v1580 = vpop.f32.mrb[0].mxu0
    %v1581 = vadd.f32 %v1489, %v1580
    %v1582 = vpop.f32.mrb[0].mxu0
    %1583 = vmatprep.mubr.f32.mxu0 0.0
    %1584 = vmatmul.mubr.f32.gmra.mrb[0].mxu0 %v1506
    %v1585 = vpop.f32.mrb[0].mxu0
    %v1586 = vadd.f32 %v1494, %v1585
    %v1587 = vpop.f32.mrb[0].mxu0
    %1588 = vmatprep.mubr.f32.mxu0 0.0
    %1589 = vmatmul.mubr.f32.gmra.mrb[0].mxu0 %v1509
    %v1590 = vpop.f32.mrb[0].mxu0
    %v1591 = vadd.f32 %v1499, %v1590
    %v1592 = vpop.f32.mrb[0].mxu0
    %1593 = vdwg.mxu0
    %v1594 = vtanh.pop %v1581
    %v1595 = vtanh.pop %v1586
    %v1596 = vtanh.pop %v1591
    %v1597 = vld [vmem:[%s1 + $0xc8] sm:$0x1f]
    %v1598 = vld [vmem:[%s2 + $0x228] sm:$0x1f]
    %1600 = vset.pattern.permute.xlu0 0
    %1601 = vperm.xlu0 %1600, %v1598
    %v1602 = vpop.permute.xlu0 %1601
    %v1605 = vsel %vm176, %v1597, 0
    %v1608 = vsel %vm180, %v1596, 0
    %1610 = vmatprep.subr.mxu0 0.0
    %1611 = vmatpush1.msra.mxu0 %v1594
    %1612 = vmatprep.subr.mxu0 0.0
    %1613 = vmatpush1.msra.mxu0 %v1595
    %1614 = vmatprep.subr.mxu0 0.0
    %1615 = vmatpush1.msra.mxu0 %v1608
    %1616 = vmatprep.subr.mxu0 0.0
    %1617 = vmatpush1.msra.mxu0 0.0
    %1618 = vmatprep.subr.mxu0 0.0
    %1619 = vmatpush1.msra.mxu0 0.0
    %1620 = vmatprep.subr.mxu0 0.0
    %1621 = vmatpush1.msra.mxu0 0.0
    %1622 = vmatprep.subr.mxu0 0.0
    %1623 = vmatpush1.msra.mxu0 0.0
    %1624 = vmatprep.subr.mxu0 0.0
    %1625 = vmatpush1.msra.mxu0 0.0
    %1626 = vmatprep.subr.mxu0 0.0
    %1627 = vmatpush1.msra.mxu0 0.0
    %1628 = vmatprep.subr.mxu0 0.0
    %1629 = vmatpush1.msra.mxu0 0.0
    %1630 = vmatprep.subr.mxu0 0.0
    %1631 = vmatpush1.msra.mxu0 0.0
    %1632 = vmatprep.subr.mxu0 0.0
    %1633 = vmatpush1.msra.mxu0 0.0
    %1634 = vmatprep.subr.mxu0 0.0
    %1635 = vmatpush1.msra.mxu0 0.0
    %1636 = vmatprep.subr.mxu0 0.0
    %1637 = vmatpush1.msra.mxu0 0.0
    %1638 = vmatprep.subr.mxu0 0.0
    %1639 = vmatpush1.msra.mxu0 0.0
    %1640 = vmatprep.subr.mxu0 0.0
    %1641 = vmatpush1.msra.mxu0 0.0
    %1642 = vmatprep.subr.mxu0 0.0
    %1643 = vmatpush1.msra.mxu0 0.0
    %1644 = vmatprep.subr.mxu0 0.0
    %1645 = vmatpush1.msra.mxu0 0.0
    %1646 = vmatprep.subr.mxu0 0.0
    %1647 = vmatpush1.msra.mxu0 0.0
    %1648 = vmatprep.subr.mxu0 0.0
    %1649 = vmatpush1.msra.mxu0 0.0
    %1650 = vmatprep.subr.mxu0 0.0
    %1651 = vmatpush1.msra.mxu0 0.0
    %1652 = vmatprep.subr.mxu0 0.0
    %1653 = vmatpush1.msra.mxu0 0.0
    %1654 = vmatprep.subr.mxu0 0.0
    %1655 = vmatpush1.msra.mxu0 0.0
    %1656 = vmatprep.subr.mxu0 0.0
    %1657 = vmatpush1.msra.mxu0 0.0
    %1658 = vmatprep.subr.mxu0 0.0
    %1659 = vmatpush1.msra.mxu0 0.0
    %1660 = vmatprep.subr.mxu0 0.0
    %1661 = vmatpush1.msra.mxu0 0.0
    %1662 = vmatprep.subr.mxu0 0.0
    %1663 = vmatpush1.msra.mxu0 0.0
    %1664 = vmatprep.subr.mxu0 0.0
    %1665 = vmatpush1.msra.mxu0 0.0
    %1666 = vmatprep.subr.mxu0 0.0
    %1667 = vmatpush1.msra.mxu0 0.0
    %1668 = vmatprep.subr.mxu0 0.0
    %1669 = vmatpush1.msra.mxu0 0.0
    %1670 = vmatprep.subr.mxu0 0.0
    %1671 = vmatpush1.msra.mxu0 0.0
    %1672 = vmatprep.subr.mxu0 0.0
    %1673 = vmatpush1.msra.mxu0 0.0
    %1674 = vmatprep.mubr.f32.mxu0 0.0
    %1675 = vmatmul.mubr.f32.gmra.mrb[0].mxu0 %v1605
    %v1676 = vpop.f32.mrb[0].mxu0
    %v1677 = vadd.f32 %v1602, %v1676
    %v1678 = vpop.f32.mrb[0].mxu0
    %1679 = vdwg.mxu0
    %1680 = vst [vmem:[#allocation2 + $0x15] sm:$0x1f] %v1677
    %v1681 = vld [vmem:[#allocation2] sm:$0xff]
    %v1682 = vld [vmem:[#allocation2 + $0x8] sm:$0xff]
    %v1683 = vld [vmem:[#allocation2 + $0x10] sm:$0xff]
    %v1684 = vld [vmem:[#allocation2 + $0x18] sm:$0x3]
    %v1685 = vld [vmem:[%s2 + $0x230] sm:$0xff]
    %v1686 = vld [vmem:[%s2 + $0x238] sm:$0xff]
    %v1687 = vld [vmem:[%s2 + $0x240] sm:$0xff]
    %v1688 = vld [vmem:[%s2 + $0x248] sm:$0x3]
    %1690 = vset.pattern.permute.xlu0 0
    %1691 = vperm.xlu0 %1690, %v1685
    %v1692 = vpop.permute.xlu0 %1691
    %1695 = vset.pattern.permute.xlu0 0
    %1696 = vperm.xlu0 %1695, %v1686
    %v1697 = vpop.permute.xlu0 %1696
    %1700 = vset.pattern.permute.xlu0 0
    %1701 = vperm.xlu0 %1700, %v1687
    %v1702 = vpop.permute.xlu0 %1701
    %1705 = vset.pattern.permute.xlu0 0
    %1706 = vperm.xlu0 %1705, %v1688
    %v1707 = vpop.permute.xlu0 %1706
    %v1709 = vmul.f32 %v1681, %v1692
    %v1710 = vmul.f32 %v1682, %v1697
    %v1711 = vmul.f32 %v1683, %v1702
    %v1712 = vmul.f32 %v1684, %v1707
    %v1713 = vld [vmem:[%s2 + $0x250] sm:$0xff]
    %v1714 = vld [vmem:[%s2 + $0x258] sm:$0xff]
    %v1715 = vld [vmem:[%s2 + $0x260] sm:$0xff]
    %v1716 = vld [vmem:[%s2 + $0x268] sm:$0x3]
    %1718 = vset.pattern.permute.xlu0 0
    %1719 = vperm.xlu0 %1718, %v1713
    %v1720 = vpop.permute.xlu0 %1719
    %1723 = vset.pattern.permute.xlu0 0
    %1724 = vperm.xlu0 %1723, %v1714
    %v1725 = vpop.permute.xlu0 %1724
    %1728 = vset.pattern.permute.xlu0 0
    %1729 = vperm.xlu0 %1728, %v1715
    %v1730 = vpop.permute.xlu0 %1729
    %1733 = vset.pattern.permute.xlu0 0
    %1734 = vperm.xlu0 %1733, %v1716
    %v1735 = vpop.permute.xlu0 %1734
    %v1737 = vadd.f32 %v1709, %v1720
    %v1738 = vadd.f32 %v1710, %v1725
    %v1739 = vadd.f32 %v1711, %v1730
    %v1740 = vadd.f32 %v1712, %v1735
    %v1741 = vtanh.pop %v1737
    %v1742 = vtanh.pop %v1738
    %v1743 = vtanh.pop %v1739
    %v1744 = vtanh.pop %v1740
    %v1745 = vld [vmem:[%s1 + $0xd0] sm:$0xff]
    %v1746 = vld [vmem:[%s1 + $0xd8] sm:$0xff]
    %v1747 = vld [vmem:[%s1 + $0xe0] sm:$0xf]
    %v1748 = vld [vmem:[%s2 + $0x270] sm:$0xff]
    %v1749 = vld [vmem:[%s2 + $0x278] sm:$0xff]
    %v1750 = vld [vmem:[%s2 + $0x280] sm:$0xf]
    %1752 = vset.pattern.permute.xlu0 0
    %1753 = vperm.xlu0 %1752, %v1748
    %v1754 = vpop.permute.xlu0 %1753
    %1757 = vset.pattern.permute.xlu0 0
    %1758 = vperm.xlu0 %1757, %v1749
    %v1759 = vpop.permute.xlu0 %1758
    %1762 = vset.pattern.permute.xlu0 0
    %1763 = vperm.xlu0 %1762, %v1750
    %v1764 = vpop.permute.xlu0 %1763
    %vm1766 = vcmask 211968
    %v1768 = vsel %vm1766, %v1745, 0
    %v1771 = vsel %vm1766, %v1746, 0
    %v1774 = vsel %vm1766, %v1747, 0
    %v1777 = vsel %vm334, %v1744, 0
    %1779 = vmatprep.subr.mxu0 0.0
    %1780 = vmatpush1.msra.mxu0 %v1741
    %1781 = vmatprep.subr.mxu0 0.0
    %1782 = vmatpush1.msra.mxu0 %v1742
    %1783 = vmatprep.subr.mxu0 0.0
    %1784 = vmatpush1.msra.mxu0 %v1743
    %1785 = vmatprep.subr.mxu0 0.0
    %1786 = vmatpush1.msra.mxu0 %v1777
    %1787 = vmatprep.subr.mxu0 0.0
    %1788 = vmatpush1.msra.mxu0 0.0
    %1789 = vmatprep.subr.mxu0 0.0
    %1790 = vmatpush1.msra.mxu0 0.0
    %1791 = vmatprep.subr.mxu0 0.0
    %1792 = vmatpush1.msra.mxu0 0.0
    %1793 = vmatprep.subr.mxu0 0.0
    %1794 = vmatpush1.msra.mxu0 0.0
    %1795 = vmatprep.subr.mxu0 0.0
    %1796 = vmatpush1.msra.mxu0 0.0
    %1797 = vmatprep.subr.mxu0 0.0
    %1798 = vmatpush1.msra.mxu0 0.0
    %1799 = vmatprep.subr.mxu0 0.0
    %1800 = vmatpush1.msra.mxu0 0.0
    %1801 = vmatprep.subr.mxu0 0.0
    %1802 = vmatpush1.msra.mxu0 0.0
    %1803 = vmatprep.subr.mxu0 0.0
    %1804 = vmatpush1.msra.mxu0 0.0
    %1805 = vmatprep.subr.mxu0 0.0
    %1806 = vmatpush1.msra.mxu0 0.0
    %1807 = vmatprep.subr.mxu0 0.0
    %1808 = vmatpush1.msra.mxu0 0.0
    %1809 = vmatprep.subr.mxu0 0.0
    %1810 = vmatpush1.msra.mxu0 0.0
    %1811 = vmatprep.subr.mxu0 0.0
    %1812 = vmatpush1.msra.mxu0 0.0
    %1813 = vmatprep.subr.mxu0 0.0
    %1814 = vmatpush1.msra.mxu0 0.0
    %1815 = vmatprep.subr.mxu0 0.0
    %1816 = vmatpush1.msra.mxu0 0.0
    %1817 = vmatprep.subr.mxu0 0.0
    %1818 = vmatpush1.msra.mxu0 0.0
    %1819 = vmatprep.subr.mxu0 0.0
    %1820 = vmatpush1.msra.mxu0 0.0
    %1821 = vmatprep.subr.mxu0 0.0
    %1822 = vmatpush1.msra.mxu0 0.0
    %1823 = vmatprep.subr.mxu0 0.0
    %1824 = vmatpush1.msra.mxu0 0.0
    %1825 = vmatprep.subr.mxu0 0.0
    %1826 = vmatpush1.msra.mxu0 0.0
    %1827 = vmatprep.subr.mxu0 0.0
    %1828 = vmatpush1.msra.mxu0 0.0
    %1829 = vmatprep.subr.mxu0 0.0
    %1830 = vmatpush1.msra.mxu0 0.0
    %1831 = vmatprep.subr.mxu0 0.0
    %1832 = vmatpush1.msra.mxu0 0.0
    %1833 = vmatprep.subr.mxu0 0.0
    %1834 = vmatpush1.msra.mxu0 0.0
    %1835 = vmatprep.subr.mxu0 0.0
    %1836 = vmatpush1.msra.mxu0 0.0
    %1837 = vmatprep.subr.mxu0 0.0
    %1838 = vmatpush1.msra.mxu0 0.0
    %1839 = vmatprep.subr.mxu0 0.0
    %1840 = vmatpush1.msra.mxu0 0.0
    %1841 = vmatprep.subr.mxu0 0.0
    %1842 = vmatpush1.msra.mxu0 0.0
    %1843 = vmatprep.mubr.f32.mxu0 0.0
    %1844 = vmatmul.mubr.f32.gmra.mrb[0].mxu0 %v1768
    %v1845 = vpop.f32.mrb[0].mxu0
    %v1846 = vadd.f32 %v1754, %v1845
    %v1847 = vpop.f32.mrb[0].mxu0
    %1848 = vmatprep.mubr.f32.mxu0 0.0
    %1849 = vmatmul.mubr.f32.gmra.mrb[0].mxu0 %v1771
    %v1850 = vpop.f32.mrb[0].mxu0
    %v1851 = vadd.f32 %v1759, %v1850
    %v1852 = vpop.f32.mrb[0].mxu0
    %1853 = vmatprep.mubr.f32.mxu0 0.0
    %1854 = vmatmul.mubr.f32.gmra.mrb[0].mxu0 %v1774
    %v1855 = vpop.f32.mrb[0].mxu0
    %v1856 = vadd.f32 %v1764, %v1855
    %v1857 = vpop.f32.mrb[0].mxu0
    %1858 = vdwg.mxu0
    %v1859 = vtanh.pop %v1846
    %v1860 = vtanh.pop %v1851
    %v1861 = vtanh.pop %v1856
    %v1862 = vld [vmem:[%s1 + $0xe8] sm:$0x1f]
    %v1863 = vld [vmem:[%s2 + $0x288] sm:$0x1f]
    %1865 = vset.pattern.permute.xlu0 0
    %1866 = vperm.xlu0 %1865, %v1863
    %v1867 = vpop.permute.xlu0 %1866
    %v1870 = vsel %vm176, %v1862, 0
    %v1873 = vsel %vm180, %v1861, 0
    %1875 = vmatprep.subr.mxu0 0.0
    %1876 = vmatpush1.msra.mxu0 %v1859
    %1877 = vmatprep.subr.mxu0 0.0
    %1878 = vmatpush1.msra.mxu0 %v1860
    %1879 = vmatprep.subr.mxu0 0.0
    %1880 = vmatpush1.msra.mxu0 %v1873
    %1881 = vmatprep.subr.mxu0 0.0
    %1882 = vmatpush1.msra.mxu0 0.0
    %1883 = vmatprep.subr.mxu0 0.0
    %1884 = vmatpush1.msra.mxu0 0.0
    %1885 = vmatprep.subr.mxu0 0.0
    %1886 = vmatpush1.msra.mxu0 0.0
    %1887 = vmatprep.subr.mxu0 0.0
    %1888 = vmatpush1.msra.mxu0 0.0
    %1889 = vmatprep.subr.mxu0 0.0
    %1890 = vmatpush1.msra.mxu0 0.0
    %1891 = vmatprep.subr.mxu0 0.0
    %1892 = vmatpush1.msra.mxu0 0.0
    %1893 = vmatprep.subr.mxu0 0.0
    %1894 = vmatpush1.msra.mxu0 0.0
    %1895 = vmatprep.subr.mxu0 0.0
    %1896 = vmatpush1.msra.mxu0 0.0
    %1897 = vmatprep.subr.mxu0 0.0
    %1898 = vmatpush1.msra.mxu0 0.0
    %1899 = vmatprep.subr.mxu0 0.0
    %1900 = vmatpush1.msra.mxu0 0.0
    %1901 = vmatprep.subr.mxu0 0.0
    %1902 = vmatpush1.msra.mxu0 0.0
    %1903 = vmatprep.subr.mxu0 0.0
    %1904 = vmatpush1.msra.mxu0 0.0
    %1905 = vmatprep.subr.mxu0 0.0
    %1906 = vmatpush1.msra.mxu0 0.0
    %1907 = vmatprep.subr.mxu0 0.0
    %1908 = vmatpush1.msra.mxu0 0.0
    %1909 = vmatprep.subr.mxu0 0.0
    %1910 = vmatpush1.msra.mxu0 0.0
    %1911 = vmatprep.subr.mxu0 0.0
    %1912 = vmatpush1.msra.mxu0 0.0
    %1913 = vmatprep.subr.mxu0 0.0
    %1914 = vmatpush1.msra.mxu0 0.0
    %1915 = vmatprep.subr.mxu0 0.0
    %1916 = vmatpush1.msra.mxu0 0.0
    %1917 = vmatprep.subr.mxu0 0.0
    %1918 = vmatpush1.msra.mxu0 0.0
    %1919 = vmatprep.subr.mxu0 0.0
    %1920 = vmatpush1.msra.mxu0 0.0
    %1921 = vmatprep.subr.mxu0 0.0
    %1922 = vmatpush1.msra.mxu0 0.0
    %1923 = vmatprep.subr.mxu0 0.0
    %1924 = vmatpush1.msra.mxu0 0.0
    %1925 = vmatprep.subr.mxu0 0.0
    %1926 = vmatpush1.msra.mxu0 0.0
    %1927 = vmatprep.subr.mxu0 0.0
    %1928 = vmatpush1.msra.mxu0 0.0
    %1929 = vmatprep.subr.mxu0 0.0
    %1930 = vmatpush1.msra.mxu0 0.0
    %1931 = vmatprep.subr.mxu0 0.0
    %1932 = vmatpush1.msra.mxu0 0.0
    %1933 = vmatprep.subr.mxu0 0.0
    %1934 = vmatpush1.msra.mxu0 0.0
    %1935 = vmatprep.subr.mxu0 0.0
    %1936 = vmatpush1.msra.mxu0 0.0
    %1937 = vmatprep.subr.mxu0 0.0
    %1938 = vmatpush1.msra.mxu0 0.0
    %1939 = vmatprep.mubr.f32.mxu0 0.0
    %1940 = vmatmul.mubr.f32.gmra.mrb[0].mxu0 %v1870
    %v1941 = vpop.f32.mrb[0].mxu0
    %v1942 = vadd.f32 %v1867, %v1941
    %v1943 = vpop.f32.mrb[0].mxu0
    %1944 = vdwg.mxu0
    %1945 = vst [vmem:[#allocation2 + $0x1a] sm:$0x1f] %v1942
    %v1946 = vld [vmem:[#allocation2] sm:$0xff]
    %v1947 = vld [vmem:[#allocation2 + $0x8] sm:$0xff]
    %v1948 = vld [vmem:[#allocation2 + $0x10] sm:$0xff]
    %v1949 = vld [vmem:[#allocation2 + $0x18] sm:$0x7f]
    %v1950 = vld [vmem:[%s2 + $0x290] sm:$0xff]
    %v1951 = vld [vmem:[%s2 + $0x298] sm:$0xff]
    %v1952 = vld [vmem:[%s2 + $0x2a0] sm:$0xff]
    %v1953 = vld [vmem:[%s2 + $0x2a8] sm:$0x7f]
    %1955 = vset.pattern.permute.xlu0 0
    %1956 = vperm.xlu0 %1955, %v1950
    %v1957 = vpop.permute.xlu0 %1956
    %1960 = vset.pattern.permute.xlu0 0
    %1961 = vperm.xlu0 %1960, %v1951
    %v1962 = vpop.permute.xlu0 %1961
    %1965 = vset.pattern.permute.xlu0 0
    %1966 = vperm.xlu0 %1965, %v1952
    %v1967 = vpop.permute.xlu0 %1966
    %1970 = vset.pattern.permute.xlu0 0
    %1971 = vperm.xlu0 %1970, %v1953
    %v1972 = vpop.permute.xlu0 %1971
    %v1974 = vmul.f32 %v1946, %v1957
    %v1975 = vmul.f32 %v1947, %v1962
    %v1976 = vmul.f32 %v1948, %v1967
    %v1977 = vmul.f32 %v1949, %v1972
    %v1978 = vld [vmem:[%s2 + $0x2b0] sm:$0xff]
    %v1979 = vld [vmem:[%s2 + $0x2b8] sm:$0xff]
    %v1980 = vld [vmem:[%s2 + $0x2c0] sm:$0xff]
    %v1981 = vld [vmem:[%s2 + $0x2c8] sm:$0x7f]
    %1983 = vset.pattern.permute.xlu0 0
    %1984 = vperm.xlu0 %1983, %v1978
    %v1985 = vpop.permute.xlu0 %1984
    %1988 = vset.pattern.permute.xlu0 0
    %1989 = vperm.xlu0 %1988, %v1979
    %v1990 = vpop.permute.xlu0 %1989
    %1993 = vset.pattern.permute.xlu0 0
    %1994 = vperm.xlu0 %1993, %v1980
    %v1995 = vpop.permute.xlu0 %1994
    %1998 = vset.pattern.permute.xlu0 0
    %1999 = vperm.xlu0 %1998, %v1981
    %v2000 = vpop.permute.xlu0 %1999
    %v2002 = vadd.f32 %v1974, %v1985
    %v2003 = vadd.f32 %v1975, %v1990
    %v2004 = vadd.f32 %v1976, %v1995
    %v2005 = vadd.f32 %v1977, %v2000
    %v2006 = vtanh.pop %v2002
    %v2007 = vtanh.pop %v2003
    %v2008 = vtanh.pop %v2004
    %v2009 = vtanh.pop %v2005
    %v2010 = vld [vmem:[%s1 + $0xf0] sm:$0xff]
    %v2011 = vld [vmem:[%s1 + $0xf8] sm:$0xff]
    %v2012 = vld [vmem:[%s1 + $0x100] sm:$0xf]
    %v2013 = vld [vmem:[%s2 + $0x2d0] sm:$0xff]
    %v2014 = vld [vmem:[%s2 + $0x2d8] sm:$0xff]
    %v2015 = vld [vmem:[%s2 + $0x2e0] sm:$0xf]
    %2017 = vset.pattern.permute.xlu0 0
    %2018 = vperm.xlu0 %2017, %v2013
    %v2019 = vpop.permute.xlu0 %2018
    %2022 = vset.pattern.permute.xlu0 0
    %2023 = vperm.xlu0 %2022, %v2014
    %v2024 = vpop.permute.xlu0 %2023
    %2027 = vset.pattern.permute.xlu0 0
    %2028 = vperm.xlu0 %2027, %v2015
    %v2029 = vpop.permute.xlu0 %2028
    %vm2031 = vcmask 252928
    %v2033 = vsel %vm2031, %v2010, 0
    %v2036 = vsel %vm2031, %v2011, 0
    %v2039 = vsel %vm2031, %v2012, 0
    %v2042 = vsel %vm584, %v2009, 0
    %2044 = vmatprep.subr.mxu0 0.0
    %2045 = vmatpush1.msra.mxu0 %v2006
    %2046 = vmatprep.subr.mxu0 0.0
    %2047 = vmatpush1.msra.mxu0 %v2007
    %2048 = vmatprep.subr.mxu0 0.0
    %2049 = vmatpush1.msra.mxu0 %v2008
    %2050 = vmatprep.subr.mxu0 0.0
    %2051 = vmatpush1.msra.mxu0 %v2042
    %2052 = vmatprep.subr.mxu0 0.0
    %2053 = vmatpush1.msra.mxu0 0.0
    %2054 = vmatprep.subr.mxu0 0.0
    %2055 = vmatpush1.msra.mxu0 0.0
    %2056 = vmatprep.subr.mxu0 0.0
    %2057 = vmatpush1.msra.mxu0 0.0
    %2058 = vmatprep.subr.mxu0 0.0
    %2059 = vmatpush1.msra.mxu0 0.0
    %2060 = vmatprep.subr.mxu0 0.0
    %2061 = vmatpush1.msra.mxu0 0.0
    %2062 = vmatprep.subr.mxu0 0.0
    %2063 = vmatpush1.msra.mxu0 0.0
    %2064 = vmatprep.subr.mxu0 0.0
    %2065 = vmatpush1.msra.mxu0 0.0
    %2066 = vmatprep.subr.mxu0 0.0
    %2067 = vmatpush1.msra.mxu0 0.0
    %2068 = vmatprep.subr.mxu0 0.0
    %2069 = vmatpush1.msra.mxu0 0.0
    %2070 = vmatprep.subr.mxu0 0.0
    %2071 = vmatpush1.msra.mxu0 0.0
    %2072 = vmatprep.subr.mxu0 0.0
    %2073 = vmatpush1.msra.mxu0 0.0
    %2074 = vmatprep.subr.mxu0 0.0
    %2075 = vmatpush1.msra.mxu0 0.0
    %2076 = vmatprep.subr.mxu0 0.0
    %2077 = vmatpush1.msra.mxu0 0.0
    %2078 = vmatprep.subr.mxu0 0.0
    %2079 = vmatpush1.msra.mxu0 0.0
    %2080 = vmatprep.subr.mxu0 0.0
    %2081 = vmatpush1.msra.mxu0 0.0
    %2082 = vmatprep.subr.mxu0 0.0
    %2083 = vmatpush1.msra.mxu0 0.0
    %2084 = vmatprep.subr.mxu0 0.0
    %2085 = vmatpush1.msra.mxu0 0.0
    %2086 = vmatprep.subr.mxu0 0.0
    %2087 = vmatpush1.msra.mxu0 0.0
    %2088 = vmatprep.subr.mxu0 0.0
    %2089 = vmatpush1.msra.mxu0 0.0
    %2090 = vmatprep.subr.mxu0 0.0
    %2091 = vmatpush1.msra.mxu0 0.0
    %2092 = vmatprep.subr.mxu0 0.0
    %2093 = vmatpush1.msra.mxu0 0.0
    %2094 = vmatprep.subr.mxu0 0.0
    %2095 = vmatpush1.msra.mxu0 0.0
    %2096 = vmatprep.subr.mxu0 0.0
    %2097 = vmatpush1.msra.mxu0 0.0
    %2098 = vmatprep.subr.mxu0 0.0
    %2099 = vmatpush1.msra.mxu0 0.0
    %2100 = vmatprep.subr.mxu0 0.0
    %2101 = vmatpush1.msra.mxu0 0.0
    %2102 = vmatprep.subr.mxu0 0.0
    %2103 = vmatpush1.msra.mxu0 0.0
    %2104 = vmatprep.subr.mxu0 0.0
    %2105 = vmatpush1.msra.mxu0 0.0
    %2106 = vmatprep.subr.mxu0 0.0
    %2107 = vmatpush1.msra.mxu0 0.0
    %2108 = vmatprep.mubr.f32.mxu0 0.0
    %2109 = vmatmul.mubr.f32.gmra.mrb[0].mxu0 %v2033
    %v2110 = vpop.f32.mrb[0].mxu0
    %v2111 = vadd.f32 %v2019, %v2110
    %v2112 = vpop.f32.mrb[0].mxu0
    %2113 = vmatprep.mubr.f32.mxu0 0.0
    %2114 = vmatmul.mubr.f32.gmra.mrb[0].mxu0 %v2036
    %v2115 = vpop.f32.mrb[0].mxu0
    %v2116 = vadd.f32 %v2024, %v2115
    %v2117 = vpop.f32.mrb[0].mxu0
    %2118 = vmatprep.mubr.f32.mxu0 0.0
    %2119 = vmatmul.mubr.f32.gmra.mrb[0].mxu0 %v2039
    %v2120 = vpop.f32.mrb[0].mxu0
    %v2121 = vadd.f32 %v2029, %v2120
    %v2122 = vpop.f32.mrb[0].mxu0
    %2123 = vdwg.mxu0
    %v2124 = vtanh.pop %v2111
    %v2125 = vtanh.pop %v2116
    %v2126 = vtanh.pop %v2121
    %v2127 = vld [vmem:[%s1 + $0x108] sm:$0x1f]
    %v2128 = vld [vmem:[%s2 + $0x2e8] sm:$0x1f]
    %2130 = vset.pattern.permute.xlu0 0
    %2131 = vperm.xlu0 %2130, %v2128
    %v2132 = vpop.permute.xlu0 %2131
    %v2135 = vsel %vm176, %v2127, 0
    %v2138 = vsel %vm180, %v2126, 0
    %2140 = vmatprep.subr.mxu0 0.0
    %2141 = vmatpush1.msra.mxu0 %v2124
    %2142 = vmatprep.subr.mxu0 0.0
    %2143 = vmatpush1.msra.mxu0 %v2125
    %2144 = vmatprep.subr.mxu0 0.0
    %2145 = vmatpush1.msra.mxu0 %v2138
    %2146 = vmatprep.subr.mxu0 0.0
    %2147 = vmatpush1.msra.mxu0 0.0
    %2148 = vmatprep.subr.mxu0 0.0
    %2149 = vmatpush1.msra.mxu0 0.0
    %2150 = vmatprep.subr.mxu0 0.0
    %2151 = vmatpush1.msra.mxu0 0.0
    %2152 = vmatprep.subr.mxu0 0.0
    %2153 = vmatpush1.msra.mxu0 0.0
    %2154 = vmatprep.subr.mxu0 0.0
    %2155 = vmatpush1.msra.mxu0 0.0
    %2156 = vmatprep.subr.mxu0 0.0
    %2157 = vmatpush1.msra.mxu0 0.0
    %2158 = vmatprep.subr.mxu0 0.0
    %2159 = vmatpush1.msra.mxu0 0.0
    %2160 = vmatprep.subr.mxu0 0.0
    %2161 = vmatpush1.msra.mxu0 0.0
    %2162 = vmatprep.subr.mxu0 0.0
    %2163 = vmatpush1.msra.mxu0 0.0
    %2164 = vmatprep.subr.mxu0 0.0
    %2165 = vmatpush1.msra.mxu0 0.0
    %2166 = vmatprep.subr.mxu0 0.0
    %2167 = vmatpush1.msra.mxu0 0.0
    %2168 = vmatprep.subr.mxu0 0.0
    %2169 = vmatpush1.msra.mxu0 0.0
    %2170 = vmatprep.subr.mxu0 0.0
    %2171 = vmatpush1.msra.mxu0 0.0
    %2172 = vmatprep.subr.mxu0 0.0
    %2173 = vmatpush1.msra.mxu0 0.0
    %2174 = vmatprep.subr.mxu0 0.0
    %2175 = vmatpush1.msra.mxu0 0.0
    %2176 = vmatprep.subr.mxu0 0.0
    %2177 = vmatpush1.msra.mxu0 0.0
    %2178 = vmatprep.subr.mxu0 0.0
    %2179 = vmatpush1.msra.mxu0 0.0
    %2180 = vmatprep.subr.mxu0 0.0
    %2181 = vmatpush1.msra.mxu0 0.0
    %2182 = vmatprep.subr.mxu0 0.0
    %2183 = vmatpush1.msra.mxu0 0.0
    %2184 = vmatprep.subr.mxu0 0.0
    %2185 = vmatpush1.msra.mxu0 0.0
    %2186 = vmatprep.subr.mxu0 0.0
    %2187 = vmatpush1.msra.mxu0 0.0
    %2188 = vmatprep.subr.mxu0 0.0
    %2189 = vmatpush1.msra.mxu0 0.0
    %2190 = vmatprep.subr.mxu0 0.0
    %2191 = vmatpush1.msra.mxu0 0.0
    %2192 = vmatprep.subr.mxu0 0.0
    %2193 = vmatpush1.msra.mxu0 0.0
    %2194 = vmatprep.subr.mxu0 0.0
    %2195 = vmatpush1.msra.mxu0 0.0
    %2196 = vmatprep.subr.mxu0 0.0
    %2197 = vmatpush1.msra.mxu0 0.0
    %2198 = vmatprep.subr.mxu0 0.0
    %2199 = vmatpush1.msra.mxu0 0.0
    %2200 = vmatprep.subr.mxu0 0.0
    %2201 = vmatpush1.msra.mxu0 0.0
    %2202 = vmatprep.subr.mxu0 0.0
    %2203 = vmatpush1.msra.mxu0 0.0
    %2204 = vmatprep.mubr.f32.mxu0 0.0
    %2205 = vmatmul.mubr.f32.gmra.mrb[0].mxu0 %v2135
    %v2206 = vpop.f32.mrb[0].mxu0
    %v2207 = vadd.f32 %v2132, %v2206
    %v2208 = vpop.f32.mrb[0].mxu0
    %2209 = vdwg.mxu0
    %2210 = vst [vmem:[#allocation2 + $0x1f] sm:$0x1f] %v2207
    %v2211 = vld [vmem:[#allocation2] sm:$0xff]
    %v2212 = vld [vmem:[#allocation2 + $0x8] sm:$0xff]
    %v2213 = vld [vmem:[#allocation2 + $0x10] sm:$0xff]
    %v2214 = vld [vmem:[#allocation2 + $0x18] sm:$0xff]
    %v2215 = vld [vmem:[#allocation2 + $0x20] sm:$0xf]
    %v2216 = vld [vmem:[%s2 + $0x2f0] sm:$0xff]
    %v2217 = vld [vmem:[%s2 + $0x2f8] sm:$0xff]
    %v2218 = vld [vmem:[%s2 + $0x300] sm:$0xff]
    %v2219 = vld [vmem:[%s2 + $0x308] sm:$0xff]
    %v2220 = vld [vmem:[%s2 + $0x310] sm:$0xf]
    %2222 = vset.pattern.permute.xlu0 0
    %2223 = vperm.xlu0 %2222, %v2216
    %v2224 = vpop.permute.xlu0 %2223
    %2227 = vset.pattern.permute.xlu0 0
    %2228 = vperm.xlu0 %2227, %v2217
    %v2229 = vpop.permute.xlu0 %2228
    %2232 = vset.pattern.permute.xlu0 0
    %2233 = vperm.xlu0 %2232, %v2218
    %v2234 = vpop.permute.xlu0 %2233
    %2237 = vset.pattern.permute.xlu0 0
    %2238 = vperm.xlu0 %2237, %v2219
    %v2239 = vpop.permute.xlu0 %2238
    %2242 = vset.pattern.permute.xlu0 0
    %2243 = vperm.xlu0 %2242, %v2220
    %v2244 = vpop.permute.xlu0 %2243
    %v2246 = vmul.f32 %v2211, %v2224
    %v2247 = vmul.f32 %v2212, %v2229
    %v2248 = vmul.f32 %v2213, %v2234
    %v2249 = vmul.f32 %v2214, %v2239
    %v2250 = vmul.f32 %v2215, %v2244
    %v2251 = vld [vmem:[%s2 + $0x318] sm:$0xff]
    %v2252 = vld [vmem:[%s2 + $0x320] sm:$0xff]
    %v2253 = vld [vmem:[%s2 + $0x328] sm:$0xff]
    %v2254 = vld [vmem:[%s2 + $0x330] sm:$0xff]
    %v2255 = vld [vmem:[%s2 + $0x338] sm:$0xf]
    %2257 = vset.pattern.permute.xlu0 0
    %2258 = vperm.xlu0 %2257, %v2251
    %v2259 = vpop.permute.xlu0 %2258
    %2262 = vset.pattern.permute.xlu0 0
    %2263 = vperm.xlu0 %2262, %v2252
    %v2264 = vpop.permute.xlu0 %2263
    %2267 = vset.pattern.permute.xlu0 0
    %2268 = vperm.xlu0 %2267, %v2253
    %v2269 = vpop.permute.xlu0 %2268
    %2272 = vset.pattern.permute.xlu0 0
    %2273 = vperm.xlu0 %2272, %v2254
    %v2274 = vpop.permute.xlu0 %2273
    %2277 = vset.pattern.permute.xlu0 0
    %2278 = vperm.xlu0 %2277, %v2255
    %v2279 = vpop.permute.xlu0 %2278
    %v2281 = vadd.f32 %v2246, %v2259
    %v2282 = vadd.f32 %v2247, %v2264
    %v2283 = vadd.f32 %v2248, %v2269
    %v2284 = vadd.f32 %v2249, %v2274
    %v2285 = vadd.f32 %v2250, %v2279
    %v2286 = vtanh.pop %v2281
    %v2287 = vtanh.pop %v2282
    %v2288 = vtanh.pop %v2283
    %v2289 = vtanh.pop %v2284
    %v2290 = vtanh.pop %v2285
    %v2291 = vld [vmem:[%s1 + $0x110] sm:$0xff]
    %v2292 = vld [vmem:[%s1 + $0x118] sm:$0xff]
    %v2293 = vld [vmem:[%s1 + $0x120] sm:$0xf]
    %v2294 = vld [vmem:[%s2 + $0x340] sm:$0xff]
    %v2295 = vld [vmem:[%s2 + $0x348] sm:$0xff]
    %v2296 = vld [vmem:[%s2 + $0x350] sm:$0xf]
    %2298 = vset.pattern.permute.xlu0 0
    %2299 = vperm.xlu0 %2298, %v2294
    %v2300 = vpop.permute.xlu0 %2299
    %2303 = vset.pattern.permute.xlu0 0
    %2304 = vperm.xlu0 %2303, %v2295
    %v2305 = vpop.permute.xlu0 %2304
    %2308 = vset.pattern.permute.xlu0 0
    %2309 = vperm.xlu0 %2308, %v2296
    %v2310 = vpop.permute.xlu0 %2309
    %vm2312 = vcmask 293888
    %v2314 = vsel %vm2312, %v2291, 0
    %v2317 = vsel %vm2312, %v2292, 0
    %v2320 = vsel %vm2312, %v2293, 0
    %v2323 = vsel %vm180, %v2290, 0
    %2325 = vmatprep.subr.mxu0 0.0
    %2326 = vmatpush1.msra.mxu0 %v2286
    %2327 = vmatprep.subr.mxu0 0.0
    %2328 = vmatpush1.msra.mxu0 %v2287
    %2329 = vmatprep.subr.mxu0 0.0
    %2330 = vmatpush1.msra.mxu0 %v2288
    %2331 = vmatprep.subr.mxu0 0.0
    %2332 = vmatpush1.msra.mxu0 %v2289
    %2333 = vmatprep.subr.mxu0 0.0
    %2334 = vmatpush1.msra.mxu0 %v2323
    %2335 = vmatprep.subr.mxu0 0.0
    %2336 = vmatpush1.msra.mxu0 0.0
    %2337 = vmatprep.subr.mxu0 0.0
    %2338 = vmatpush1.msra.mxu0 0.0
    %2339 = vmatprep.subr.mxu0 0.0
    %2340 = vmatpush1.msra.mxu0 0.0
    %2341 = vmatprep.subr.mxu0 0.0
    %2342 = vmatpush1.msra.mxu0 0.0
    %2343 = vmatprep.subr.mxu0 0.0
    %2344 = vmatpush1.msra.mxu0 0.0
    %2345 = vmatprep.subr.mxu0 0.0
    %2346 = vmatpush1.msra.mxu0 0.0
    %2347 = vmatprep.subr.mxu0 0.0
    %2348 = vmatpush1.msra.mxu0 0.0
    %2349 = vmatprep.subr.mxu0 0.0
    %2350 = vmatpush1.msra.mxu0 0.0
    %2351 = vmatprep.subr.mxu0 0.0
    %2352 = vmatpush1.msra.mxu0 0.0
    %2353 = vmatprep.subr.mxu0 0.0
    %2354 = vmatpush1.msra.mxu0 0.0
    %2355 = vmatprep.subr.mxu0 0.0
    %2356 = vmatpush1.msra.mxu0 0.0
    %2357 = vmatprep.subr.mxu0 0.0
    %2358 = vmatpush1.msra.mxu0 0.0
    %2359 = vmatprep.subr.mxu0 0.0
    %2360 = vmatpush1.msra.mxu0 0.0
    %2361 = vmatprep.subr.mxu0 0.0
    %2362 = vmatpush1.msra.mxu0 0.0
    %2363 = vmatprep.subr.mxu0 0.0
    %2364 = vmatpush1.msra.mxu0 0.0
    %2365 = vmatprep.subr.mxu0 0.0
    %2366 = vmatpush1.msra.mxu0 0.0
    %2367 = vmatprep.subr.mxu0 0.0
    %2368 = vmatpush1.msra.mxu0 0.0
    %2369 = vmatprep.subr.mxu0 0.0
    %2370 = vmatpush1.msra.mxu0 0.0
    %2371 = vmatprep.subr.mxu0 0.0
    %2372 = vmatpush1.msra.mxu0 0.0
    %2373 = vmatprep.subr.mxu0 0.0
    %2374 = vmatpush1.msra.mxu0 0.0
    %2375 = vmatprep.subr.mxu0 0.0
    %2376 = vmatpush1.msra.mxu0 0.0
    %2377 = vmatprep.subr.mxu0 0.0
    %2378 = vmatpush1.msra.mxu0 0.0
    %2379 = vmatprep.subr.mxu0 0.0
    %2380 = vmatpush1.msra.mxu0 0.0
    %2381 = vmatprep.subr.mxu0 0.0
    %2382 = vmatpush1.msra.mxu0 0.0
    %2383 = vmatprep.subr.mxu0 0.0
    %2384 = vmatpush1.msra.mxu0 0.0
    %2385 = vmatprep.subr.mxu0 0.0
    %2386 = vmatpush1.msra.mxu0 0.0
    %2387 = vmatprep.subr.mxu0 0.0
    %2388 = vmatpush1.msra.mxu0 0.0
    %2389 = vmatprep.mubr.f32.mxu0 0.0
    %2390 = vmatmul.mubr.f32.gmra.mrb[0].mxu0 %v2314
    %v2391 = vpop.f32.mrb[0].mxu0
    %v2392 = vadd.f32 %v2300, %v2391
    %v2393 = vpop.f32.mrb[0].mxu0
    %2394 = vmatprep.mubr.f32.mxu0 0.0
    %2395 = vmatmul.mubr.f32.gmra.mrb[0].mxu0 %v2317
    %v2396 = vpop.f32.mrb[0].mxu0
    %v2397 = vadd.f32 %v2305, %v2396
    %v2398 = vpop.f32.mrb[0].mxu0
    %2399 = vmatprep.mubr.f32.mxu0 0.0
    %2400 = vmatmul.mubr.f32.gmra.mrb[0].mxu0 %v2320
    %v2401 = vpop.f32.mrb[0].mxu0
    %v2402 = vadd.f32 %v2310, %v2401
    %v2403 = vpop.f32.mrb[0].mxu0
    %2404 = vdwg.mxu0
    %v2405 = vtanh.pop %v2392
    %v2406 = vtanh.pop %v2397
    %v2407 = vtanh.pop %v2402
    %v2408 = vld [vmem:[%s1 + $0x128] sm:$0x1f]
    %v2409 = vld [vmem:[%s2 + $0x358] sm:$0x1f]
    %2411 = vset.pattern.permute.xlu0 0
    %2412 = vperm.xlu0 %2411, %v2409
    %v2413 = vpop.permute.xlu0 %2412
    %v2416 = vsel %vm176, %v2408, 0
    %v2419 = vsel %vm180, %v2407, 0
    %2421 = vmatprep.subr.mxu0 0.0
    %2422 = vmatpush1.msra.mxu0 %v2405
    %2423 = vmatprep.subr.mxu0 0.0
    %2424 = vmatpush1.msra.mxu0 %v2406
    %2425 = vmatprep.subr.mxu0 0.0
    %2426 = vmatpush1.msra.mxu0 %v2419
    %2427 = vmatprep.subr.mxu0 0.0
    %2428 = vmatpush1.msra.mxu0 0.0
    %2429 = vmatprep.subr.mxu0 0.0
    %2430 = vmatpush1.msra.mxu0 0.0
    %2431 = vmatprep.subr.mxu0 0.0
    %2432 = vmatpush1.msra.mxu0 0.0
    %2433 = vmatprep.subr.mxu0 0.0
    %2434 = vmatpush1.msra.mxu0 0.0
    %2435 = vmatprep.subr.mxu0 0.0
    %2436 = vmatpush1.msra.mxu0 0.0
    %2437 = vmatprep.subr.mxu0 0.0
    %2438 = vmatpush1.msra.mxu0 0.0
    %2439 = vmatprep.subr.mxu0 0.0
    %2440 = vmatpush1.msra.mxu0 0.0
    %2441 = vmatprep.subr.mxu0 0.0
    %2442 = vmatpush1.msra.mxu0 0.0
    %2443 = vmatprep.subr.mxu0 0.0
    %2444 = vmatpush1.msra.mxu0 0.0
    %2445 = vmatprep.subr.mxu0 0.0
    %2446 = vmatpush1.msra.mxu0 0.0
    %2447 = vmatprep.subr.mxu0 0.0
    %2448 = vmatpush1.msra.mxu0 0.0
    %2449 = vmatprep.subr.mxu0 0.0
    %2450 = vmatpush1.msra.mxu0 0.0
    %2451 = vmatprep.subr.mxu0 0.0
    %2452 = vmatpush1.msra.mxu0 0.0
    %2453 = vmatprep.subr.mxu0 0.0
    %2454 = vmatpush1.msra.mxu0 0.0
    %2455 = vmatprep.subr.mxu0 0.0
    %2456 = vmatpush1.msra.mxu0 0.0
    %2457 = vmatprep.subr.mxu0 0.0
    %2458 = vmatpush1.msra.mxu0 0.0
    %2459 = vmatprep.subr.mxu0 0.0
    %2460 = vmatpush1.msra.mxu0 0.0
    %2461 = vmatprep.subr.mxu0 0.0
    %2462 = vmatpush1.msra.mxu0 0.0
    %2463 = vmatprep.subr.mxu0 0.0
    %2464 = vmatpush1.msra.mxu0 0.0
    %2465 = vmatprep.subr.mxu0 0.0
    %2466 = vmatpush1.msra.mxu0 0.0
    %2467 = vmatprep.subr.mxu0 0.0
    %2468 = vmatpush1.msra.mxu0 0.0
    %2469 = vmatprep.subr.mxu0 0.0
    %2470 = vmatpush1.msra.mxu0 0.0
    %2471 = vmatprep.subr.mxu0 0.0
    %2472 = vmatpush1.msra.mxu0 0.0
    %2473 = vmatprep.subr.mxu0 0.0
    %2474 = vmatpush1.msra.mxu0 0.0
    %2475 = vmatprep.subr.mxu0 0.0
    %2476 = vmatpush1.msra.mxu0 0.0
    %2477 = vmatprep.subr.mxu0 0.0
    %2478 = vmatpush1.msra.mxu0 0.0
    %2479 = vmatprep.subr.mxu0 0.0
    %2480 = vmatpush1.msra.mxu0 0.0
    %2481 = vmatprep.subr.mxu0 0.0
    %2482 = vmatpush1.msra.mxu0 0.0
    %2483 = vmatprep.subr.mxu0 0.0
    %2484 = vmatpush1.msra.mxu0 0.0
    %2485 = vmatprep.mubr.f32.mxu0 0.0
    %2486 = vmatmul.mubr.f32.gmra.mrb[0].mxu0 %v2416
    %v2487 = vpop.f32.mrb[0].mxu0
    %v2488 = vadd.f32 %v2413, %v2487
    %v2489 = vpop.f32.mrb[0].mxu0
    %2490 = vdwg.mxu0
    %2491 = vst [vmem:[#allocation2 + $0x24] sm:$0x1f] %v2488
    %v2492 = vld [vmem:[#allocation2] sm:$0xff]
    %v2493 = vld [vmem:[#allocation2 + $0x8] sm:$0xff]
    %v2494 = vld [vmem:[#allocation2 + $0x10] sm:$0xff]
    %v2495 = vld [vmem:[#allocation2 + $0x18] sm:$0xff]
    %v2496 = vld [vmem:[#allocation2 + $0x20] sm:$0xff]
    %v2497 = vld [vmem:[#allocation2 + $0x28] sm:$0x1]
    %v2498 = vld [vmem:[%s2 + $0x360] sm:$0xff]
    %v2499 = vld [vmem:[%s2 + $0x368] sm:$0xff]
    %v2500 = vld [vmem:[%s2 + $0x370] sm:$0xff]
    %v2501 = vld [vmem:[%s2 + $0x378] sm:$0xff]
    %v2502 = vld [vmem:[%s2 + $0x380] sm:$0xff]
    %v2503 = vld [vmem:[%s2 + $0x388] sm:$0x1]
    %2505 = vset.pattern.permute.xlu0 0
    %2506 = vperm.xlu0 %2505, %v2498
    %v2507 = vpop.permute.xlu0 %2506
    %2510 = vset.pattern.permute.xlu0 0
    %2511 = vperm.xlu0 %2510, %v2499
    %v2512 = vpop.permute.xlu0 %2511
    %2515 = vset.pattern.permute.xlu0 0
    %2516 = vperm.xlu0 %2515, %v2500
    %v2517 = vpop.permute.xlu0 %2516
    %2520 = vset.pattern.permute.xlu0 0
    %2521 = vperm.xlu0 %2520, %v2501
    %v2522 = vpop.permute.xlu0 %2521
    %2525 = vset.pattern.permute.xlu0 0
    %2526 = vperm.xlu0 %2525, %v2502
    %v2527 = vpop.permute.xlu0 %2526
    %2530 = vset.pattern.permute.xlu0 0
    %2531 = vperm.xlu0 %2530, %v2503
    %v2532 = vpop.permute.xlu0 %2531
    %v2534 = vmul.f32 %v2492, %v2507
    %v2535 = vmul.f32 %v2493, %v2512
    %v2536 = vmul.f32 %v2494, %v2517
    %v2537 = vmul.f32 %v2495, %v2522
    %v2538 = vmul.f32 %v2496, %v2527
    %v2539 = vmul.f32 %v2497, %v2532
    %v2540 = vld [vmem:[%s2 + $0x390] sm:$0xff]
    %v2541 = vld [vmem:[%s2 + $0x398] sm:$0xff]
    %v2542 = vld [vmem:[%s2 + $0x3a0] sm:$0xff]
    %v2543 = vld [vmem:[%s2 + $0x3a8] sm:$0xff]
    %v2544 = vld [vmem:[%s2 + $0x3b0] sm:$0xff]
    %v2545 = vld [vmem:[%s2 + $0x3b8] sm:$0x1]
    %2547 = vset.pattern.permute.xlu0 0
    %2548 = vperm.xlu0 %2547, %v2540
    %v2549 = vpop.permute.xlu0 %2548
    %2552 = vset.pattern.permute.xlu0 0
    %2553 = vperm.xlu0 %2552, %v2541
    %v2554 = vpop.permute.xlu0 %2553
    %2557 = vset.pattern.permute.xlu0 0
    %2558 = vperm.xlu0 %2557, %v2542
    %v2559 = vpop.permute.xlu0 %2558
    %2562 = vset.pattern.permute.xlu0 0
    %2563 = vperm.xlu0 %2562, %v2543
    %v2564 = vpop.permute.xlu0 %2563
    %2567 = vset.pattern.permute.xlu0 0
    %2568 = vperm.xlu0 %2567, %v2544
    %v2569 = vpop.permute.xlu0 %2568
    %2572 = vset.pattern.permute.xlu0 0
    %2573 = vperm.xlu0 %2572, %v2545
    %v2574 = vpop.permute.xlu0 %2573
    %v2576 = vadd.f32 %v2534, %v2549
    %v2577 = vadd.f32 %v2535, %v2554
    %v2578 = vadd.f32 %v2536, %v2559
    %v2579 = vadd.f32 %v2537, %v2564
    %v2580 = vadd.f32 %v2538, %v2569
    %v2581 = vadd.f32 %v2539, %v2574
    %v2582 = vtanh.pop %v2576
    %v2583 = vtanh.pop %v2577
    %v2584 = vtanh.pop %v2578
    %v2585 = vtanh.pop %v2579
    %v2586 = vtanh.pop %v2580
    %v2587 = vtanh.pop %v2581
    %v2588 = vld [vmem:[%s1 + $0x130] sm:$0xff]
    %v2589 = vld [vmem:[%s1 + $0x138] sm:$0xff]
    %v2590 = vld [vmem:[%s1 + $0x140] sm:$0xf]
    %v2591 = vld [vmem:[%s2 + $0x3c0] sm:$0xff]
    %v2592 = vld [vmem:[%s2 + $0x3c8] sm:$0xff]
    %v2593 = vld [vmem:[%s2 + $0x3d0] sm:$0xf]
    %2595 = vset.pattern.permute.xlu0 0
    %2596 = vperm.xlu0 %2595, %v2591
    %v2597 = vpop.permute.xlu0 %2596
    %2600 = vset.pattern.permute.xlu0 0
    %2601 = vperm.xlu0 %2600, %v2592
    %v2602 = vpop.permute.xlu0 %2601
    %2605 = vset.pattern.permute.xlu0 0
    %2606 = vperm.xlu0 %2605, %v2593
    %v2607 = vpop.permute.xlu0 %2606
    %vm2609 = vcmask 334848
    %v2611 = vsel %vm2609, %v2588, 0
    %v2614 = vsel %vm2609, %v2589, 0
    %v2617 = vsel %vm2609, %v2590, 0
    %v2620 = vsel %vm1121, %v2587, 0
    %2622 = vmatprep.subr.mxu0 0.0
    %2623 = vmatpush1.msra.mxu0 %v2582
    %2624 = vmatprep.subr.mxu0 0.0
    %2625 = vmatpush1.msra.mxu0 %v2583
    %2626 = vmatprep.subr.mxu0 0.0
    %2627 = vmatpush1.msra.mxu0 %v2584
    %2628 = vmatprep.subr.mxu0 0.0
    %2629 = vmatpush1.msra.mxu0 %v2585
    %2630 = vmatprep.subr.mxu0 0.0
    %2631 = vmatpush1.msra.mxu0 %v2586
    %2632 = vmatprep.subr.mxu0 0.0
    %2633 = vmatpush1.msra.mxu0 %v2620
    %2634 = vmatprep.subr.mxu0 0.0
    %2635 = vmatpush1.msra.mxu0 0.0
    %2636 = vmatprep.subr.mxu0 0.0
    %2637 = vmatpush1.msra.mxu0 0.0
    %2638 = vmatprep.subr.mxu0 0.0
    %2639 = vmatpush1.msra.mxu0 0.0
    %2640 = vmatprep.subr.mxu0 0.0
    %2641 = vmatpush1.msra.mxu0 0.0
    %2642 = vmatprep.subr.mxu0 0.0
    %2643 = vmatpush1.msra.mxu0 0.0
    %2644 = vmatprep.subr.mxu0 0.0
    %2645 = vmatpush1.msra.mxu0 0.0
    %2646 = vmatprep.subr.mxu0 0.0
    %2647 = vmatpush1.msra.mxu0 0.0
    %2648 = vmatprep.subr.mxu0 0.0
    %2649 = vmatpush1.msra.mxu0 0.0
    %2650 = vmatprep.subr.mxu0 0.0
    %2651 = vmatpush1.msra.mxu0 0.0
    %2652 = vmatprep.subr.mxu0 0.0
    %2653 = vmatpush1.msra.mxu0 0.0
    %2654 = vmatprep.subr.mxu0 0.0
    %2655 = vmatpush1.msra.mxu0 0.0
    %2656 = vmatprep.subr.mxu0 0.0
    %2657 = vmatpush1.msra.mxu0 0.0
    %2658 = vmatprep.subr.mxu0 0.0
    %2659 = vmatpush1.msra.mxu0 0.0
    %2660 = vmatprep.subr.mxu0 0.0
    %2661 = vmatpush1.msra.mxu0 0.0
    %2662 = vmatprep.subr.mxu0 0.0
    %2663 = vmatpush1.msra.mxu0 0.0
    %2664 = vmatprep.subr.mxu0 0.0
    %2665 = vmatpush1.msra.mxu0 0.0
    %2666 = vmatprep.subr.mxu0 0.0
    %2667 = vmatpush1.msra.mxu0 0.0
    %2668 = vmatprep.subr.mxu0 0.0
    %2669 = vmatpush1.msra.mxu0 0.0
    %2670 = vmatprep.subr.mxu0 0.0
    %2671 = vmatpush1.msra.mxu0 0.0
    %2672 = vmatprep.subr.mxu0 0.0
    %2673 = vmatpush1.msra.mxu0 0.0
    %2674 = vmatprep.subr.mxu0 0.0
    %2675 = vmatpush1.msra.mxu0 0.0
    %2676 = vmatprep.subr.mxu0 0.0
    %2677 = vmatpush1.msra.mxu0 0.0
    %2678 = vmatprep.subr.mxu0 0.0
    %2679 = vmatpush1.msra.mxu0 0.0
    %2680 = vmatprep.subr.mxu0 0.0
    %2681 = vmatpush1.msra.mxu0 0.0
    %2682 = vmatprep.subr.mxu0 0.0
    %2683 = vmatpush1.msra.mxu0 0.0
    %2684 = vmatprep.subr.mxu0 0.0
    %2685 = vmatpush1.msra.mxu0 0.0
    %2686 = vmatprep.mubr.f32.mxu0 0.0
    %2687 = vmatmul.mubr.f32.gmra.mrb[0].mxu0 %v2611
    %v2688 = vpop.f32.mrb[0].mxu0
    %v2689 = vadd.f32 %v2597, %v2688
    %v2690 = vpop.f32.mrb[0].mxu0
    %2691 = vmatprep.mubr.f32.mxu0 0.0
    %2692 = vmatmul.mubr.f32.gmra.mrb[0].mxu0 %v2614
    %v2693 = vpop.f32.mrb[0].mxu0
    %v2694 = vadd.f32 %v2602, %v2693
    %v2695 = vpop.f32.mrb[0].mxu0
    %2696 = vmatprep.mubr.f32.mxu0 0.0
    %2697 = vmatmul.mubr.f32.gmra.mrb[0].mxu0 %v2617
    %v2698 = vpop.f32.mrb[0].mxu0
    %v2699 = vadd.f32 %v2607, %v2698
    %v2700 = vpop.f32.mrb[0].mxu0
    %2701 = vdwg.mxu0
    %v2702 = vtanh.pop %v2689
    %v2703 = vtanh.pop %v2694
    %v2704 = vtanh.pop %v2699
    %v2705 = vld [vmem:[%s1 + $0x148] sm:$0x1f]
    %v2706 = vld [vmem:[%s2 + $0x3d8] sm:$0x1f]
    %2708 = vset.pattern.permute.xlu0 0
    %2709 = vperm.xlu0 %2708, %v2706
    %v2710 = vpop.permute.xlu0 %2709
    %v2713 = vsel %vm176, %v2705, 0
    %v2716 = vsel %vm180, %v2704, 0
    %2718 = vmatprep.subr.mxu0 0.0
    %2719 = vmatpush1.msra.mxu0 %v2702
    %2720 = vmatprep.subr.mxu0 0.0
    %2721 = vmatpush1.msra.mxu0 %v2703
    %2722 = vmatprep.subr.mxu0 0.0
    %2723 = vmatpush1.msra.mxu0 %v2716
    %2724 = vmatprep.subr.mxu0 0.0
    %2725 = vmatpush1.msra.mxu0 0.0
    %2726 = vmatprep.subr.mxu0 0.0
    %2727 = vmatpush1.msra.mxu0 0.0
    %2728 = vmatprep.subr.mxu0 0.0
    %2729 = vmatpush1.msra.mxu0 0.0
    %2730 = vmatprep.subr.mxu0 0.0
    %2731 = vmatpush1.msra.mxu0 0.0
    %2732 = vmatprep.subr.mxu0 0.0
    %2733 = vmatpush1.msra.mxu0 0.0
    %2734 = vmatprep.subr.mxu0 0.0
    %2735 = vmatpush1.msra.mxu0 0.0
    %2736 = vmatprep.subr.mxu0 0.0
    %2737 = vmatpush1.msra.mxu0 0.0
    %2738 = vmatprep.subr.mxu0 0.0
    %2739 = vmatpush1.msra.mxu0 0.0
    %2740 = vmatprep.subr.mxu0 0.0
    %2741 = vmatpush1.msra.mxu0 0.0
    %2742 = vmatprep.subr.mxu0 0.0
    %2743 = vmatpush1.msra.mxu0 0.0
    %2744 = vmatprep.subr.mxu0 0.0
    %2745 = vmatpush1.msra.mxu0 0.0
    %2746 = vmatprep.subr.mxu0 0.0
    %2747 = vmatpush1.msra.mxu0 0.0
    %2748 = vmatprep.subr.mxu0 0.0
    %2749 = vmatpush1.msra.mxu0 0.0
    %2750 = vmatprep.subr.mxu0 0.0
    %2751 = vmatpush1.msra.mxu0 0.0
    %2752 = vmatprep.subr.mxu0 0.0
    %2753 = vmatpush1.msra.mxu0 0.0
    %2754 = vmatprep.subr.mxu0 0.0
    %2755 = vmatpush1.msra.mxu0 0.0
    %2756 = vmatprep.subr.mxu0 0.0
    %2757 = vmatpush1.msra.mxu0 0.0
    %2758 = vmatprep.subr.mxu0 0.0
    %2759 = vmatpush1.msra.mxu0 0.0
    %2760 = vmatprep.subr.mxu0 0.0
    %2761 = vmatpush1.msra.mxu0 0.0
    %2762 = vmatprep.subr.mxu0 0.0
    %2763 = vmatpush1.msra.mxu0 0.0
    %2764 = vmatprep.subr.mxu0 0.0
    %2765 = vmatpush1.msra.mxu0 0.0
    %2766 = vmatprep.subr.mxu0 0.0
    %2767 = vmatpush1.msra.mxu0 0.0
    %2768 = vmatprep.subr.mxu0 0.0
    %2769 = vmatpush1.msra.mxu0 0.0
    %2770 = vmatprep.subr.mxu0 0.0
    %2771 = vmatpush1.msra.mxu0 0.0
    %2772 = vmatprep.subr.mxu0 0.0
    %2773 = vmatpush1.msra.mxu0 0.0
    %2774 = vmatprep.subr.mxu0 0.0
    %2775 = vmatpush1.msra.mxu0 0.0
    %2776 = vmatprep.subr.mxu0 0.0
    %2777 = vmatpush1.msra.mxu0 0.0
    %2778 = vmatprep.subr.mxu0 0.0
    %2779 = vmatpush1.msra.mxu0 0.0
    %2780 = vmatprep.subr.mxu0 0.0
    %2781 = vmatpush1.msra.mxu0 0.0
    %2782 = vmatprep.mubr.f32.mxu0 0.0
    %2783 = vmatmul.mubr.f32.gmra.mrb[0].mxu0 %v2713
    %v2784 = vpop.f32.mrb[0].mxu0
    %v2785 = vadd.f32 %v2710, %v2784
    %v2786 = vpop.f32.mrb[0].mxu0
    %2787 = vdwg.mxu0
    %2788 = vst [vmem:[#allocation2 + $0x29] sm:$0x1f] %v2785
    %v2789 = vld [vmem:[#allocation2] sm:$0xff]
    %v2790 = vld [vmem:[#allocation2 + $0x8] sm:$0xff]
    %v2791 = vld [vmem:[#allocation2 + $0x10] sm:$0xff]
    %v2792 = vld [vmem:[#allocation2 + $0x18] sm:$0xff]
    %v2793 = vld [vmem:[#allocation2 + $0x20] sm:$0xff]
    %v2794 = vld [vmem:[#allocation2 + $0x28] sm:$0x3f]
    %v2795 = vld [vmem:[%s2 + $0x3e0] sm:$0xff]
    %v2796 = vld [vmem:[%s2 + $0x3e8] sm:$0xff]
    %v2797 = vld [vmem:[%s2 + $0x3f0] sm:$0xff]
    %v2798 = vld [vmem:[%s2 + $0x3f8] sm:$0xff]
    %v2799 = vld [vmem:[%s2 + $0x400] sm:$0xff]
    %v2800 = vld [vmem:[%s2 + $0x408] sm:$0x3f]
    %2802 = vset.pattern.permute.xlu0 0
    %2803 = vperm.xlu0 %2802, %v2795
    %v2804 = vpop.permute.xlu0 %2803
    %2807 = vset.pattern.permute.xlu0 0
    %2808 = vperm.xlu0 %2807, %v2796
    %v2809 = vpop.permute.xlu0 %2808
    %2812 = vset.pattern.permute.xlu0 0
    %2813 = vperm.xlu0 %2812, %v2797
    %v2814 = vpop.permute.xlu0 %2813
    %2817 = vset.pattern.permute.xlu0 0
    %2818 = vperm.xlu0 %2817, %v2798
    %v2819 = vpop.permute.xlu0 %2818
    %2822 = vset.pattern.permute.xlu0 0
    %2823 = vperm.xlu0 %2822, %v2799
    %v2824 = vpop.permute.xlu0 %2823
    %2827 = vset.pattern.permute.xlu0 0
    %2828 = vperm.xlu0 %2827, %v2800
    %v2829 = vpop.permute.xlu0 %2828
    %v2831 = vmul.f32 %v2789, %v2804
    %v2832 = vmul.f32 %v2790, %v2809
    %v2833 = vmul.f32 %v2791, %v2814
    %v2834 = vmul.f32 %v2792, %v2819
    %v2835 = vmul.f32 %v2793, %v2824
    %v2836 = vmul.f32 %v2794, %v2829
    %v2837 = vld [vmem:[%s2 + $0x410] sm:$0xff]
    %v2838 = vld [vmem:[%s2 + $0x418] sm:$0xff]
    %v2839 = vld [vmem:[%s2 + $0x420] sm:$0xff]
    %v2840 = vld [vmem:[%s2 + $0x428] sm:$0xff]
    %v2841 = vld [vmem:[%s2 + $0x430] sm:$0xff]
    %v2842 = vld [vmem:[%s2 + $0x438] sm:$0x3f]
    %2844 = vset.pattern.permute.xlu0 0
    %2845 = vperm.xlu0 %2844, %v2837
    %v2846 = vpop.permute.xlu0 %2845
    %2849 = vset.pattern.permute.xlu0 0
    %2850 = vperm.xlu0 %2849, %v2838
    %v2851 = vpop.permute.xlu0 %2850
    %2854 = vset.pattern.permute.xlu0 0
    %2855 = vperm.xlu0 %2854, %v2839
    %v2856 = vpop.permute.xlu0 %2855
    %2859 = vset.pattern.permute.xlu0 0
    %2860 = vperm.xlu0 %2859, %v2840
    %v2861 = vpop.permute.xlu0 %2860
    %2864 = vset.pattern.permute.xlu0 0
    %2865 = vperm.xlu0 %2864, %v2841
    %v2866 = vpop.permute.xlu0 %2865
    %2869 = vset.pattern.permute.xlu0 0
    %2870 = vperm.xlu0 %2869, %v2842
    %v2871 = vpop.permute.xlu0 %2870
    %v2873 = vadd.f32 %v2831, %v2846
    %v2874 = vadd.f32 %v2832, %v2851
    %v2875 = vadd.f32 %v2833, %v2856
    %v2876 = vadd.f32 %v2834, %v2861
    %v2877 = vadd.f32 %v2835, %v2866
    %v2878 = vadd.f32 %v2836, %v2871
    %v2879 = vtanh.pop %v2873
    %v2880 = vtanh.pop %v2874
    %v2881 = vtanh.pop %v2875
    %v2882 = vtanh.pop %v2876
    %v2883 = vtanh.pop %v2877
    %v2884 = vtanh.pop %v2878
    %v2885 = vld [vmem:[%s1 + $0x150] sm:$0xff]
    %v2886 = vld [vmem:[%s1 + $0x158] sm:$0xff]
    %v2887 = vld [vmem:[%s1 + $0x160] sm:$0x7f]
    %v2888 = vld [vmem:[%s2 + $0x440] sm:$0xff]
    %v2889 = vld [vmem:[%s2 + $0x448] sm:$0xff]
    %v2890 = vld [vmem:[%s2 + $0x450] sm:$0x7f]
    %2892 = vset.pattern.permute.xlu0 0
    %2893 = vperm.xlu0 %2892, %v2888
    %v2894 = vpop.permute.xlu0 %2893
    %2897 = vset.pattern.permute.xlu0 0
    %2898 = vperm.xlu0 %2897, %v2889
    %v2899 = vpop.permute.xlu0 %2898
    %2902 = vset.pattern.permute.xlu0 0
    %2903 = vperm.xlu0 %2902, %v2890
    %v2904 = vpop.permute.xlu0 %2903
    %vm2906 = vcmask 375808
    %v2908 = vsel %vm2906, %v2885, 0
    %v2911 = vsel %vm2906, %v2886, 0
    %v2914 = vsel %vm2906, %v2887, 0
    %vm2916 = vcmask 1045504
    %v2918 = vsel %vm2916, %v2884, 0
    %2920 = vmatprep.subr.mxu0 0.0
    %2921 = vmatpush1.msra.mxu0 %v2879
    %2922 = vmatprep.subr.mxu0 0.0
    %2923 = vmatpush1.msra.mxu0 %v2880
    %2924 = vmatprep.subr.mxu0 0.0
    %2925 = vmatpush1.msra.mxu0 %v2881
    %2926 = vmatprep.subr.mxu0 0.0
    %2927 = vmatpush1.msra.mxu0 %v2882
    %2928 = vmatprep.subr.mxu0 0.0
    %2929 = vmatpush1.msra.mxu0 %v2883
    %2930 = vmatprep.subr.mxu0 0.0
    %2931 = vmatpush1.msra.mxu0 %v2918
    %2932 = vmatprep.subr.mxu0 0.0
    %2933 = vmatpush1.msra.mxu0 0.0
    %2934 = vmatprep.subr.mxu0 0.0
    %2935 = vmatpush1.msra.mxu0 0.0
    %2936 = vmatprep.subr.mxu0 0.0
    %2937 = vmatpush1.msra.mxu0 0.0
    %2938 = vmatprep.subr.mxu0 0.0
    %2939 = vmatpush1.msra.mxu0 0.0
    %2940 = vmatprep.subr.mxu0 0.0
    %2941 = vmatpush1.msra.mxu0 0.0
    %2942 = vmatprep.subr.mxu0 0.0
    %2943 = vmatpush1.msra.mxu0 0.0
    %2944 = vmatprep.subr.mxu0 0.0
    %2945 = vmatpush1.msra.mxu0 0.0
    %2946 = vmatprep.subr.mxu0 0.0
    %2947 = vmatpush1.msra.mxu0 0.0
    %2948 = vmatprep.subr.mxu0 0.0
    %2949 = vmatpush1.msra.mxu0 0.0
    %2950 = vmatprep.subr.mxu0 0.0
    %2951 = vmatpush1.msra.mxu0 0.0
    %2952 = vmatprep.subr.mxu0 0.0
    %2953 = vmatpush1.msra.mxu0 0.0
    %2954 = vmatprep.subr.mxu0 0.0
    %2955 = vmatpush1.msra.mxu0 0.0
    %2956 = vmatprep.subr.mxu0 0.0
    %2957 = vmatpush1.msra.mxu0 0.0
    %2958 = vmatprep.subr.mxu0 0.0
    %2959 = vmatpush1.msra.mxu0 0.0
    %2960 = vmatprep.subr.mxu0 0.0
    %2961 = vmatpush1.msra.mxu0 0.0
    %2962 = vmatprep.subr.mxu0 0.0
    %2963 = vmatpush1.msra.mxu0 0.0
    %2964 = vmatprep.subr.mxu0 0.0
    %2965 = vmatpush1.msra.mxu0 0.0
    %2966 = vmatprep.subr.mxu0 0.0
    %2967 = vmatpush1.msra.mxu0 0.0
    %2968 = vmatprep.subr.mxu0 0.0
    %2969 = vmatpush1.msra.mxu0 0.0
    %2970 = vmatprep.subr.mxu0 0.0
    %2971 = vmatpush1.msra.mxu0 0.0
    %2972 = vmatprep.subr.mxu0 0.0
    %2973 = vmatpush1.msra.mxu0 0.0
    %2974 = vmatprep.subr.mxu0 0.0
    %2975 = vmatpush1.msra.mxu0 0.0
    %2976 = vmatprep.subr.mxu0 0.0
    %2977 = vmatpush1.msra.mxu0 0.0
    %2978 = vmatprep.subr.mxu0 0.0
    %2979 = vmatpush1.msra.mxu0 0.0
    %2980 = vmatprep.subr.mxu0 0.0
    %2981 = vmatpush1.msra.mxu0 0.0
    %2982 = vmatprep.subr.mxu0 0.0
    %2983 = vmatpush1.msra.mxu0 0.0
    %2984 = vmatprep.mubr.f32.mxu0 0.0
    %2985 = vmatmul.mubr.f32.gmra.mrb[0].mxu0 %v2908
    %v2986 = vpop.f32.mrb[0].mxu0
    %v2987 = vadd.f32 %v2894, %v2986
    %v2988 = vpop.f32.mrb[0].mxu0
    %2989 = vmatprep.mubr.f32.mxu0 0.0
    %2990 = vmatmul.mubr.f32.gmra.mrb[0].mxu0 %v2911
    %v2991 = vpop.f32.mrb[0].mxu0
    %v2992 = vadd.f32 %v2899, %v2991
    %v2993 = vpop.f32.mrb[0].mxu0
    %2994 = vmatprep.mubr.f32.mxu0 0.0
    %2995 = vmatmul.mubr.f32.gmra.mrb[0].mxu0 %v2914
    %v2996 = vpop.f32.mrb[0].mxu0
    %v2997 = vadd.f32 %v2904, %v2996
    %v2998 = vpop.f32.mrb[0].mxu0
    %2999 = vdwg.mxu0
    %3000 = vst [vmem:[#allocation2] sm:$0xff] %v2987
    %3001 = vst [vmem:[#allocation2 + $0x8] sm:$0xff] %v2992
    %3002 = vst [vmem:[#allocation2 + $0x10] sm:$0x7f] %v2997
    %v3003 = vld [vmem:[#allocation2] sm:$0xff]
    %v3004 = vld [vmem:[#allocation2 + $0x8] sm:$0xff]
    %v3005 = vld [vmem:[#allocation2 + $0x10] sm:$0x7f]
    %v3006 = vld [vmem:[%s2 + $0x458] sm:$0xff]
    %v3007 = vld [vmem:[%s2 + $0x460] sm:$0xff]
    %v3008 = vld [vmem:[%s2 + $0x468] sm:$0x7f]
    %3010 = vset.pattern.permute.xlu0 0
    %3011 = vperm.xlu0 %3010, %v3006
    %v3012 = vpop.permute.xlu0 %3011
    %3015 = vset.pattern.permute.xlu0 0
    %3016 = vperm.xlu0 %3015, %v3007
    %v3017 = vpop.permute.xlu0 %3016
    %3020 = vset.pattern.permute.xlu0 0
    %3021 = vperm.xlu0 %3020, %v3008
    %v3022 = vpop.permute.xlu0 %3021
    %v3024 = vmul.f32 %v3003, %v3012
    %v3025 = vmul.f32 %v3004, %v3017
    %v3026 = vmul.f32 %v3005, %v3022
    %v3027 = vld [vmem:[%s2 + $0x470] sm:$0xff]
    %v3028 = vld [vmem:[%s2 + $0x478] sm:$0xff]
    %v3029 = vld [vmem:[%s2 + $0x480] sm:$0x7f]
    %3031 = vset.pattern.permute.xlu0 0
    %3032 = vperm.xlu0 %3031, %v3027
    %v3033 = vpop.permute.xlu0 %3032
    %3036 = vset.pattern.permute.xlu0 0
    %3037 = vperm.xlu0 %3036, %v3028
    %v3038 = vpop.permute.xlu0 %3037
    %3041 = vset.pattern.permute.xlu0 0
    %3042 = vperm.xlu0 %3041, %v3029
    %v3043 = vpop.permute.xlu0 %3042
    %v3045 = vadd.f32 %v3024, %v3033
    %v3046 = vadd.f32 %v3025, %v3038
    %v3047 = vadd.f32 %v3026, %v3043
    %v3048 = vtanh.pop %v3045
    %v3049 = vtanh.pop %v3046
    %v3050 = vtanh.pop %v3047
    %v3051 = vld [vmem:[%s1 + $0x168] sm:$0xff]
    %v3052 = vld [vmem:[%s1 + $0x170] sm:$0xff]
    %v3053 = vld [vmem:[%s1 + $0x178] sm:$0xf]
    %v3054 = vld [vmem:[%s2 + $0x488] sm:$0xff]
    %v3055 = vld [vmem:[%s2 + $0x490] sm:$0xff]
    %v3056 = vld [vmem:[%s2 + $0x498] sm:$0xf]
    %3058 = vset.pattern.permute.xlu0 0
    %3059 = vperm.xlu0 %3058, %v3054
    %v3060 = vpop.permute.xlu0 %3059
    %3063 = vset.pattern.permute.xlu0 0
    %3064 = vperm.xlu0 %3063, %v3055
    %v3065 = vpop.permute.xlu0 %3064
    %3068 = vset.pattern.permute.xlu0 0
    %3069 = vperm.xlu0 %3068, %v3056
    %v3070 = vpop.permute.xlu0 %3069
    %v3073 = vsel %vm574, %v3051, 0
    %v3076 = vsel %vm574, %v3052, 0
    %v3079 = vsel %vm574, %v3053, 0
    %v3082 = vsel %vm584, %v3050, 0
    %3084 = vmatprep.subr.mxu0 0.0
    %3085 = vmatpush1.msra.mxu0 %v3048
    %3086 = vmatprep.subr.mxu0 0.0
    %3087 = vmatpush1.msra.mxu0 %v3049
    %3088 = vmatprep.subr.mxu0 0.0
    %3089 = vmatpush1.msra.mxu0 %v3082
    %3090 = vmatprep.subr.mxu0 0.0
    %3091 = vmatpush1.msra.mxu0 0.0
    %3092 = vmatprep.subr.mxu0 0.0
    %3093 = vmatpush1.msra.mxu0 0.0
    %3094 = vmatprep.subr.mxu0 0.0
    %3095 = vmatpush1.msra.mxu0 0.0
    %3096 = vmatprep.subr.mxu0 0.0
    %3097 = vmatpush1.msra.mxu0 0.0
    %3098 = vmatprep.subr.mxu0 0.0
    %3099 = vmatpush1.msra.mxu0 0.0
    %3100 = vmatprep.subr.mxu0 0.0
    %3101 = vmatpush1.msra.mxu0 0.0
    %3102 = vmatprep.subr.mxu0 0.0
    %3103 = vmatpush1.msra.mxu0 0.0
    %3104 = vmatprep.subr.mxu0 0.0
    %3105 = vmatpush1.msra.mxu0 0.0
    %3106 = vmatprep.subr.mxu0 0.0
    %3107 = vmatpush1.msra.mxu0 0.0
    %3108 = vmatprep.subr.mxu0 0.0
    %3109 = vmatpush1.msra.mxu0 0.0
    %3110 = vmatprep.subr.mxu0 0.0
    %3111 = vmatpush1.msra.mxu0 0.0
    %3112 = vmatprep.subr.mxu0 0.0
    %3113 = vmatpush1.msra.mxu0 0.0
    %3114 = vmatprep.subr.mxu0 0.0
    %3115 = vmatpush1.msra.mxu0 0.0
    %3116 = vmatprep.subr.mxu0 0.0
    %3117 = vmatpush1.msra.mxu0 0.0
    %3118 = vmatprep.subr.mxu0 0.0
    %3119 = vmatpush1.msra.mxu0 0.0
    %3120 = vmatprep.subr.mxu0 0.0
    %3121 = vmatpush1.msra.mxu0 0.0
    %3122 = vmatprep.subr.mxu0 0.0
    %3123 = vmatpush1.msra.mxu0 0.0
    %3124 = vmatprep.subr.mxu0 0.0
    %3125 = vmatpush1.msra.mxu0 0.0
    %3126 = vmatprep.subr.mxu0 0.0
    %3127 = vmatpush1.msra.mxu0 0.0
    %3128 = vmatprep.subr.mxu0 0.0
    %3129 = vmatpush1.msra.mxu0 0.0
    %3130 = vmatprep.subr.mxu0 0.0
    %3131 = vmatpush1.msra.mxu0 0.0
    %3132 = vmatprep.subr.mxu0 0.0
    %3133 = vmatpush1.msra.mxu0 0.0
    %3134 = vmatprep.subr.mxu0 0.0
    %3135 = vmatpush1.msra.mxu0 0.0
    %3136 = vmatprep.subr.mxu0 0.0
    %3137 = vmatpush1.msra.mxu0 0.0
    %3138 = vmatprep.subr.mxu0 0.0
    %3139 = vmatpush1.msra.mxu0 0.0
    %3140 = vmatprep.subr.mxu0 0.0
    %3141 = vmatpush1.msra.mxu0 0.0
    %3142 = vmatprep.subr.mxu0 0.0
    %3143 = vmatpush1.msra.mxu0 0.0
    %3144 = vmatprep.subr.mxu0 0.0
    %3145 = vmatpush1.msra.mxu0 0.0
    %3146 = vmatprep.subr.mxu0 0.0
    %3147 = vmatpush1.msra.mxu0 0.0
    %3148 = vmatprep.mubr.f32.mxu0 0.0
    %3149 = vmatmul.mubr.f32.gmra.mrb[0].mxu0 %v3073
    %v3150 = vpop.f32.mrb[0].mxu0
    %v3151 = vadd.f32 %v3060, %v3150
    %v3152 = vpop.f32.mrb[0].mxu0
    %3153 = vmatprep.mubr.f32.mxu0 0.0
    %3154 = vmatmul.mubr.f32.gmra.mrb[0].mxu0 %v3076
    %v3155 = vpop.f32.mrb[0].mxu0
    %v3156 = vadd.f32 %v3065, %v3155
    %v3157 = vpop.f32.mrb[0].mxu0
    %3158 = vmatprep.mubr.f32.mxu0 0.0
    %3159 = vmatmul.mubr.f32.gmra.mrb[0].mxu0 %v3079
    %v3160 = vpop.f32.mrb[0].mxu0
    %v3161 = vadd.f32 %v3070, %v3160
    %v3162 = vpop.f32.mrb[0].mxu0
    %3163 = vdwg.mxu0
    %v3164 = vtanh.pop %v3151
    %v3165 = vtanh.pop %v3156
    %v3166 = vtanh.pop %v3161
    %v3167 = vld [vmem:[%s1 + $0x180] sm:$0x1f]
    %v3168 = vld [vmem:[%s2 + $0x4a0] sm:$0x1f]
    %3170 = vset.pattern.permute.xlu0 0
    %3171 = vperm.xlu0 %3170, %v3168
    %v3172 = vpop.permute.xlu0 %3171
    %v3175 = vsel %vm176, %v3167, 0
    %v3178 = vsel %vm180, %v3166, 0
    %3180 = vmatprep.subr.mxu0 0.0
    %3181 = vmatpush1.msra.mxu0 %v3164
    %3182 = vmatprep.subr.mxu0 0.0
    %3183 = vmatpush1.msra.mxu0 %v3165
    %3184 = vmatprep.subr.mxu0 0.0
    %3185 = vmatpush1.msra.mxu0 %v3178
    %3186 = vmatprep.subr.mxu0 0.0
    %3187 = vmatpush1.msra.mxu0 0.0
    %3188 = vmatprep.subr.mxu0 0.0
    %3189 = vmatpush1.msra.mxu0 0.0
    %3190 = vmatprep.subr.mxu0 0.0
    %3191 = vmatpush1.msra.mxu0 0.0
    %3192 = vmatprep.subr.mxu0 0.0
    %3193 = vmatpush1.msra.mxu0 0.0
    %3194 = vmatprep.subr.mxu0 0.0
    %3195 = vmatpush1.msra.mxu0 0.0
    %3196 = vmatprep.subr.mxu0 0.0
    %3197 = vmatpush1.msra.mxu0 0.0
    %3198 = vmatprep.subr.mxu0 0.0
    %3199 = vmatpush1.msra.mxu0 0.0
    %3200 = vmatprep.subr.mxu0 0.0
    %3201 = vmatpush1.msra.mxu0 0.0
    %3202 = vmatprep.subr.mxu0 0.0
    %3203 = vmatpush1.msra.mxu0 0.0
    %3204 = vmatprep.subr.mxu0 0.0
    %3205 = vmatpush1.msra.mxu0 0.0
    %3206 = vmatprep.subr.mxu0 0.0
    %3207 = vmatpush1.msra.mxu0 0.0
    %3208 = vmatprep.subr.mxu0 0.0
    %3209 = vmatpush1.msra.mxu0 0.0
    %3210 = vmatprep.subr.mxu0 0.0
    %3211 = vmatpush1.msra.mxu0 0.0
    %3212 = vmatprep.subr.mxu0 0.0
    %3213 = vmatpush1.msra.mxu0 0.0
    %3214 = vmatprep.subr.mxu0 0.0
    %3215 = vmatpush1.msra.mxu0 0.0
    %3216 = vmatprep.subr.mxu0 0.0
    %3217 = vmatpush1.msra.mxu0 0.0
    %3218 = vmatprep.subr.mxu0 0.0
    %3219 = vmatpush1.msra.mxu0 0.0
    %3220 = vmatprep.subr.mxu0 0.0
    %3221 = vmatpush1.msra.mxu0 0.0
    %3222 = vmatprep.subr.mxu0 0.0
    %3223 = vmatpush1.msra.mxu0 0.0
    %3224 = vmatprep.subr.mxu0 0.0
    %3225 = vmatpush1.msra.mxu0 0.0
    %3226 = vmatprep.subr.mxu0 0.0
    %3227 = vmatpush1.msra.mxu0 0.0
    %3228 = vmatprep.subr.mxu0 0.0
    %3229 = vmatpush1.msra.mxu0 0.0
    %3230 = vmatprep.subr.mxu0 0.0
    %3231 = vmatpush1.msra.mxu0 0.0
    %3232 = vmatprep.subr.mxu0 0.0
    %3233 = vmatpush1.msra.mxu0 0.0
    %3234 = vmatprep.subr.mxu0 0.0
    %3235 = vmatpush1.msra.mxu0 0.0
    %3236 = vmatprep.subr.mxu0 0.0
    %3237 = vmatpush1.msra.mxu0 0.0
    %3238 = vmatprep.subr.mxu0 0.0
    %3239 = vmatpush1.msra.mxu0 0.0
    %3240 = vmatprep.subr.mxu0 0.0
    %3241 = vmatpush1.msra.mxu0 0.0
    %3242 = vmatprep.subr.mxu0 0.0
    %3243 = vmatpush1.msra.mxu0 0.0
    %3244 = vmatprep.mubr.f32.mxu0 0.0
    %3245 = vmatmul.mubr.f32.gmra.mrb[0].mxu0 %v3175
    %v3246 = vpop.f32.mrb[0].mxu0
    %v3247 = vadd.f32 %v3172, %v3246
    %v3248 = vpop.f32.mrb[0].mxu0
    %3249 = vdwg.mxu0
    %3250 = vst [vmem:[#allocation2 + $0x17] sm:$0x1f] %v3247
    %v3251 = vld [vmem:[#allocation2] sm:$0xff]
    %v3252 = vld [vmem:[#allocation2 + $0x8] sm:$0xff]
    %v3253 = vld [vmem:[#allocation2 + $0x10] sm:$0xff]
    %v3254 = vld [vmem:[#allocation2 + $0x18] sm:$0xf]
    %v3255 = vld [vmem:[%s2 + $0x4a8] sm:$0xff]
    %v3256 = vld [vmem:[%s2 + $0x4b0] sm:$0xff]
    %v3257 = vld [vmem:[%s2 + $0x4b8] sm:$0xff]
    %v3258 = vld [vmem:[%s2 + $0x4c0] sm:$0xf]
    %3260 = vset.pattern.permute.xlu0 0
    %3261 = vperm.xlu0 %3260, %v3255
    %v3262 = vpop.permute.xlu0 %3261
    %3265 = vset.pattern.permute.xlu0 0
    %3266 = vperm.xlu0 %3265, %v3256
    %v3267 = vpop.permute.xlu0 %3266
    %3270 = vset.pattern.permute.xlu0 0
    %3271 = vperm.xlu0 %3270, %v3257
    %v3272 = vpop.permute.xlu0 %3271
    %3275 = vset.pattern.permute.xlu0 0
    %3276 = vperm.xlu0 %3275, %v3258
    %v3277 = vpop.permute.xlu0 %3276
    %v3279 = vmul.f32 %v3251, %v3262
    %v3280 = vmul.f32 %v3252, %v3267
    %v3281 = vmul.f32 %v3253, %v3272
    %v3282 = vmul.f32 %v3254, %v3277
    %v3283 = vld [vmem:[%s2 + $0x4c8] sm:$0xff]
    %v3284 = vld [vmem:[%s2 + $0x4d0] sm:$0xff]
    %v3285 = vld [vmem:[%s2 + $0x4d8] sm:$0xff]
    %v3286 = vld [vmem:[%s2 + $0x4e0] sm:$0xf]
    %3288 = vset.pattern.permute.xlu0 0
    %3289 = vperm.xlu0 %3288, %v3283
    %v3290 = vpop.permute.xlu0 %3289
    %3293 = vset.pattern.permute.xlu0 0
    %3294 = vperm.xlu0 %3293, %v3284
    %v3295 = vpop.permute.xlu0 %3294
    %3298 = vset.pattern.permute.xlu0 0
    %3299 = vperm.xlu0 %3298, %v3285
    %v3300 = vpop.permute.xlu0 %3299
    %3303 = vset.pattern.permute.xlu0 0
    %3304 = vperm.xlu0 %3303, %v3286
    %v3305 = vpop.permute.xlu0 %3304
    %v3307 = vadd.f32 %v3279, %v3290
    %v3308 = vadd.f32 %v3280, %v3295
    %v3309 = vadd.f32 %v3281, %v3300
    %v3310 = vadd.f32 %v3282, %v3305
    %v3311 = vtanh.pop %v3307
    %v3312 = vtanh.pop %v3308
    %v3313 = vtanh.pop %v3309
    %v3314 = vtanh.pop %v3310
    %v3315 = vld [vmem:[%s1 + $0x188] sm:$0xff]
    %v3316 = vld [vmem:[%s1 + $0x190] sm:$0xff]
    %v3317 = vld [vmem:[%s1 + $0x198] sm:$0xf]
    %v3318 = vld [vmem:[%s2 + $0x4e8] sm:$0xff]
    %v3319 = vld [vmem:[%s2 + $0x4f0] sm:$0xff]
    %v3320 = vld [vmem:[%s2 + $0x4f8] sm:$0xf]
    %3322 = vset.pattern.permute.xlu0 0
    %3323 = vperm.xlu0 %3322, %v3318
    %v3324 = vpop.permute.xlu0 %3323
    %3327 = vset.pattern.permute.xlu0 0
    %3328 = vperm.xlu0 %3327, %v3319
    %v3329 = vpop.permute.xlu0 %3328
    %3332 = vset.pattern.permute.xlu0 0
    %3333 = vperm.xlu0 %3332, %v3320
    %v3334 = vpop.permute.xlu0 %3333
    %v3337 = vsel %vm840, %v3315, 0
    %v3340 = vsel %vm840, %v3316, 0
    %v3343 = vsel %vm840, %v3317, 0
    %v3346 = vsel %vm180, %v3314, 0
    %3348 = vmatprep.subr.mxu0 0.0
    %3349 = vmatpush1.msra.mxu0 %v3311
    %3350 = vmatprep.subr.mxu0 0.0
    %3351 = vmatpush1.msra.mxu0 %v3312
    %3352 = vmatprep.subr.mxu0 0.0
    %3353 = vmatpush1.msra.mxu0 %v3313
    %3354 = vmatprep.subr.mxu0 0.0
    %3355 = vmatpush1.msra.mxu0 %v3346
    %3356 = vmatprep.subr.mxu0 0.0
    %3357 = vmatpush1.msra.mxu0 0.0
    %3358 = vmatprep.subr.mxu0 0.0
    %3359 = vmatpush1.msra.mxu0 0.0
    %3360 = vmatprep.subr.mxu0 0.0
    %3361 = vmatpush1.msra.mxu0 0.0
    %3362 = vmatprep.subr.mxu0 0.0
    %3363 = vmatpush1.msra.mxu0 0.0
    %3364 = vmatprep.subr.mxu0 0.0
    %3365 = vmatpush1.msra.mxu0 0.0
    %3366 = vmatprep.subr.mxu0 0.0
    %3367 = vmatpush1.msra.mxu0 0.0
    %3368 = vmatprep.subr.mxu0 0.0
    %3369 = vmatpush1.msra.mxu0 0.0
    %3370 = vmatprep.subr.mxu0 0.0
    %3371 = vmatpush1.msra.mxu0 0.0
    %3372 = vmatprep.subr.mxu0 0.0
    %3373 = vmatpush1.msra.mxu0 0.0
    %3374 = vmatprep.subr.mxu0 0.0
    %3375 = vmatpush1.msra.mxu0 0.0
    %3376 = vmatprep.subr.mxu0 0.0
    %3377 = vmatpush1.msra.mxu0 0.0
    %3378 = vmatprep.subr.mxu0 0.0
    %3379 = vmatpush1.msra.mxu0 0.0
    %3380 = vmatprep.subr.mxu0 0.0
    %3381 = vmatpush1.msra.mxu0 0.0
    %3382 = vmatprep.subr.mxu0 0.0
    %3383 = vmatpush1.msra.mxu0 0.0
    %3384 = vmatprep.subr.mxu0 0.0
    %3385 = vmatpush1.msra.mxu0 0.0
    %3386 = vmatprep.subr.mxu0 0.0
    %3387 = vmatpush1.msra.mxu0 0.0
    %3388 = vmatprep.subr.mxu0 0.0
    %3389 = vmatpush1.msra.mxu0 0.0
    %3390 = vmatprep.subr.mxu0 0.0
    %3391 = vmatpush1.msra.mxu0 0.0
    %3392 = vmatprep.subr.mxu0 0.0
    %3393 = vmatpush1.msra.mxu0 0.0
    %3394 = vmatprep.subr.mxu0 0.0
    %3395 = vmatpush1.msra.mxu0 0.0
    %3396 = vmatprep.subr.mxu0 0.0
    %3397 = vmatpush1.msra.mxu0 0.0
    %3398 = vmatprep.subr.mxu0 0.0
    %3399 = vmatpush1.msra.mxu0 0.0
    %3400 = vmatprep.subr.mxu0 0.0
    %3401 = vmatpush1.msra.mxu0 0.0
    %3402 = vmatprep.subr.mxu0 0.0
    %3403 = vmatpush1.msra.mxu0 0.0
    %3404 = vmatprep.subr.mxu0 0.0
    %3405 = vmatpush1.msra.mxu0 0.0
    %3406 = vmatprep.subr.mxu0 0.0
    %3407 = vmatpush1.msra.mxu0 0.0
    %3408 = vmatprep.subr.mxu0 0.0
    %3409 = vmatpush1.msra.mxu0 0.0
    %3410 = vmatprep.subr.mxu0 0.0
    %3411 = vmatpush1.msra.mxu0 0.0
    %3412 = vmatprep.mubr.f32.mxu0 0.0
    %3413 = vmatmul.mubr.f32.gmra.mrb[0].mxu0 %v3337
    %v3414 = vpop.f32.mrb[0].mxu0
    %v3415 = vadd.f32 %v3324, %v3414
    %v3416 = vpop.f32.mrb[0].mxu0
    %3417 = vmatprep.mubr.f32.mxu0 0.0
    %3418 = vmatmul.mubr.f32.gmra.mrb[0].mxu0 %v3340
    %v3419 = vpop.f32.mrb[0].mxu0
    %v3420 = vadd.f32 %v3329, %v3419
    %v3421 = vpop.f32.mrb[0].mxu0
    %3422 = vmatprep.mubr.f32.mxu0 0.0
    %3423 = vmatmul.mubr.f32.gmra.mrb[0].mxu0 %v3343
    %v3424 = vpop.f32.mrb[0].mxu0
    %v3425 = vadd.f32 %v3334, %v3424
    %v3426 = vpop.f32.mrb[0].mxu0
    %3427 = vdwg.mxu0
    %v3428 = vtanh.pop %v3415
    %v3429 = vtanh.pop %v3420
    %v3430 = vtanh.pop %v3425
    %v3431 = vld [vmem:[%s1 + $0x1a0] sm:$0x1f]
    %v3432 = vld [vmem:[%s2 + $0x500] sm:$0x1f]
    %3434 = vset.pattern.permute.xlu0 0
    %3435 = vperm.xlu0 %3434, %v3432
    %v3436 = vpop.permute.xlu0 %3435
    %v3439 = vsel %vm176, %v3431, 0
    %v3442 = vsel %vm180, %v3430, 0
    %3444 = vmatprep.subr.mxu0 0.0
    %3445 = vmatpush1.msra.mxu0 %v3428
    %3446 = vmatprep.subr.mxu0 0.0
    %3447 = vmatpush1.msra.mxu0 %v3429
    %3448 = vmatprep.subr.mxu0 0.0
    %3449 = vmatpush1.msra.mxu0 %v3442
    %3450 = vmatprep.subr.mxu0 0.0
    %3451 = vmatpush1.msra.mxu0 0.0
    %3452 = vmatprep.subr.mxu0 0.0
    %3453 = vmatpush1.msra.mxu0 0.0
    %3454 = vmatprep.subr.mxu0 0.0
    %3455 = vmatpush1.msra.mxu0 0.0
    %3456 = vmatprep.subr.mxu0 0.0
    %3457 = vmatpush1.msra.mxu0 0.0
    %3458 = vmatprep.subr.mxu0 0.0
    %3459 = vmatpush1.msra.mxu0 0.0
    %3460 = vmatprep.subr.mxu0 0.0
    %3461 = vmatpush1.msra.mxu0 0.0
    %3462 = vmatprep.subr.mxu0 0.0
    %3463 = vmatpush1.msra.mxu0 0.0
    %3464 = vmatprep.subr.mxu0 0.0
    %3465 = vmatpush1.msra.mxu0 0.0
    %3466 = vmatprep.subr.mxu0 0.0
    %3467 = vmatpush1.msra.mxu0 0.0
    %3468 = vmatprep.subr.mxu0 0.0
    %3469 = vmatpush1.msra.mxu0 0.0
    %3470 = vmatprep.subr.mxu0 0.0
    %3471 = vmatpush1.msra.mxu0 0.0
    %3472 = vmatprep.subr.mxu0 0.0
    %3473 = vmatpush1.msra.mxu0 0.0
    %3474 = vmatprep.subr.mxu0 0.0
    %3475 = vmatpush1.msra.mxu0 0.0
    %3476 = vmatprep.subr.mxu0 0.0
    %3477 = vmatpush1.msra.mxu0 0.0
    %3478 = vmatprep.subr.mxu0 0.0
    %3479 = vmatpush1.msra.mxu0 0.0
    %3480 = vmatprep.subr.mxu0 0.0
    %3481 = vmatpush1.msra.mxu0 0.0
    %3482 = vmatprep.subr.mxu0 0.0
    %3483 = vmatpush1.msra.mxu0 0.0
    %3484 = vmatprep.subr.mxu0 0.0
    %3485 = vmatpush1.msra.mxu0 0.0
    %3486 = vmatprep.subr.mxu0 0.0
    %3487 = vmatpush1.msra.mxu0 0.0
    %3488 = vmatprep.subr.mxu0 0.0
    %3489 = vmatpush1.msra.mxu0 0.0
    %3490 = vmatprep.subr.mxu0 0.0
    %3491 = vmatpush1.msra.mxu0 0.0
    %3492 = vmatprep.subr.mxu0 0.0
    %3493 = vmatpush1.msra.mxu0 0.0
    %3494 = vmatprep.subr.mxu0 0.0
    %3495 = vmatpush1.msra.mxu0 0.0
    %3496 = vmatprep.subr.mxu0 0.0
    %3497 = vmatpush1.msra.mxu0 0.0
    %3498 = vmatprep.subr.mxu0 0.0
    %3499 = vmatpush1.msra.mxu0 0.0
    %3500 = vmatprep.subr.mxu0 0.0
    %3501 = vmatpush1.msra.mxu0 0.0
    %3502 = vmatprep.subr.mxu0 0.0
    %3503 = vmatpush1.msra.mxu0 0.0
    %3504 = vmatprep.subr.mxu0 0.0
    %3505 = vmatpush1.msra.mxu0 0.0
    %3506 = vmatprep.subr.mxu0 0.0
    %3507 = vmatpush1.msra.mxu0 0.0
    %3508 = vmatprep.mubr.f32.mxu0 0.0
    %3509 = vmatmul.mubr.f32.gmra.mrb[0].mxu0 %v3439
    %v3510 = vpop.f32.mrb[0].mxu0
    %v3511 = vadd.f32 %v3436, %v3510
    %v3512 = vpop.f32.mrb[0].mxu0
    %3513 = vdwg.mxu0
    %3514 = vst [vmem:[#allocation2 + $0x1c] sm:$0x1f] %v3511
    %v3515 = vld [vmem:[#allocation2] sm:$0xff]
    %v3516 = vld [vmem:[#allocation2 + $0x8] sm:$0xff]
    %v3517 = vld [vmem:[#allocation2 + $0x10] sm:$0xff]
    %v3518 = vld [vmem:[#allocation2 + $0x18] sm:$0xff]
    %v3519 = vld [vmem:[#allocation2 + $0x20] sm:$0x1]
    %v3520 = vld [vmem:[%s2 + $0x508] sm:$0xff]
    %v3521 = vld [vmem:[%s2 + $0x510] sm:$0xff]
    %v3522 = vld [vmem:[%s2 + $0x518] sm:$0xff]
    %v3523 = vld [vmem:[%s2 + $0x520] sm:$0xff]
    %v3524 = vld [vmem:[%s2 + $0x528] sm:$0x1]
    %3526 = vset.pattern.permute.xlu0 0
    %3527 = vperm.xlu0 %3526, %v3520
    %v3528 = vpop.permute.xlu0 %3527
    %3531 = vset.pattern.permute.xlu0 0
    %3532 = vperm.xlu0 %3531, %v3521
    %v3533 = vpop.permute.xlu0 %3532
    %3536 = vset.pattern.permute.xlu0 0
    %3537 = vperm.xlu0 %3536, %v3522
    %v3538 = vpop.permute.xlu0 %3537
    %3541 = vset.pattern.permute.xlu0 0
    %3542 = vperm.xlu0 %3541, %v3523
    %v3543 = vpop.permute.xlu0 %3542
    %3546 = vset.pattern.permute.xlu0 0
    %3547 = vperm.xlu0 %3546, %v3524
    %v3548 = vpop.permute.xlu0 %3547
    %v3550 = vmul.f32 %v3515, %v3528
    %v3551 = vmul.f32 %v3516, %v3533
    %v3552 = vmul.f32 %v3517, %v3538
    %v3553 = vmul.f32 %v3518, %v3543
    %v3554 = vmul.f32 %v3519, %v3548
    %v3555 = vld [vmem:[%s2 + $0x530] sm:$0xff]
    %v3556 = vld [vmem:[%s2 + $0x538] sm:$0xff]
    %v3557 = vld [vmem:[%s2 + $0x540] sm:$0xff]
    %v3558 = vld [vmem:[%s2 + $0x548] sm:$0xff]
    %v3559 = vld [vmem:[%s2 + $0x550] sm:$0x1]
    %3561 = vset.pattern.permute.xlu0 0
    %3562 = vperm.xlu0 %3561, %v3555
    %v3563 = vpop.permute.xlu0 %3562
    %3566 = vset.pattern.permute.xlu0 0
    %3567 = vperm.xlu0 %3566, %v3556
    %v3568 = vpop.permute.xlu0 %3567
    %3571 = vset.pattern.permute.xlu0 0
    %3572 = vperm.xlu0 %3571, %v3557
    %v3573 = vpop.permute.xlu0 %3572
    %3576 = vset.pattern.permute.xlu0 0
    %3577 = vperm.xlu0 %3576, %v3558
    %v3578 = vpop.permute.xlu0 %3577
    %3581 = vset.pattern.permute.xlu0 0
    %3582 = vperm.xlu0 %3581, %v3559
    %v3583 = vpop.permute.xlu0 %3582
    %v3585 = vadd.f32 %v3550, %v3563
    %v3586 = vadd.f32 %v3551, %v3568
    %v3587 = vadd.f32 %v3552, %v3573
    %v3588 = vadd.f32 %v3553, %v3578
    %v3589 = vadd.f32 %v3554, %v3583
    %v3590 = vtanh.pop %v3585
    %v3591 = vtanh.pop %v3586
    %v3592 = vtanh.pop %v3587
    %v3593 = vtanh.pop %v3588
    %v3594 = vtanh.pop %v3589
    %v3595 = vld [vmem:[%s1 + $0x1a8] sm:$0xff]
    %v3596 = vld [vmem:[%s1 + $0x1b0] sm:$0xff]
    %v3597 = vld [vmem:[%s1 + $0x1b8] sm:$0xf]
    %v3598 = vld [vmem:[%s2 + $0x558] sm:$0xff]
    %v3599 = vld [vmem:[%s2 + $0x560] sm:$0xff]
    %v3600 = vld [vmem:[%s2 + $0x568] sm:$0xf]
    %3602 = vset.pattern.permute.xlu0 0
    %3603 = vperm.xlu0 %3602, %v3598
    %v3604 = vpop.permute.xlu0 %3603
    %3607 = vset.pattern.permute.xlu0 0
    %3608 = vperm.xlu0 %3607, %v3599
    %v3609 = vpop.permute.xlu0 %3608
    %3612 = vset.pattern.permute.xlu0 0
    %3613 = vperm.xlu0 %3612, %v3600
    %v3614 = vpop.permute.xlu0 %3613
    %v3617 = vsel %vm1114, %v3595, 0
    %v3620 = vsel %vm1114, %v3596, 0
    %v3623 = vsel %vm1114, %v3597, 0
    %v3626 = vsel %vm1121, %v3594, 0
    %3628 = vmatprep.subr.mxu0 0.0
    %3629 = vmatpush1.msra.mxu0 %v3590
    %3630 = vmatprep.subr.mxu0 0.0
    %3631 = vmatpush1.msra.mxu0 %v3591
    %3632 = vmatprep.subr.mxu0 0.0
    %3633 = vmatpush1.msra.mxu0 %v3592
    %3634 = vmatprep.subr.mxu0 0.0
    %3635 = vmatpush1.msra.mxu0 %v3593
    %3636 = vmatprep.subr.mxu0 0.0
    %3637 = vmatpush1.msra.mxu0 %v3626
    %3638 = vmatprep.subr.mxu0 0.0
    %3639 = vmatpush1.msra.mxu0 0.0
    %3640 = vmatprep.subr.mxu0 0.0
    %3641 = vmatpush1.msra.mxu0 0.0
    %3642 = vmatprep.subr.mxu0 0.0
    %3643 = vmatpush1.msra.mxu0 0.0
    %3644 = vmatprep.subr.mxu0 0.0
    %3645 = vmatpush1.msra.mxu0 0.0
    %3646 = vmatprep.subr.mxu0 0.0
    %3647 = vmatpush1.msra.mxu0 0.0
    %3648 = vmatprep.subr.mxu0 0.0
    %3649 = vmatpush1.msra.mxu0 0.0
    %3650 = vmatprep.subr.mxu0 0.0
    %3651 = vmatpush1.msra.mxu0 0.0
    %3652 = vmatprep.subr.mxu0 0.0
    %3653 = vmatpush1.msra.mxu0 0.0
    %3654 = vmatprep.subr.mxu0 0.0
    %3655 = vmatpush1.msra.mxu0 0.0
    %3656 = vmatprep.subr.mxu0 0.0
    %3657 = vmatpush1.msra.mxu0 0.0
    %3658 = vmatprep.subr.mxu0 0.0
    %3659 = vmatpush1.msra.mxu0 0.0
    %3660 = vmatprep.subr.mxu0 0.0
    %3661 = vmatpush1.msra.mxu0 0.0
    %3662 = vmatprep.subr.mxu0 0.0
    %3663 = vmatpush1.msra.mxu0 0.0
    %3664 = vmatprep.subr.mxu0 0.0
    %3665 = vmatpush1.msra.mxu0 0.0
    %3666 = vmatprep.subr.mxu0 0.0
    %3667 = vmatpush1.msra.mxu0 0.0
    %3668 = vmatprep.subr.mxu0 0.0
    %3669 = vmatpush1.msra.mxu0 0.0
    %3670 = vmatprep.subr.mxu0 0.0
    %3671 = vmatpush1.msra.mxu0 0.0
    %3672 = vmatprep.subr.mxu0 0.0
    %3673 = vmatpush1.msra.mxu0 0.0
    %3674 = vmatprep.subr.mxu0 0.0
    %3675 = vmatpush1.msra.mxu0 0.0
    %3676 = vmatprep.subr.mxu0 0.0
    %3677 = vmatpush1.msra.mxu0 0.0
    %3678 = vmatprep.subr.mxu0 0.0
    %3679 = vmatpush1.msra.mxu0 0.0
    %3680 = vmatprep.subr.mxu0 0.0
    %3681 = vmatpush1.msra.mxu0 0.0
    %3682 = vmatprep.subr.mxu0 0.0
    %3683 = vmatpush1.msra.mxu0 0.0
    %3684 = vmatprep.subr.mxu0 0.0
    %3685 = vmatpush1.msra.mxu0 0.0
    %3686 = vmatprep.subr.mxu0 0.0
    %3687 = vmatpush1.msra.mxu0 0.0
    %3688 = vmatprep.subr.mxu0 0.0
    %3689 = vmatpush1.msra.mxu0 0.0
    %3690 = vmatprep.subr.mxu0 0.0
    %3691 = vmatpush1.msra.mxu0 0.0
    %3692 = vmatprep.mubr.f32.mxu0 0.0
    %3693 = vmatmul.mubr.f32.gmra.mrb[0].mxu0 %v3617
    %v3694 = vpop.f32.mrb[0].mxu0
    %v3695 = vadd.f32 %v3604, %v3694
    %v3696 = vpop.f32.mrb[0].mxu0
    %3697 = vmatprep.mubr.f32.mxu0 0.0
    %3698 = vmatmul.mubr.f32.gmra.mrb[0].mxu0 %v3620
    %v3699 = vpop.f32.mrb[0].mxu0
    %v3700 = vadd.f32 %v3609, %v3699
    %v3701 = vpop.f32.mrb[0].mxu0
    %3702 = vmatprep.mubr.f32.mxu0 0.0
    %3703 = vmatmul.mubr.f32.gmra.mrb[0].mxu0 %v3623
    %v3704 = vpop.f32.mrb[0].mxu0
    %v3705 = vadd.f32 %v3614, %v3704
    %v3706 = vpop.f32.mrb[0].mxu0
    %3707 = vdwg.mxu0
    %v3708 = vtanh.pop %v3695
    %v3709 = vtanh.pop %v3700
    %v3710 = vtanh.pop %v3705
    %v3711 = vld [vmem:[%s1 + $0x1c0] sm:$0x1f]
    %v3712 = vld [vmem:[%s2 + $0x570] sm:$0x1f]
    %3714 = vset.pattern.permute.xlu0 0
    %3715 = vperm.xlu0 %3714, %v3712
    %v3716 = vpop.permute.xlu0 %3715
    %v3719 = vsel %vm176, %v3711, 0
    %v3722 = vsel %vm180, %v3710, 0
    %3724 = vmatprep.subr.mxu0 0.0
    %3725 = vmatpush1.msra.mxu0 %v3708
    %3726 = vmatprep.subr.mxu0 0.0
    %3727 = vmatpush1.msra.mxu0 %v3709
    %3728 = vmatprep.subr.mxu0 0.0
    %3729 = vmatpush1.msra.mxu0 %v3722
    %3730 = vmatprep.subr.mxu0 0.0
    %3731 = vmatpush1.msra.mxu0 0.0
    %3732 = vmatprep.subr.mxu0 0.0
    %3733 = vmatpush1.msra.mxu0 0.0
    %3734 = vmatprep.subr.mxu0 0.0
    %3735 = vmatpush1.msra.mxu0 0.0
    %3736 = vmatprep.subr.mxu0 0.0
    %3737 = vmatpush1.msra.mxu0 0.0
    %3738 = vmatprep.subr.mxu0 0.0
    %3739 = vmatpush1.msra.mxu0 0.0
    %3740 = vmatprep.subr.mxu0 0.0
    %3741 = vmatpush1.msra.mxu0 0.0
    %3742 = vmatprep.subr.mxu0 0.0
    %3743 = vmatpush1.msra.mxu0 0.0
    %3744 = vmatprep.subr.mxu0 0.0
    %3745 = vmatpush1.msra.mxu0 0.0
    %3746 = vmatprep.subr.mxu0 0.0
    %3747 = vmatpush1.msra.mxu0 0.0
    %3748 = vmatprep.subr.mxu0 0.0
    %3749 = vmatpush1.msra.mxu0 0.0
    %3750 = vmatprep.subr.mxu0 0.0
    %3751 = vmatpush1.msra.mxu0 0.0
    %3752 = vmatprep.subr.mxu0 0.0
    %3753 = vmatpush1.msra.mxu0 0.0
    %3754 = vmatprep.subr.mxu0 0.0
    %3755 = vmatpush1.msra.mxu0 0.0
    %3756 = vmatprep.subr.mxu0 0.0
    %3757 = vmatpush1.msra.mxu0 0.0
    %3758 = vmatprep.subr.mxu0 0.0
    %3759 = vmatpush1.msra.mxu0 0.0
    %3760 = vmatprep.subr.mxu0 0.0
    %3761 = vmatpush1.msra.mxu0 0.0
    %3762 = vmatprep.subr.mxu0 0.0
    %3763 = vmatpush1.msra.mxu0 0.0
    %3764 = vmatprep.subr.mxu0 0.0
    %3765 = vmatpush1.msra.mxu0 0.0
    %3766 = vmatprep.subr.mxu0 0.0
    %3767 = vmatpush1.msra.mxu0 0.0
    %3768 = vmatprep.subr.mxu0 0.0
    %3769 = vmatpush1.msra.mxu0 0.0
    %3770 = vmatprep.subr.mxu0 0.0
    %3771 = vmatpush1.msra.mxu0 0.0
    %3772 = vmatprep.subr.mxu0 0.0
    %3773 = vmatpush1.msra.mxu0 0.0
    %3774 = vmatprep.subr.mxu0 0.0
    %3775 = vmatpush1.msra.mxu0 0.0
    %3776 = vmatprep.subr.mxu0 0.0
    %3777 = vmatpush1.msra.mxu0 0.0
    %3778 = vmatprep.subr.mxu0 0.0
    %3779 = vmatpush1.msra.mxu0 0.0
    %3780 = vmatprep.subr.mxu0 0.0
    %3781 = vmatpush1.msra.mxu0 0.0
    %3782 = vmatprep.subr.mxu0 0.0
    %3783 = vmatpush1.msra.mxu0 0.0
    %3784 = vmatprep.subr.mxu0 0.0
    %3785 = vmatpush1.msra.mxu0 0.0
    %3786 = vmatprep.subr.mxu0 0.0
    %3787 = vmatpush1.msra.mxu0 0.0
    %3788 = vmatprep.mubr.f32.mxu0 0.0
    %3789 = vmatmul.mubr.f32.gmra.mrb[0].mxu0 %v3719
    %v3790 = vpop.f32.mrb[0].mxu0
    %v3791 = vadd.f32 %v3716, %v3790
    %v3792 = vpop.f32.mrb[0].mxu0
    %3793 = vdwg.mxu0
    %3794 = vst [vmem:[#allocation2 + $0x21] sm:$0x1f] %v3791
    %v3795 = vld [vmem:[#allocation2] sm:$0xff]
    %v3796 = vld [vmem:[#allocation2 + $0x8] sm:$0xff]
    %v3797 = vld [vmem:[#allocation2 + $0x10] sm:$0xff]
    %v3798 = vld [vmem:[#allocation2 + $0x18] sm:$0xff]
    %v3799 = vld [vmem:[#allocation2 + $0x20] sm:$0x3f]
    %v3800 = vld [vmem:[%s2 + $0x578] sm:$0xff]
    %v3801 = vld [vmem:[%s2 + $0x580] sm:$0xff]
    %v3802 = vld [vmem:[%s2 + $0x588] sm:$0xff]
    %v3803 = vld [vmem:[%s2 + $0x590] sm:$0xff]
    %v3804 = vld [vmem:[%s2 + $0x598] sm:$0x3f]
    %3806 = vset.pattern.permute.xlu0 0
    %3807 = vperm.xlu0 %3806, %v3800
    %v3808 = vpop.permute.xlu0 %3807
    %3811 = vset.pattern.permute.xlu0 0
    %3812 = vperm.xlu0 %3811, %v3801
    %v3813 = vpop.permute.xlu0 %3812
    %3816 = vset.pattern.permute.xlu0 0
    %3817 = vperm.xlu0 %3816, %v3802
    %v3818 = vpop.permute.xlu0 %3817
    %3821 = vset.pattern.permute.xlu0 0
    %3822 = vperm.xlu0 %3821, %v3803
    %v3823 = vpop.permute.xlu0 %3822
    %3826 = vset.pattern.permute.xlu0 0
    %3827 = vperm.xlu0 %3826, %v3804
    %v3828 = vpop.permute.xlu0 %3827
    %v3830 = vmul.f32 %v3795, %v3808
    %v3831 = vmul.f32 %v3796, %v3813
    %v3832 = vmul.f32 %v3797, %v3818
    %v3833 = vmul.f32 %v3798, %v3823
    %v3834 = vmul.f32 %v3799, %v3828
    %v3835 = vld [vmem:[%s2 + $0x5a0] sm:$0xff]
    %v3836 = vld [vmem:[%s2 + $0x5a8] sm:$0xff]
    %v3837 = vld [vmem:[%s2 + $0x5b0] sm:$0xff]
    %v3838 = vld [vmem:[%s2 + $0x5b8] sm:$0xff]
    %v3839 = vld [vmem:[%s2 + $0x5c0] sm:$0x3f]
    %3841 = vset.pattern.permute.xlu0 0
    %3842 = vperm.xlu0 %3841, %v3835
    %v3843 = vpop.permute.xlu0 %3842
    %3846 = vset.pattern.permute.xlu0 0
    %3847 = vperm.xlu0 %3846, %v3836
    %v3848 = vpop.permute.xlu0 %3847
    %3851 = vset.pattern.permute.xlu0 0
    %3852 = vperm.xlu0 %3851, %v3837
    %v3853 = vpop.permute.xlu0 %3852
    %3856 = vset.pattern.permute.xlu0 0
    %3857 = vperm.xlu0 %3856, %v3838
    %v3858 = vpop.permute.xlu0 %3857
    %3861 = vset.pattern.permute.xlu0 0
    %3862 = vperm.xlu0 %3861, %v3839
    %v3863 = vpop.permute.xlu0 %3862
    %v3865 = vadd.f32 %v3830, %v3843
    %v3866 = vadd.f32 %v3831, %v3848
    %v3867 = vadd.f32 %v3832, %v3853
    %v3868 = vadd.f32 %v3833, %v3858
    %v3869 = vadd.f32 %v3834, %v3863
    %v3870 = vtanh.pop %v3865
    %v3871 = vtanh.pop %v3866
    %v3872 = vtanh.pop %v3867
    %v3873 = vtanh.pop %v3868
    %v3874 = vtanh.pop %v3869
    %v3875 = vld [vmem:[%s1 + $0x1c8] sm:$0xff]
    %v3876 = vld [vmem:[%s1 + $0x1d0] sm:$0xff]
    %v3877 = vld [vmem:[%s1 + $0x1d8] sm:$0xf]
    %v3878 = vld [vmem:[%s2 + $0x5c8] sm:$0xff]
    %v3879 = vld [vmem:[%s2 + $0x5d0] sm:$0xff]
    %v3880 = vld [vmem:[%s2 + $0x5d8] sm:$0xf]
    %3882 = vset.pattern.permute.xlu0 0
    %3883 = vperm.xlu0 %3882, %v3878
    %v3884 = vpop.permute.xlu0 %3883
    %3887 = vset.pattern.permute.xlu0 0
    %3888 = vperm.xlu0 %3887, %v3879
    %v3889 = vpop.permute.xlu0 %3888
    %3892 = vset.pattern.permute.xlu0 0
    %3893 = vperm.xlu0 %3892, %v3880
    %v3894 = vpop.permute.xlu0 %3893
    %vm3896 = vcmask 310272
    %v3898 = vsel %vm3896, %v3875, 0
    %v3901 = vsel %vm3896, %v3876, 0
    %v3904 = vsel %vm3896, %v3877, 0
    %v3907 = vsel %vm2916, %v3874, 0
    %3909 = vmatprep.subr.mxu0 0.0
    %3910 = vmatpush1.msra.mxu0 %v3870
    %3911 = vmatprep.subr.mxu0 0.0
    %3912 = vmatpush1.msra.mxu0 %v3871
    %3913 = vmatprep.subr.mxu0 0.0
    %3914 = vmatpush1.msra.mxu0 %v3872
    %3915 = vmatprep.subr.mxu0 0.0
    %3916 = vmatpush1.msra.mxu0 %v3873
    %3917 = vmatprep.subr.mxu0 0.0
    %3918 = vmatpush1.msra.mxu0 %v3907
    %3919 = vmatprep.subr.mxu0 0.0
    %3920 = vmatpush1.msra.mxu0 0.0
    %3921 = vmatprep.subr.mxu0 0.0
    %3922 = vmatpush1.msra.mxu0 0.0
    %3923 = vmatprep.subr.mxu0 0.0
    %3924 = vmatpush1.msra.mxu0 0.0
    %3925 = vmatprep.subr.mxu0 0.0
    %3926 = vmatpush1.msra.mxu0 0.0
    %3927 = vmatprep.subr.mxu0 0.0
    %3928 = vmatpush1.msra.mxu0 0.0
    %3929 = vmatprep.subr.mxu0 0.0
    %3930 = vmatpush1.msra.mxu0 0.0
    %3931 = vmatprep.subr.mxu0 0.0
    %3932 = vmatpush1.msra.mxu0 0.0
    %3933 = vmatprep.subr.mxu0 0.0
    %3934 = vmatpush1.msra.mxu0 0.0
    %3935 = vmatprep.subr.mxu0 0.0
    %3936 = vmatpush1.msra.mxu0 0.0
    %3937 = vmatprep.subr.mxu0 0.0
    %3938 = vmatpush1.msra.mxu0 0.0
    %3939 = vmatprep.subr.mxu0 0.0
    %3940 = vmatpush1.msra.mxu0 0.0
    %3941 = vmatprep.subr.mxu0 0.0
    %3942 = vmatpush1.msra.mxu0 0.0
    %3943 = vmatprep.subr.mxu0 0.0
    %3944 = vmatpush1.msra.mxu0 0.0
    %3945 = vmatprep.subr.mxu0 0.0
    %3946 = vmatpush1.msra.mxu0 0.0
    %3947 = vmatprep.subr.mxu0 0.0
    %3948 = vmatpush1.msra.mxu0 0.0
    %3949 = vmatprep.subr.mxu0 0.0
    %3950 = vmatpush1.msra.mxu0 0.0
    %3951 = vmatprep.subr.mxu0 0.0
    %3952 = vmatpush1.msra.mxu0 0.0
    %3953 = vmatprep.subr.mxu0 0.0
    %3954 = vmatpush1.msra.mxu0 0.0
    %3955 = vmatprep.subr.mxu0 0.0
    %3956 = vmatpush1.msra.mxu0 0.0
    %3957 = vmatprep.subr.mxu0 0.0
    %3958 = vmatpush1.msra.mxu0 0.0
    %3959 = vmatprep.subr.mxu0 0.0
    %3960 = vmatpush1.msra.mxu0 0.0
    %3961 = vmatprep.subr.mxu0 0.0
    %3962 = vmatpush1.msra.mxu0 0.0
    %3963 = vmatprep.subr.mxu0 0.0
    %3964 = vmatpush1.msra.mxu0 0.0
    %3965 = vmatprep.subr.mxu0 0.0
    %3966 = vmatpush1.msra.mxu0 0.0
    %3967 = vmatprep.subr.mxu0 0.0
    %3968 = vmatpush1.msra.mxu0 0.0
    %3969 = vmatprep.subr.mxu0 0.0
    %3970 = vmatpush1.msra.mxu0 0.0
    %3971 = vmatprep.subr.mxu0 0.0
    %3972 = vmatpush1.msra.mxu0 0.0
    %3973 = vmatprep.mubr.f32.mxu0 0.0
    %3974 = vmatmul.mubr.f32.gmra.mrb[0].mxu0 %v3898
    %v3975 = vpop.f32.mrb[0].mxu0
    %v3976 = vadd.f32 %v3884, %v3975
    %v3977 = vpop.f32.mrb[0].mxu0
    %3978 = vmatprep.mubr.f32.mxu0 0.0
    %3979 = vmatmul.mubr.f32.gmra.mrb[0].mxu0 %v3901
    %v3980 = vpop.f32.mrb[0].mxu0
    %v3981 = vadd.f32 %v3889, %v3980
    %v3982 = vpop.f32.mrb[0].mxu0
    %3983 = vmatprep.mubr.f32.mxu0 0.0
    %3984 = vmatmul.mubr.f32.gmra.mrb[0].mxu0 %v3904
    %v3985 = vpop.f32.mrb[0].mxu0
    %v3986 = vadd.f32 %v3894, %v3985
    %v3987 = vpop.f32.mrb[0].mxu0
    %3988 = vdwg.mxu0
    %v3989 = vtanh.pop %v3976
    %v3990 = vtanh.pop %v3981
    %v3991 = vtanh.pop %v3986
    %v3992 = vld [vmem:[%s1 + $0x1e0] sm:$0x1f]
    %v3993 = vld [vmem:[%s2 + $0x5e0] sm:$0x1f]
    %3995 = vset.pattern.permute.xlu0 0
    %3996 = vperm.xlu0 %3995, %v3993
    %v3997 = vpop.permute.xlu0 %3996
    %v4000 = vsel %vm176, %v3992, 0
    %v4003 = vsel %vm180, %v3991, 0
    %4005 = vmatprep.subr.mxu0 0.0
    %4006 = vmatpush1.msra.mxu0 %v3989
    %4007 = vmatprep.subr.mxu0 0.0
    %4008 = vmatpush1.msra.mxu0 %v3990
    %4009 = vmatprep.subr.mxu0 0.0
    %4010 = vmatpush1.msra.mxu0 %v4003
    %4011 = vmatprep.subr.mxu0 0.0
    %4012 = vmatpush1.msra.mxu0 0.0
    %4013 = vmatprep.subr.mxu0 0.0
    %4014 = vmatpush1.msra.mxu0 0.0
    %4015 = vmatprep.subr.mxu0 0.0
    %4016 = vmatpush1.msra.mxu0 0.0
    %4017 = vmatprep.subr.mxu0 0.0
    %4018 = vmatpush1.msra.mxu0 0.0
    %4019 = vmatprep.subr.mxu0 0.0
    %4020 = vmatpush1.msra.mxu0 0.0
    %4021 = vmatprep.subr.mxu0 0.0
    %4022 = vmatpush1.msra.mxu0 0.0
    %4023 = vmatprep.subr.mxu0 0.0
    %4024 = vmatpush1.msra.mxu0 0.0
    %4025 = vmatprep.subr.mxu0 0.0
    %4026 = vmatpush1.msra.mxu0 0.0
    %4027 = vmatprep.subr.mxu0 0.0
    %4028 = vmatpush1.msra.mxu0 0.0
    %4029 = vmatprep.subr.mxu0 0.0
    %4030 = vmatpush1.msra.mxu0 0.0
    %4031 = vmatprep.subr.mxu0 0.0
    %4032 = vmatpush1.msra.mxu0 0.0
    %4033 = vmatprep.subr.mxu0 0.0
    %4034 = vmatpush1.msra.mxu0 0.0
    %4035 = vmatprep.subr.mxu0 0.0
    %4036 = vmatpush1.msra.mxu0 0.0
    %4037 = vmatprep.subr.mxu0 0.0
    %4038 = vmatpush1.msra.mxu0 0.0
    %4039 = vmatprep.subr.mxu0 0.0
    %4040 = vmatpush1.msra.mxu0 0.0
    %4041 = vmatprep.subr.mxu0 0.0
    %4042 = vmatpush1.msra.mxu0 0.0
    %4043 = vmatprep.subr.mxu0 0.0
    %4044 = vmatpush1.msra.mxu0 0.0
    %4045 = vmatprep.subr.mxu0 0.0
    %4046 = vmatpush1.msra.mxu0 0.0
    %4047 = vmatprep.subr.mxu0 0.0
    %4048 = vmatpush1.msra.mxu0 0.0
    %4049 = vmatprep.subr.mxu0 0.0
    %4050 = vmatpush1.msra.mxu0 0.0
    %4051 = vmatprep.subr.mxu0 0.0
    %4052 = vmatpush1.msra.mxu0 0.0
    %4053 = vmatprep.subr.mxu0 0.0
    %4054 = vmatpush1.msra.mxu0 0.0
    %4055 = vmatprep.subr.mxu0 0.0
    %4056 = vmatpush1.msra.mxu0 0.0
    %4057 = vmatprep.subr.mxu0 0.0
    %4058 = vmatpush1.msra.mxu0 0.0
    %4059 = vmatprep.subr.mxu0 0.0
    %4060 = vmatpush1.msra.mxu0 0.0
    %4061 = vmatprep.subr.mxu0 0.0
    %4062 = vmatpush1.msra.mxu0 0.0
    %4063 = vmatprep.subr.mxu0 0.0
    %4064 = vmatpush1.msra.mxu0 0.0
    %4065 = vmatprep.subr.mxu0 0.0
    %4066 = vmatpush1.msra.mxu0 0.0
    %4067 = vmatprep.subr.mxu0 0.0
    %4068 = vmatpush1.msra.mxu0 0.0
    %4069 = vmatprep.mubr.f32.mxu0 0.0
    %4070 = vmatmul.mubr.f32.gmra.mrb[0].mxu0 %v4000
    %v4071 = vpop.f32.mrb[0].mxu0
    %v4072 = vadd.f32 %v3997, %v4071
    %v4073 = vpop.f32.mrb[0].mxu0
    %4074 = vdwg.mxu0
    %4075 = vst [vmem:[#allocation2 + $0x26] sm:$0x1f] %v4072
    %v4076 = vld [vmem:[#allocation2] sm:$0xff]
    %v4077 = vld [vmem:[#allocation2 + $0x8] sm:$0xff]
    %v4078 = vld [vmem:[#allocation2 + $0x10] sm:$0xff]
    %v4079 = vld [vmem:[#allocation2 + $0x18] sm:$0xff]
    %v4080 = vld [vmem:[#allocation2 + $0x20] sm:$0xff]
    %v4081 = vld [vmem:[#allocation2 + $0x28] sm:$0x7]
    %v4082 = vld [vmem:[%s2 + $0x5e8] sm:$0xff]
    %v4083 = vld [vmem:[%s2 + $0x5f0] sm:$0xff]
    %v4084 = vld [vmem:[%s2 + $0x5f8] sm:$0xff]
    %v4085 = vld [vmem:[%s2 + $0x600] sm:$0xff]
    %v4086 = vld [vmem:[%s2 + $0x608] sm:$0xff]
    %v4087 = vld [vmem:[%s2 + $0x610] sm:$0x7]
    %4089 = vset.pattern.permute.xlu0 0
    %4090 = vperm.xlu0 %4089, %v4082
    %v4091 = vpop.permute.xlu0 %4090
    %4094 = vset.pattern.permute.xlu0 0
    %4095 = vperm.xlu0 %4094, %v4083
    %v4096 = vpop.permute.xlu0 %4095
    %4099 = vset.pattern.permute.xlu0 0
    %4100 = vperm.xlu0 %4099, %v4084
    %v4101 = vpop.permute.xlu0 %4100
    %4104 = vset.pattern.permute.xlu0 0
    %4105 = vperm.xlu0 %4104, %v4085
    %v4106 = vpop.permute.xlu0 %4105
    %4109 = vset.pattern.permute.xlu0 0
    %4110 = vperm.xlu0 %4109, %v4086
    %v4111 = vpop.permute.xlu0 %4110
    %4114 = vset.pattern.permute.xlu0 0
    %4115 = vperm.xlu0 %4114, %v4087
    %v4116 = vpop.permute.xlu0 %4115
    %v4118 = vmul.f32 %v4076, %v4091
    %v4119 = vmul.f32 %v4077, %v4096
    %v4120 = vmul.f32 %v4078, %v4101
    %v4121 = vmul.f32 %v4079, %v4106
    %v4122 = vmul.f32 %v4080, %v4111
    %v4123 = vmul.f32 %v4081, %v4116
    %v4124 = vld [vmem:[%s2 + $0x618] sm:$0xff]
    %v4125 = vld [vmem:[%s2 + $0x620] sm:$0xff]
    %v4126 = vld [vmem:[%s2 + $0x628] sm:$0xff]
    %v4127 = vld [vmem:[%s2 + $0x630] sm:$0xff]
    %v4128 = vld [vmem:[%s2 + $0x638] sm:$0xff]
    %v4129 = vld [vmem:[%s2 + $0x640] sm:$0x7]
    %4131 = vset.pattern.permute.xlu0 0
    %4132 = vperm.xlu0 %4131, %v4124
    %v4133 = vpop.permute.xlu0 %4132
    %4136 = vset.pattern.permute.xlu0 0
    %4137 = vperm.xlu0 %4136, %v4125
    %v4138 = vpop.permute.xlu0 %4137
    %4141 = vset.pattern.permute.xlu0 0
    %4142 = vperm.xlu0 %4141, %v4126
    %v4143 = vpop.permute.xlu0 %4142
    %4146 = vset.pattern.permute.xlu0 0
    %4147 = vperm.xlu0 %4146, %v4127
    %v4148 = vpop.permute.xlu0 %4147
    %4151 = vset.pattern.permute.xlu0 0
    %4152 = vperm.xlu0 %4151, %v4128
    %v4153 = vpop.permute.xlu0 %4152
    %4156 = vset.pattern.permute.xlu0 0
    %4157 = vperm.xlu0 %4156, %v4129
    %v4158 = vpop.permute.xlu0 %4157
    %v4160 = vadd.f32 %v4118, %v4133
    %v4161 = vadd.f32 %v4119, %v4138
    %v4162 = vadd.f32 %v4120, %v4143
    %v4163 = vadd.f32 %v4121, %v4148
    %v4164 = vadd.f32 %v4122, %v4153
    %v4165 = vadd.f32 %v4123, %v4158
    %v4166 = vtanh.pop %v4160
    %v4167 = vtanh.pop %v4161
    %v4168 = vtanh.pop %v4162
    %v4169 = vtanh.pop %v4163
    %v4170 = vtanh.pop %v4164
    %v4171 = vtanh.pop %v4165
    %v4172 = vld [vmem:[%s1 + $0x1e8] sm:$0xff]
    %v4173 = vld [vmem:[%s1 + $0x1f0] sm:$0xff]
    %v4174 = vld [vmem:[%s1 + $0x1f8] sm:$0xf]
    %v4175 = vld [vmem:[%s2 + $0x648] sm:$0xff]
    %v4176 = vld [vmem:[%s2 + $0x650] sm:$0xff]
    %v4177 = vld [vmem:[%s2 + $0x658] sm:$0xf]
    %4179 = vset.pattern.permute.xlu0 0
    %4180 = vperm.xlu0 %4179, %v4175
    %v4181 = vpop.permute.xlu0 %4180
    %4184 = vset.pattern.permute.xlu0 0
    %4185 = vperm.xlu0 %4184, %v4176
    %v4186 = vpop.permute.xlu0 %4185
    %4189 = vset.pattern.permute.xlu0 0
    %4190 = vperm.xlu0 %4189, %v4177
    %v4191 = vpop.permute.xlu0 %4190
    %vm4193 = vcmask 351232
    %v4195 = vsel %vm4193, %v4172, 0
    %v4198 = vsel %vm4193, %v4173, 0
    %v4201 = vsel %vm4193, %v4174, 0
    %vm4203 = vcmask 1042432
    %v4205 = vsel %vm4203, %v4171, 0
    %4207 = vmatprep.subr.mxu0 0.0
    %4208 = vmatpush1.msra.mxu0 %v4166
    %4209 = vmatprep.subr.mxu0 0.0
    %4210 = vmatpush1.msra.mxu0 %v4167
    %4211 = vmatprep.subr.mxu0 0.0
    %4212 = vmatpush1.msra.mxu0 %v4168
    %4213 = vmatprep.subr.mxu0 0.0
    %4214 = vmatpush1.msra.mxu0 %v4169
    %4215 = vmatprep.subr.mxu0 0.0
    %4216 = vmatpush1.msra.mxu0 %v4170
    %4217 = vmatprep.subr.mxu0 0.0
    %4218 = vmatpush1.msra.mxu0 %v4205
    %4219 = vmatprep.subr.mxu0 0.0
    %4220 = vmatpush1.msra.mxu0 0.0
    %4221 = vmatprep.subr.mxu0 0.0
    %4222 = vmatpush1.msra.mxu0 0.0
    %4223 = vmatprep.subr.mxu0 0.0
    %4224 = vmatpush1.msra.mxu0 0.0
    %4225 = vmatprep.subr.mxu0 0.0
    %4226 = vmatpush1.msra.mxu0 0.0
    %4227 = vmatprep.subr.mxu0 0.0
    %4228 = vmatpush1.msra.mxu0 0.0
    %4229 = vmatprep.subr.mxu0 0.0
    %4230 = vmatpush1.msra.mxu0 0.0
    %4231 = vmatprep.subr.mxu0 0.0
    %4232 = vmatpush1.msra.mxu0 0.0
    %4233 = vmatprep.subr.mxu0 0.0
    %4234 = vmatpush1.msra.mxu0 0.0
    %4235 = vmatprep.subr.mxu0 0.0
    %4236 = vmatpush1.msra.mxu0 0.0
    %4237 = vmatprep.subr.mxu0 0.0
    %4238 = vmatpush1.msra.mxu0 0.0
    %4239 = vmatprep.subr.mxu0 0.0
    %4240 = vmatpush1.msra.mxu0 0.0
    %4241 = vmatprep.subr.mxu0 0.0
    %4242 = vmatpush1.msra.mxu0 0.0
    %4243 = vmatprep.subr.mxu0 0.0
    %4244 = vmatpush1.msra.mxu0 0.0
    %4245 = vmatprep.subr.mxu0 0.0
    %4246 = vmatpush1.msra.mxu0 0.0
    %4247 = vmatprep.subr.mxu0 0.0
    %4248 = vmatpush1.msra.mxu0 0.0
    %4249 = vmatprep.subr.mxu0 0.0
    %4250 = vmatpush1.msra.mxu0 0.0
    %4251 = vmatprep.subr.mxu0 0.0
    %4252 = vmatpush1.msra.mxu0 0.0
    %4253 = vmatprep.subr.mxu0 0.0
    %4254 = vmatpush1.msra.mxu0 0.0
    %4255 = vmatprep.subr.mxu0 0.0
    %4256 = vmatpush1.msra.mxu0 0.0
    %4257 = vmatprep.subr.mxu0 0.0
    %4258 = vmatpush1.msra.mxu0 0.0
    %4259 = vmatprep.subr.mxu0 0.0
    %4260 = vmatpush1.msra.mxu0 0.0
    %4261 = vmatprep.subr.mxu0 0.0
    %4262 = vmatpush1.msra.mxu0 0.0
    %4263 = vmatprep.subr.mxu0 0.0
    %4264 = vmatpush1.msra.mxu0 0.0
    %4265 = vmatprep.subr.mxu0 0.0
    %4266 = vmatpush1.msra.mxu0 0.0
    %4267 = vmatprep.subr.mxu0 0.0
    %4268 = vmatpush1.msra.mxu0 0.0
    %4269 = vmatprep.subr.mxu0 0.0
    %4270 = vmatpush1.msra.mxu0 0.0
    %4271 = vmatprep.mubr.f32.mxu0 0.0
    %4272 = vmatmul.mubr.f32.gmra.mrb[0].mxu0 %v4195
    %v4273 = vpop.f32.mrb[0].mxu0
    %v4274 = vadd.f32 %v4181, %v4273
    %v4275 = vpop.f32.mrb[0].mxu0
    %4276 = vmatprep.mubr.f32.mxu0 0.0
    %4277 = vmatmul.mubr.f32.gmra.mrb[0].mxu0 %v4198
    %v4278 = vpop.f32.mrb[0].mxu0
    %v4279 = vadd.f32 %v4186, %v4278
    %v4280 = vpop.f32.mrb[0].mxu0
    %4281 = vmatprep.mubr.f32.mxu0 0.0
    %4282 = vmatmul.mubr.f32.gmra.mrb[0].mxu0 %v4201
    %v4283 = vpop.f32.mrb[0].mxu0
    %v4284 = vadd.f32 %v4191, %v4283
    %v4285 = vpop.f32.mrb[0].mxu0
    %4286 = vdwg.mxu0
    %v4287 = vtanh.pop %v4274
    %v4288 = vtanh.pop %v4279
    %v4289 = vtanh.pop %v4284
    %v4290 = vld [vmem:[%s1 + $0x200] sm:$0x1f]
    %v4291 = vld [vmem:[%s2 + $0x660] sm:$0x1f]
    %4293 = vset.pattern.permute.xlu0 0
    %4294 = vperm.xlu0 %4293, %v4291
    %v4295 = vpop.permute.xlu0 %4294
    %v4298 = vsel %vm176, %v4290, 0
    %v4301 = vsel %vm180, %v4289, 0
    %4303 = vmatprep.subr.mxu0 0.0
    %4304 = vmatpush1.msra.mxu0 %v4287
    %4305 = vmatprep.subr.mxu0 0.0
    %4306 = vmatpush1.msra.mxu0 %v4288
    %4307 = vmatprep.subr.mxu0 0.0
    %4308 = vmatpush1.msra.mxu0 %v4301
    %4309 = vmatprep.subr.mxu0 0.0
    %4310 = vmatpush1.msra.mxu0 0.0
    %4311 = vmatprep.subr.mxu0 0.0
    %4312 = vmatpush1.msra.mxu0 0.0
    %4313 = vmatprep.subr.mxu0 0.0
    %4314 = vmatpush1.msra.mxu0 0.0
    %4315 = vmatprep.subr.mxu0 0.0
    %4316 = vmatpush1.msra.mxu0 0.0
    %4317 = vmatprep.subr.mxu0 0.0
    %4318 = vmatpush1.msra.mxu0 0.0
    %4319 = vmatprep.subr.mxu0 0.0
    %4320 = vmatpush1.msra.mxu0 0.0
    %4321 = vmatprep.subr.mxu0 0.0
    %4322 = vmatpush1.msra.mxu0 0.0
    %4323 = vmatprep.subr.mxu0 0.0
    %4324 = vmatpush1.msra.mxu0 0.0
    %4325 = vmatprep.subr.mxu0 0.0
    %4326 = vmatpush1.msra.mxu0 0.0
    %4327 = vmatprep.subr.mxu0 0.0
    %4328 = vmatpush1.msra.mxu0 0.0
    %4329 = vmatprep.subr.mxu0 0.0
    %4330 = vmatpush1.msra.mxu0 0.0
    %4331 = vmatprep.subr.mxu0 0.0
    %4332 = vmatpush1.msra.mxu0 0.0
    %4333 = vmatprep.subr.mxu0 0.0
    %4334 = vmatpush1.msra.mxu0 0.0
    %4335 = vmatprep.subr.mxu0 0.0
    %4336 = vmatpush1.msra.mxu0 0.0
    %4337 = vmatprep.subr.mxu0 0.0
    %4338 = vmatpush1.msra.mxu0 0.0
    %4339 = vmatprep.subr.mxu0 0.0
    %4340 = vmatpush1.msra.mxu0 0.0
    %4341 = vmatprep.subr.mxu0 0.0
    %4342 = vmatpush1.msra.mxu0 0.0
    %4343 = vmatprep.subr.mxu0 0.0
    %4344 = vmatpush1.msra.mxu0 0.0
    %4345 = vmatprep.subr.mxu0 0.0
    %4346 = vmatpush1.msra.mxu0 0.0
    %4347 = vmatprep.subr.mxu0 0.0
    %4348 = vmatpush1.msra.mxu0 0.0
    %4349 = vmatprep.subr.mxu0 0.0
    %4350 = vmatpush1.msra.mxu0 0.0
    %4351 = vmatprep.subr.mxu0 0.0
    %4352 = vmatpush1.msra.mxu0 0.0
    %4353 = vmatprep.subr.mxu0 0.0
    %4354 = vmatpush1.msra.mxu0 0.0
    %4355 = vmatprep.subr.mxu0 0.0
    %4356 = vmatpush1.msra.mxu0 0.0
    %4357 = vmatprep.subr.mxu0 0.0
    %4358 = vmatpush1.msra.mxu0 0.0
    %4359 = vmatprep.subr.mxu0 0.0
    %4360 = vmatpush1.msra.mxu0 0.0
    %4361 = vmatprep.subr.mxu0 0.0
    %4362 = vmatpush1.msra.mxu0 0.0
    %4363 = vmatprep.subr.mxu0 0.0
    %4364 = vmatpush1.msra.mxu0 0.0
    %4365 = vmatprep.subr.mxu0 0.0
    %4366 = vmatpush1.msra.mxu0 0.0
    %4367 = vmatprep.mubr.f32.mxu0 0.0
    %4368 = vmatmul.mubr.f32.gmra.mrb[0].mxu0 %v4298
    %v4369 = vpop.f32.mrb[0].mxu0
    %v4370 = vadd.f32 %v4295, %v4369
    %v4371 = vpop.f32.mrb[0].mxu0
    %4372 = vdwg.mxu0
    %4373 = vst [vmem:[#allocation2 + $0x2b] sm:$0x1f] %v4370
    %v4374 = vld [vmem:[#allocation2] sm:$0xff]
    %v4375 = vld [vmem:[#allocation2 + $0x8] sm:$0xff]
    %v4376 = vld [vmem:[#allocation2 + $0x10] sm:$0xff]
    %v4377 = vld [vmem:[#allocation2 + $0x18] sm:$0xff]
    %v4378 = vld [vmem:[#allocation2 + $0x20] sm:$0xff]
    %v4379 = vld [vmem:[#allocation2 + $0x28] sm:$0xff]
    %v4380 = vld [vmem:[%s2 + $0x668] sm:$0xff]
    %v4381 = vld [vmem:[%s2 + $0x670] sm:$0xff]
    %v4382 = vld [vmem:[%s2 + $0x678] sm:$0xff]
    %v4383 = vld [vmem:[%s2 + $0x680] sm:$0xff]
    %v4384 = vld [vmem:[%s2 + $0x688] sm:$0xff]
    %v4385 = vld [vmem:[%s2 + $0x690] sm:$0xff]
    %4387 = vset.pattern.permute.xlu0 0
    %4388 = vperm.xlu0 %4387, %v4380
    %v4389 = vpop.permute.xlu0 %4388
    %4392 = vset.pattern.permute.xlu0 0
    %4393 = vperm.xlu0 %4392, %v4381
    %v4394 = vpop.permute.xlu0 %4393
    %4397 = vset.pattern.permute.xlu0 0
    %4398 = vperm.xlu0 %4397, %v4382
    %v4399 = vpop.permute.xlu0 %4398
    %4402 = vset.pattern.permute.xlu0 0
    %4403 = vperm.xlu0 %4402, %v4383
    %v4404 = vpop.permute.xlu0 %4403
    %4407 = vset.pattern.permute.xlu0 0
    %4408 = vperm.xlu0 %4407, %v4384
    %v4409 = vpop.permute.xlu0 %4408
    %4412 = vset.pattern.permute.xlu0 0
    %4413 = vperm.xlu0 %4412, %v4385
    %v4414 = vpop.permute.xlu0 %4413
    %v4416 = vmul.f32 %v4374, %v4389
    %v4417 = vmul.f32 %v4375, %v4394
    %v4418 = vmul.f32 %v4376, %v4399
    %v4419 = vmul.f32 %v4377, %v4404
    %v4420 = vmul.f32 %v4378, %v4409
    %v4421 = vmul.f32 %v4379, %v4414
    %v4422 = vld [vmem:[%s2 + $0x698] sm:$0xff]
    %v4423 = vld [vmem:[%s2 + $0x6a0] sm:$0xff]
    %v4424 = vld [vmem:[%s2 + $0x6a8] sm:$0xff]
    %v4425 = vld [vmem:[%s2 + $0x6b0] sm:$0xff]
    %v4426 = vld [vmem:[%s2 + $0x6b8] sm:$0xff]
    %v4427 = vld [vmem:[%s2 + $0x6c0] sm:$0xff]
    %4429 = vset.pattern.permute.xlu0 0
    %4430 = vperm.xlu0 %4429, %v4422
    %v4431 = vpop.permute.xlu0 %4430
    %4434 = vset.pattern.permute.xlu0 0
    %4435 = vperm.xlu0 %4434, %v4423
    %v4436 = vpop.permute.xlu0 %4435
    %4439 = vset.pattern.permute.xlu0 0
    %4440 = vperm.xlu0 %4439, %v4424
    %v4441 = vpop.permute.xlu0 %4440
    %4444 = vset.pattern.permute.xlu0 0
    %4445 = vperm.xlu0 %4444, %v4425
    %v4446 = vpop.permute.xlu0 %4445
    %4449 = vset.pattern.permute.xlu0 0
    %4450 = vperm.xlu0 %4449, %v4426
    %v4451 = vpop.permute.xlu0 %4450
    %4454 = vset.pattern.permute.xlu0 0
    %4455 = vperm.xlu0 %4454, %v4427
    %v4456 = vpop.permute.xlu0 %4455
    %v4458 = vadd.f32 %v4416, %v4431
    %v4459 = vadd.f32 %v4417, %v4436
    %v4460 = vadd.f32 %v4418, %v4441
    %v4461 = vadd.f32 %v4419, %v4446
    %v4462 = vadd.f32 %v4420, %v4451
    %v4463 = vadd.f32 %v4421, %v4456
    %v4464 = vtanh.pop %v4458
    %v4465 = vtanh.pop %v4459
    %v4466 = vtanh.pop %v4460
    %v4467 = vtanh.pop %v4461
    %v4468 = vtanh.pop %v4462
    %v4469 = vtanh.pop %v4463
    %v4470 = vld [vmem:[%s1 + $0x208] sm:$0xff]
    %v4471 = vld [vmem:[%s1 + $0x210] sm:$0xff]
    %v4472 = vld [vmem:[%s1 + $0x218] sm:$0xf]
    %v4473 = vld [vmem:[%s2 + $0x6c8] sm:$0xff]
    %v4474 = vld [vmem:[%s2 + $0x6d0] sm:$0xff]
    %v4475 = vld [vmem:[%s2 + $0x6d8] sm:$0xf]
    %4477 = vset.pattern.permute.xlu0 0
    %4478 = vperm.xlu0 %4477, %v4473
    %v4479 = vpop.permute.xlu0 %4478
    %4482 = vset.pattern.permute.xlu0 0
    %4483 = vperm.xlu0 %4482, %v4474
    %v4484 = vpop.permute.xlu0 %4483
    %4487 = vset.pattern.permute.xlu0 0
    %4488 = vperm.xlu0 %4487, %v4475
    %v4489 = vpop.permute.xlu0 %4488
    %vm4491 = vcmask 392192
    %v4493 = vsel %vm4491, %v4470, 0
    %v4496 = vsel %vm4491, %v4471, 0
    %v4499 = vsel %vm4491, %v4472, 0
    %4501 = vmatprep.subr.mxu0 0.0
    %4502 = vmatpush1.msra.mxu0 %v4464
    %4503 = vmatprep.subr.mxu0 0.0
    %4504 = vmatpush1.msra.mxu0 %v4465
    %4505 = vmatprep.subr.mxu0 0.0
    %4506 = vmatpush1.msra.mxu0 %v4466
    %4507 = vmatprep.subr.mxu0 0.0
    %4508 = vmatpush1.msra.mxu0 %v4467
    %4509 = vmatprep.subr.mxu0 0.0
    %4510 = vmatpush1.msra.mxu0 %v4468
    %4511 = vmatprep.subr.mxu0 0.0
    %4512 = vmatpush1.msra.mxu0 %v4469
    %4513 = vmatprep.subr.mxu0 0.0
    %4514 = vmatpush1.msra.mxu0 0.0
    %4515 = vmatprep.subr.mxu0 0.0
    %4516 = vmatpush1.msra.mxu0 0.0
    %4517 = vmatprep.subr.mxu0 0.0
    %4518 = vmatpush1.msra.mxu0 0.0
    %4519 = vmatprep.subr.mxu0 0.0
    %4520 = vmatpush1.msra.mxu0 0.0
    %4521 = vmatprep.subr.mxu0 0.0
    %4522 = vmatpush1.msra.mxu0 0.0
    %4523 = vmatprep.subr.mxu0 0.0
    %4524 = vmatpush1.msra.mxu0 0.0
    %4525 = vmatprep.subr.mxu0 0.0
    %4526 = vmatpush1.msra.mxu0 0.0
    %4527 = vmatprep.subr.mxu0 0.0
    %4528 = vmatpush1.msra.mxu0 0.0
    %4529 = vmatprep.subr.mxu0 0.0
    %4530 = vmatpush1.msra.mxu0 0.0
    %4531 = vmatprep.subr.mxu0 0.0
    %4532 = vmatpush1.msra.mxu0 0.0
    %4533 = vmatprep.subr.mxu0 0.0
    %4534 = vmatpush1.msra.mxu0 0.0
    %4535 = vmatprep.subr.mxu0 0.0
    %4536 = vmatpush1.msra.mxu0 0.0
    %4537 = vmatprep.subr.mxu0 0.0
    %4538 = vmatpush1.msra.mxu0 0.0
    %4539 = vmatprep.subr.mxu0 0.0
    %4540 = vmatpush1.msra.mxu0 0.0
    %4541 = vmatprep.subr.mxu0 0.0
    %4542 = vmatpush1.msra.mxu0 0.0
    %4543 = vmatprep.subr.mxu0 0.0
    %4544 = vmatpush1.msra.mxu0 0.0
    %4545 = vmatprep.subr.mxu0 0.0
    %4546 = vmatpush1.msra.mxu0 0.0
    %4547 = vmatprep.subr.mxu0 0.0
    %4548 = vmatpush1.msra.mxu0 0.0
    %4549 = vmatprep.subr.mxu0 0.0
    %4550 = vmatpush1.msra.mxu0 0.0
    %4551 = vmatprep.subr.mxu0 0.0
    %4552 = vmatpush1.msra.mxu0 0.0
    %4553 = vmatprep.subr.mxu0 0.0
    %4554 = vmatpush1.msra.mxu0 0.0
    %4555 = vmatprep.subr.mxu0 0.0
    %4556 = vmatpush1.msra.mxu0 0.0
    %4557 = vmatprep.subr.mxu0 0.0
    %4558 = vmatpush1.msra.mxu0 0.0
    %4559 = vmatprep.subr.mxu0 0.0
    %4560 = vmatpush1.msra.mxu0 0.0
    %4561 = vmatprep.subr.mxu0 0.0
    %4562 = vmatpush1.msra.mxu0 0.0
    %4563 = vmatprep.subr.mxu0 0.0
    %4564 = vmatpush1.msra.mxu0 0.0
    %4565 = vmatprep.mubr.f32.mxu0 0.0
    %4566 = vmatmul.mubr.f32.gmra.mrb[0].mxu0 %v4493
    %v4567 = vpop.f32.mrb[0].mxu0
    %v4568 = vadd.f32 %v4479, %v4567
    %v4569 = vpop.f32.mrb[0].mxu0
    %4570 = vmatprep.mubr.f32.mxu0 0.0
    %4571 = vmatmul.mubr.f32.gmra.mrb[0].mxu0 %v4496
    %v4572 = vpop.f32.mrb[0].mxu0
    %v4573 = vadd.f32 %v4484, %v4572
    %v4574 = vpop.f32.mrb[0].mxu0
    %4575 = vmatprep.mubr.f32.mxu0 0.0
    %4576 = vmatmul.mubr.f32.gmra.mrb[0].mxu0 %v4499
    %v4577 = vpop.f32.mrb[0].mxu0
    %v4578 = vadd.f32 %v4489, %v4577
    %v4579 = vpop.f32.mrb[0].mxu0
    %4580 = vdwg.mxu0
    %v4581 = vtanh.pop %v4568
    %v4582 = vtanh.pop %v4573
    %v4583 = vtanh.pop %v4578
    %v4584 = vld [vmem:[%s1 + $0x220] sm:$0x1f]
    %v4585 = vld [vmem:[%s2 + $0x6e0] sm:$0x1f]
    %4587 = vset.pattern.permute.xlu0 0
    %4588 = vperm.xlu0 %4587, %v4585
    %v4589 = vpop.permute.xlu0 %4588
    %v4592 = vsel %vm176, %v4584, 0
    %v4595 = vsel %vm180, %v4583, 0
    %4597 = vmatprep.subr.mxu0 0.0
    %4598 = vmatpush1.msra.mxu0 %v4581
    %4599 = vmatprep.subr.mxu0 0.0
    %4600 = vmatpush1.msra.mxu0 %v4582
    %4601 = vmatprep.subr.mxu0 0.0
    %4602 = vmatpush1.msra.mxu0 %v4595
    %4603 = vmatprep.subr.mxu0 0.0
    %4604 = vmatpush1.msra.mxu0 0.0
    %4605 = vmatprep.subr.mxu0 0.0
    %4606 = vmatpush1.msra.mxu0 0.0
    %4607 = vmatprep.subr.mxu0 0.0
    %4608 = vmatpush1.msra.mxu0 0.0
    %4609 = vmatprep.subr.mxu0 0.0
    %4610 = vmatpush1.msra.mxu0 0.0
    %4611 = vmatprep.subr.mxu0 0.0
    %4612 = vmatpush1.msra.mxu0 0.0
    %4613 = vmatprep.subr.mxu0 0.0
    %4614 = vmatpush1.msra.mxu0 0.0
    %4615 = vmatprep.subr.mxu0 0.0
    %4616 = vmatpush1.msra.mxu0 0.0
    %4617 = vmatprep.subr.mxu0 0.0
    %4618 = vmatpush1.msra.mxu0 0.0
    %4619 = vmatprep.subr.mxu0 0.0
    %4620 = vmatpush1.msra.mxu0 0.0
    %4621 = vmatprep.subr.mxu0 0.0
    %4622 = vmatpush1.msra.mxu0 0.0
    %4623 = vmatprep.subr.mxu0 0.0
    %4624 = vmatpush1.msra.mxu0 0.0
    %4625 = vmatprep.subr.mxu0 0.0
    %4626 = vmatpush1.msra.mxu0 0.0
    %4627 = vmatprep.subr.mxu0 0.0
    %4628 = vmatpush1.msra.mxu0 0.0
    %4629 = vmatprep.subr.mxu0 0.0
    %4630 = vmatpush1.msra.mxu0 0.0
    %4631 = vmatprep.subr.mxu0 0.0
    %4632 = vmatpush1.msra.mxu0 0.0
    %4633 = vmatprep.subr.mxu0 0.0
    %4634 = vmatpush1.msra.mxu0 0.0
    %4635 = vmatprep.subr.mxu0 0.0
    %4636 = vmatpush1.msra.mxu0 0.0
    %4637 = vmatprep.subr.mxu0 0.0
    %4638 = vmatpush1.msra.mxu0 0.0
    %4639 = vmatprep.subr.mxu0 0.0
    %4640 = vmatpush1.msra.mxu0 0.0
    %4641 = vmatprep.subr.mxu0 0.0
    %4642 = vmatpush1.msra.mxu0 0.0
    %4643 = vmatprep.subr.mxu0 0.0
    %4644 = vmatpush1.msra.mxu0 0.0
    %4645 = vmatprep.subr.mxu0 0.0
    %4646 = vmatpush1.msra.mxu0 0.0
    %4647 = vmatprep.subr.mxu0 0.0
    %4648 = vmatpush1.msra.mxu0 0.0
    %4649 = vmatprep.subr.mxu0 0.0
    %4650 = vmatpush1.msra.mxu0 0.0
    %4651 = vmatprep.subr.mxu0 0.0
    %4652 = vmatpush1.msra.mxu0 0.0
    %4653 = vmatprep.subr.mxu0 0.0
    %4654 = vmatpush1.msra.mxu0 0.0
    %4655 = vmatprep.subr.mxu0 0.0
    %4656 = vmatpush1.msra.mxu0 0.0
    %4657 = vmatprep.subr.mxu0 0.0
    %4658 = vmatpush1.msra.mxu0 0.0
    %4659 = vmatprep.subr.mxu0 0.0
    %4660 = vmatpush1.msra.mxu0 0.0
    %4661 = vmatprep.mubr.f32.mxu0 0.0
    %4662 = vmatmul.mubr.f32.gmra.mrb[0].mxu0 %v4592
    %v4663 = vpop.f32.mrb[0].mxu0
    %v4664 = vadd.f32 %v4589, %v4663
    %v4665 = vpop.f32.mrb[0].mxu0
    %4666 = vdwg.mxu0
    %4667 = vst [vmem:[#allocation2 + $0x30] sm:$0x1f] %v4664
    %v4668 = vld [vmem:[#allocation2] sm:$0xff]
    %v4669 = vld [vmem:[#allocation2 + $0x8] sm:$0xff]
    %v4670 = vld [vmem:[#allocation2 + $0x10] sm:$0xff]
    %v4671 = vld [vmem:[#allocation2 + $0x18] sm:$0xff]
    %v4672 = vld [vmem:[#allocation2 + $0x20] sm:$0xff]
    %v4673 = vld [vmem:[#allocation2 + $0x28] sm:$0xff]
    %v4674 = vld [vmem:[#allocation2 + $0x30] sm:$0x1f]
    %v4675 = vld [vmem:[%s2 + $0x6e8] sm:$0xff]
    %v4676 = vld [vmem:[%s2 + $0x6f0] sm:$0xff]
    %v4677 = vld [vmem:[%s2 + $0x6f8] sm:$0xff]
    %v4678 = vld [vmem:[%s2 + $0x700] sm:$0xff]
    %v4679 = vld [vmem:[%s2 + $0x708] sm:$0xff]
    %v4680 = vld [vmem:[%s2 + $0x710] sm:$0xff]
    %v4681 = vld [vmem:[%s2 + $0x718] sm:$0x1f]
    %4683 = vset.pattern.permute.xlu0 0
    %4684 = vperm.xlu0 %4683, %v4675
    %v4685 = vpop.permute.xlu0 %4684
    %4688 = vset.pattern.permute.xlu0 0
    %4689 = vperm.xlu0 %4688, %v4676
    %v4690 = vpop.permute.xlu0 %4689
    %4693 = vset.pattern.permute.xlu0 0
    %4694 = vperm.xlu0 %4693, %v4677
    %v4695 = vpop.permute.xlu0 %4694
    %4698 = vset.pattern.permute.xlu0 0
    %4699 = vperm.xlu0 %4698, %v4678
    %v4700 = vpop.permute.xlu0 %4699
    %4703 = vset.pattern.permute.xlu0 0
    %4704 = vperm.xlu0 %4703, %v4679
    %v4705 = vpop.permute.xlu0 %4704
    %4708 = vset.pattern.permute.xlu0 0
    %4709 = vperm.xlu0 %4708, %v4680
    %v4710 = vpop.permute.xlu0 %4709
    %4713 = vset.pattern.permute.xlu0 0
    %4714 = vperm.xlu0 %4713, %v4681
    %v4715 = vpop.permute.xlu0 %4714
    %v4717 = vmul.f32 %v4668, %v4685
    %v4718 = vmul.f32 %v4669, %v4690
    %v4719 = vmul.f32 %v4670, %v4695
    %v4720 = vmul.f32 %v4671, %v4700
    %v4721 = vmul.f32 %v4672, %v4705
    %v4722 = vmul.f32 %v4673, %v4710
    %v4723 = vmul.f32 %v4674, %v4715
    %v4724 = vld [vmem:[%s2 + $0x720] sm:$0xff]
    %v4725 = vld [vmem:[%s2 + $0x728] sm:$0xff]
    %v4726 = vld [vmem:[%s2 + $0x730] sm:$0xff]
    %v4727 = vld [vmem:[%s2 + $0x738] sm:$0xff]
    %v4728 = vld [vmem:[%s2 + $0x740] sm:$0xff]
    %v4729 = vld [vmem:[%s2 + $0x748] sm:$0xff]
    %v4730 = vld [vmem:[%s2 + $0x750] sm:$0x1f]
    %4732 = vset.pattern.permute.xlu0 0
    %4733 = vperm.xlu0 %4732, %v4724
    %v4734 = vpop.permute.xlu0 %4733
    %4737 = vset.pattern.permute.xlu0 0
    %4738 = vperm.xlu0 %4737, %v4725
    %v4739 = vpop.permute.xlu0 %4738
    %4742 = vset.pattern.permute.xlu0 0
    %4743 = vperm.xlu0 %4742, %v4726
    %v4744 = vpop.permute.xlu0 %4743
    %4747 = vset.pattern.permute.xlu0 0
    %4748 = vperm.xlu0 %4747, %v4727
    %v4749 = vpop.permute.xlu0 %4748
    %4752 = vset.pattern.permute.xlu0 0
    %4753 = vperm.xlu0 %4752, %v4728
    %v4754 = vpop.permute.xlu0 %4753
    %4757 = vset.pattern.permute.xlu0 0
    %4758 = vperm.xlu0 %4757, %v4729
    %v4759 = vpop.permute.xlu0 %4758
    %4762 = vset.pattern.permute.xlu0 0
    %4763 = vperm.xlu0 %4762, %v4730
    %v4764 = vpop.permute.xlu0 %4763
    %v4766 = vadd.f32 %v4717, %v4734
    %v4767 = vadd.f32 %v4718, %v4739
    %v4768 = vadd.f32 %v4719, %v4744
    %v4769 = vadd.f32 %v4720, %v4749
    %v4770 = vadd.f32 %v4721, %v4754
    %v4771 = vadd.f32 %v4722, %v4759
    %v4772 = vadd.f32 %v4723, %v4764
    %v4773 = vtanh.pop %v4766
    %v4774 = vtanh.pop %v4767
    %v4775 = vtanh.pop %v4768
    %v4776 = vtanh.pop %v4769
    %v4777 = vtanh.pop %v4770
    %v4778 = vtanh.pop %v4771
    %v4779 = vtanh.pop %v4772
    %v4780 = vld [vmem:[%s1 + $0x228] sm:$0xff]
    %v4781 = vld [vmem:[%s1 + $0x230] sm:$0xff]
    %v4782 = vld [vmem:[%s1 + $0x238] sm:$0xf]
    %v4783 = vld [vmem:[%s2 + $0x758] sm:$0xff]
    %v4784 = vld [vmem:[%s2 + $0x760] sm:$0xff]
    %v4785 = vld [vmem:[%s2 + $0x768] sm:$0xf]
    %4787 = vset.pattern.permute.xlu0 0
    %4788 = vperm.xlu0 %4787, %v4783
    %v4789 = vpop.permute.xlu0 %4788
    %4792 = vset.pattern.permute.xlu0 0
    %4793 = vperm.xlu0 %4792, %v4784
    %v4794 = vpop.permute.xlu0 %4793
    %4797 = vset.pattern.permute.xlu0 0
    %4798 = vperm.xlu0 %4797, %v4785
    %v4799 = vpop.permute.xlu0 %4798
    %vm4801 = vcmask 433152
    %v4803 = vsel %vm4801, %v4780, 0
    %v4806 = vsel %vm4801, %v4781, 0
    %v4809 = vsel %vm4801, %v4782, 0
    %v4812 = vsel %vm82, %v4779, 0
    %4814 = vmatprep.subr.mxu0 0.0
    %4815 = vmatpush1.msra.mxu0 %v4773
    %4816 = vmatprep.subr.mxu0 0.0
    %4817 = vmatpush1.msra.mxu0 %v4774
    %4818 = vmatprep.subr.mxu0 0.0
    %4819 = vmatpush1.msra.mxu0 %v4775
    %4820 = vmatprep.subr.mxu0 0.0
    %4821 = vmatpush1.msra.mxu0 %v4776
    %4822 = vmatprep.subr.mxu0 0.0
    %4823 = vmatpush1.msra.mxu0 %v4777
    %4824 = vmatprep.subr.mxu0 0.0
    %4825 = vmatpush1.msra.mxu0 %v4778
    %4826 = vmatprep.subr.mxu0 0.0
    %4827 = vmatpush1.msra.mxu0 %v4812
    %4828 = vmatprep.subr.mxu0 0.0
    %4829 = vmatpush1.msra.mxu0 0.0
    %4830 = vmatprep.subr.mxu0 0.0
    %4831 = vmatpush1.msra.mxu0 0.0
    %4832 = vmatprep.subr.mxu0 0.0
    %4833 = vmatpush1.msra.mxu0 0.0
    %4834 = vmatprep.subr.mxu0 0.0
    %4835 = vmatpush1.msra.mxu0 0.0
    %4836 = vmatprep.subr.mxu0 0.0
    %4837 = vmatpush1.msra.mxu0 0.0
    %4838 = vmatprep.subr.mxu0 0.0
    %4839 = vmatpush1.msra.mxu0 0.0
    %4840 = vmatprep.subr.mxu0 0.0
    %4841 = vmatpush1.msra.mxu0 0.0
    %4842 = vmatprep.subr.mxu0 0.0
    %4843 = vmatpush1.msra.mxu0 0.0
    %4844 = vmatprep.subr.mxu0 0.0
    %4845 = vmatpush1.msra.mxu0 0.0
    %4846 = vmatprep.subr.mxu0 0.0
    %4847 = vmatpush1.msra.mxu0 0.0
    %4848 = vmatprep.subr.mxu0 0.0
    %4849 = vmatpush1.msra.mxu0 0.0
    %4850 = vmatprep.subr.mxu0 0.0
    %4851 = vmatpush1.msra.mxu0 0.0
    %4852 = vmatprep.subr.mxu0 0.0
    %4853 = vmatpush1.msra.mxu0 0.0
    %4854 = vmatprep.subr.mxu0 0.0
    %4855 = vmatpush1.msra.mxu0 0.0
    %4856 = vmatprep.subr.mxu0 0.0
    %4857 = vmatpush1.msra.mxu0 0.0
    %4858 = vmatprep.subr.mxu0 0.0
    %4859 = vmatpush1.msra.mxu0 0.0
    %4860 = vmatprep.subr.mxu0 0.0
    %4861 = vmatpush1.msra.mxu0 0.0
    %4862 = vmatprep.subr.mxu0 0.0
    %4863 = vmatpush1.msra.mxu0 0.0
    %4864 = vmatprep.subr.mxu0 0.0
    %4865 = vmatpush1.msra.mxu0 0.0
    %4866 = vmatprep.subr.mxu0 0.0
    %4867 = vmatpush1.msra.mxu0 0.0
    %4868 = vmatprep.subr.mxu0 0.0
    %4869 = vmatpush1.msra.mxu0 0.0
    %4870 = vmatprep.subr.mxu0 0.0
    %4871 = vmatpush1.msra.mxu0 0.0
    %4872 = vmatprep.subr.mxu0 0.0
    %4873 = vmatpush1.msra.mxu0 0.0
    %4874 = vmatprep.subr.mxu0 0.0
    %4875 = vmatpush1.msra.mxu0 0.0
    %4876 = vmatprep.subr.mxu0 0.0
    %4877 = vmatpush1.msra.mxu0 0.0
    %4878 = vmatprep.mubr.f32.mxu0 0.0
    %4879 = vmatmul.mubr.f32.gmra.mrb[0].mxu0 %v4803
    %v4880 = vpop.f32.mrb[0].mxu0
    %v4881 = vadd.f32 %v4789, %v4880
    %v4882 = vpop.f32.mrb[0].mxu0
    %4883 = vmatprep.mubr.f32.mxu0 0.0
    %4884 = vmatmul.mubr.f32.gmra.mrb[0].mxu0 %v4806
    %v4885 = vpop.f32.mrb[0].mxu0
    %v4886 = vadd.f32 %v4794, %v4885
    %v4887 = vpop.f32.mrb[0].mxu0
    %4888 = vmatprep.mubr.f32.mxu0 0.0
    %4889 = vmatmul.mubr.f32.gmra.mrb[0].mxu0 %v4809
    %v4890 = vpop.f32.mrb[0].mxu0
    %v4891 = vadd.f32 %v4799, %v4890
    %v4892 = vpop.f32.mrb[0].mxu0
    %4893 = vdwg.mxu0
    %v4894 = vtanh.pop %v4881
    %v4895 = vtanh.pop %v4886
    %v4896 = vtanh.pop %v4891
    %v4897 = vld [vmem:[%s1 + $0x240] sm:$0x1f]
    %v4898 = vld [vmem:[%s2 + $0x770] sm:$0x1f]
    %4900 = vset.pattern.permute.xlu0 0
    %4901 = vperm.xlu0 %4900, %v4898
    %v4902 = vpop.permute.xlu0 %4901
    %v4905 = vsel %vm176, %v4897, 0
    %v4908 = vsel %vm180, %v4896, 0
    %4910 = vmatprep.subr.mxu0 0.0
    %4911 = vmatpush1.msra.mxu0 %v4894
    %4912 = vmatprep.subr.mxu0 0.0
    %4913 = vmatpush1.msra.mxu0 %v4895
    %4914 = vmatprep.subr.mxu0 0.0
    %4915 = vmatpush1.msra.mxu0 %v4908
    %4916 = vmatprep.subr.mxu0 0.0
    %4917 = vmatpush1.msra.mxu0 0.0
    %4918 = vmatprep.subr.mxu0 0.0
    %4919 = vmatpush1.msra.mxu0 0.0
    %4920 = vmatprep.subr.mxu0 0.0
    %4921 = vmatpush1.msra.mxu0 0.0
    %4922 = vmatprep.subr.mxu0 0.0
    %4923 = vmatpush1.msra.mxu0 0.0
    %4924 = vmatprep.subr.mxu0 0.0
    %4925 = vmatpush1.msra.mxu0 0.0
    %4926 = vmatprep.subr.mxu0 0.0
    %4927 = vmatpush1.msra.mxu0 0.0
    %4928 = vmatprep.subr.mxu0 0.0
    %4929 = vmatpush1.msra.mxu0 0.0
    %4930 = vmatprep.subr.mxu0 0.0
    %4931 = vmatpush1.msra.mxu0 0.0
    %4932 = vmatprep.subr.mxu0 0.0
    %4933 = vmatpush1.msra.mxu0 0.0
    %4934 = vmatprep.subr.mxu0 0.0
    %4935 = vmatpush1.msra.mxu0 0.0
    %4936 = vmatprep.subr.mxu0 0.0
    %4937 = vmatpush1.msra.mxu0 0.0
    %4938 = vmatprep.subr.mxu0 0.0
    %4939 = vmatpush1.msra.mxu0 0.0
    %4940 = vmatprep.subr.mxu0 0.0
    %4941 = vmatpush1.msra.mxu0 0.0
    %4942 = vmatprep.subr.mxu0 0.0
    %4943 = vmatpush1.msra.mxu0 0.0
    %4944 = vmatprep.subr.mxu0 0.0
    %4945 = vmatpush1.msra.mxu0 0.0
    %4946 = vmatprep.subr.mxu0 0.0
    %4947 = vmatpush1.msra.mxu0 0.0
    %4948 = vmatprep.subr.mxu0 0.0
    %4949 = vmatpush1.msra.mxu0 0.0
    %4950 = vmatprep.subr.mxu0 0.0
    %4951 = vmatpush1.msra.mxu0 0.0
    %4952 = vmatprep.subr.mxu0 0.0
    %4953 = vmatpush1.msra.mxu0 0.0
    %4954 = vmatprep.subr.mxu0 0.0
    %4955 = vmatpush1.msra.mxu0 0.0
    %4956 = vmatprep.subr.mxu0 0.0
    %4957 = vmatpush1.msra.mxu0 0.0
    %4958 = vmatprep.subr.mxu0 0.0
    %4959 = vmatpush1.msra.mxu0 0.0
    %4960 = vmatprep.subr.mxu0 0.0
    %4961 = vmatpush1.msra.mxu0 0.0
    %4962 = vmatprep.subr.mxu0 0.0
    %4963 = vmatpush1.msra.mxu0 0.0
    %4964 = vmatprep.subr.mxu0 0.0
    %4965 = vmatpush1.msra.mxu0 0.0
    %4966 = vmatprep.subr.mxu0 0.0
    %4967 = vmatpush1.msra.mxu0 0.0
    %4968 = vmatprep.subr.mxu0 0.0
    %4969 = vmatpush1.msra.mxu0 0.0
    %4970 = vmatprep.subr.mxu0 0.0
    %4971 = vmatpush1.msra.mxu0 0.0
    %4972 = vmatprep.subr.mxu0 0.0
    %4973 = vmatpush1.msra.mxu0 0.0
    %4974 = vmatprep.mubr.f32.mxu0 0.0
    %4975 = vmatmul.mubr.f32.gmra.mrb[0].mxu0 %v4905
    %v4976 = vpop.f32.mrb[0].mxu0
    %v4977 = vadd.f32 %v4902, %v4976
    %v4978 = vpop.f32.mrb[0].mxu0
    %4979 = vdwg.mxu0
    %4980 = vst [vmem:[#allocation2 + $0x35] sm:$0x1f] %v4977
    %v4981 = vld [vmem:[#allocation2] sm:$0xff]
    %v4982 = vld [vmem:[#allocation2 + $0x8] sm:$0xff]
    %v4983 = vld [vmem:[#allocation2 + $0x10] sm:$0xff]
    %v4984 = vld [vmem:[#allocation2 + $0x18] sm:$0xff]
    %v4985 = vld [vmem:[#allocation2 + $0x20] sm:$0xff]
    %v4986 = vld [vmem:[#allocation2 + $0x28] sm:$0xff]
    %v4987 = vld [vmem:[#allocation2 + $0x30] sm:$0xff]
    %v4988 = vld [vmem:[#allocation2 + $0x38] sm:$0x3]
    %v4989 = vld [vmem:[%s2 + $0x778] sm:$0xff]
    %v4990 = vld [vmem:[%s2 + $0x780] sm:$0xff]
    %v4991 = vld [vmem:[%s2 + $0x788] sm:$0xff]
    %v4992 = vld [vmem:[%s2 + $0x790] sm:$0xff]
    %v4993 = vld [vmem:[%s2 + $0x798] sm:$0xff]
    %v4994 = vld [vmem:[%s2 + $0x7a0] sm:$0xff]
    %v4995 = vld [vmem:[%s2 + $0x7a8] sm:$0xff]
    %v4996 = vld [vmem:[%s2 + $0x7b0] sm:$0x3]
    %4998 = vset.pattern.permute.xlu0 0
    %4999 = vperm.xlu0 %4998, %v4989
    %v5000 = vpop.permute.xlu0 %4999
    %5003 = vset.pattern.permute.xlu0 0
    %5004 = vperm.xlu0 %5003, %v4990
    %v5005 = vpop.permute.xlu0 %5004
    %5008 = vset.pattern.permute.xlu0 0
    %5009 = vperm.xlu0 %5008, %v4991
    %v5010 = vpop.permute.xlu0 %5009
    %5013 = vset.pattern.permute.xlu0 0
    %5014 = vperm.xlu0 %5013, %v4992
    %v5015 = vpop.permute.xlu0 %5014
    %5018 = vset.pattern.permute.xlu0 0
    %5019 = vperm.xlu0 %5018, %v4993
    %v5020 = vpop.permute.xlu0 %5019
    %5023 = vset.pattern.permute.xlu0 0
    %5024 = vperm.xlu0 %5023, %v4994
    %v5025 = vpop.permute.xlu0 %5024
    %5028 = vset.pattern.permute.xlu0 0
    %5029 = vperm.xlu0 %5028, %v4995
    %v5030 = vpop.permute.xlu0 %5029
    %5033 = vset.pattern.permute.xlu0 0
    %5034 = vperm.xlu0 %5033, %v4996
    %v5035 = vpop.permute.xlu0 %5034
    %v5037 = vmul.f32 %v4981, %v5000
    %v5038 = vmul.f32 %v4982, %v5005
    %v5039 = vmul.f32 %v4983, %v5010
    %v5040 = vmul.f32 %v4984, %v5015
    %v5041 = vmul.f32 %v4985, %v5020
    %v5042 = vmul.f32 %v4986, %v5025
    %v5043 = vmul.f32 %v4987, %v5030
    %v5044 = vmul.f32 %v4988, %v5035
    %v5045 = vld [vmem:[%s2 + $0x7b8] sm:$0xff]
    %v5046 = vld [vmem:[%s2 + $0x7c0] sm:$0xff]
    %v5047 = vld [vmem:[%s2 + $0x7c8] sm:$0xff]
    %v5048 = vld [vmem:[%s2 + $0x7d0] sm:$0xff]
    %v5049 = vld [vmem:[%s2 + $0x7d8] sm:$0xff]
    %v5050 = vld [vmem:[%s2 + $0x7e0] sm:$0xff]
    %v5051 = vld [vmem:[%s2 + $0x7e8] sm:$0xff]
    %v5052 = vld [vmem:[%s2 + $0x7f0] sm:$0x3]
    %5054 = vset.pattern.permute.xlu0 0
    %5055 = vperm.xlu0 %5054, %v5045
    %v5056 = vpop.permute.xlu0 %5055
    %5059 = vset.pattern.permute.xlu0 0
    %5060 = vperm.xlu0 %5059, %v5046
    %v5061 = vpop.permute.xlu0 %5060
    %5064 = vset.pattern.permute.xlu0 0
    %5065 = vperm.xlu0 %5064, %v5047
    %v5066 = vpop.permute.xlu0 %5065
    %5069 = vset.pattern.permute.xlu0 0
    %5070 = vperm.xlu0 %5069, %v5048
    %v5071 = vpop.permute.xlu0 %5070
    %5074 = vset.pattern.permute.xlu0 0
    %5075 = vperm.xlu0 %5074, %v5049
    %v5076 = vpop.permute.xlu0 %5075
    %5079 = vset.pattern.permute.xlu0 0
    %5080 = vperm.xlu0 %5079, %v5050
    %v5081 = vpop.permute.xlu0 %5080
    %5084 = vset.pattern.permute.xlu0 0
    %5085 = vperm.xlu0 %5084, %v5051
    %v5086 = vpop.permute.xlu0 %5085
    %5089 = vset.pattern.permute.xlu0 0
    %5090 = vperm.xlu0 %5089, %v5052
    %v5091 = vpop.permute.xlu0 %5090
    %v5093 = vadd.f32 %v5037, %v5056
    %v5094 = vadd.f32 %v5038, %v5061
    %v5095 = vadd.f32 %v5039, %v5066
    %v5096 = vadd.f32 %v5040, %v5071
    %v5097 = vadd.f32 %v5041, %v5076
    %v5098 = vadd.f32 %v5042, %v5081
    %v5099 = vadd.f32 %v5043, %v5086
    %v5100 = vadd.f32 %v5044, %v5091
    %v5101 = vtanh.pop %v5093
    %v5102 = vtanh.pop %v5094
    %v5103 = vtanh.pop %v5095
    %v5104 = vtanh.pop %v5096
    %v5105 = vtanh.pop %v5097
    %v5106 = vtanh.pop %v5098
    %v5107 = vtanh.pop %v5099
    %v5108 = vtanh.pop %v5100
    %v5109 = vld [vmem:[%s1 + $0x248] sm:$0xff]
    %v5110 = vld [vmem:[%s1 + $0x250] sm:$0xff]
    %v5111 = vld [vmem:[%s1 + $0x258] sm:$0xf]
    %v5112 = vld [vmem:[%s2 + $0x7f8] sm:$0xff]
    %v5113 = vld [vmem:[%s2 + $0x800] sm:$0xff]
    %v5114 = vld [vmem:[%s2 + $0x808] sm:$0xf]
    %5116 = vset.pattern.permute.xlu0 0
    %5117 = vperm.xlu0 %5116, %v5112
    %v5118 = vpop.permute.xlu0 %5117
    %5121 = vset.pattern.permute.xlu0 0
    %5122 = vperm.xlu0 %5121, %v5113
    %v5123 = vpop.permute.xlu0 %5122
    %5126 = vset.pattern.permute.xlu0 0
    %5127 = vperm.xlu0 %5126, %v5114
    %v5128 = vpop.permute.xlu0 %5127
    %vm5130 = vcmask 474112
    %v5132 = vsel %vm5130, %v5109, 0
    %v5135 = vsel %vm5130, %v5110, 0
    %v5138 = vsel %vm5130, %v5111, 0
    %v5141 = vsel %vm334, %v5108, 0
    %5143 = vmatprep.subr.mxu0 0.0
    %5144 = vmatpush1.msra.mxu0 %v5101
    %5145 = vmatprep.subr.mxu0 0.0
    %5146 = vmatpush1.msra.mxu0 %v5102
    %5147 = vmatprep.subr.mxu0 0.0
    %5148 = vmatpush1.msra.mxu0 %v5103
    %5149 = vmatprep.subr.mxu0 0.0
    %5150 = vmatpush1.msra.mxu0 %v5104
    %5151 = vmatprep.subr.mxu0 0.0
    %5152 = vmatpush1.msra.mxu0 %v5105
    %5153 = vmatprep.subr.mxu0 0.0
    %5154 = vmatpush1.msra.mxu0 %v5106
    %5155 = vmatprep.subr.mxu0 0.0
    %5156 = vmatpush1.msra.mxu0 %v5107
    %5157 = vmatprep.subr.mxu0 0.0
    %5158 = vmatpush1.msra.mxu0 %v5141
    %5159 = vmatprep.subr.mxu0 0.0
    %5160 = vmatpush1.msra.mxu0 0.0
    %5161 = vmatprep.subr.mxu0 0.0
    %5162 = vmatpush1.msra.mxu0 0.0
    %5163 = vmatprep.subr.mxu0 0.0
    %5164 = vmatpush1.msra.mxu0 0.0
    %5165 = vmatprep.subr.mxu0 0.0
    %5166 = vmatpush1.msra.mxu0 0.0
    %5167 = vmatprep.subr.mxu0 0.0
    %5168 = vmatpush1.msra.mxu0 0.0
    %5169 = vmatprep.subr.mxu0 0.0
    %5170 = vmatpush1.msra.mxu0 0.0
    %5171 = vmatprep.subr.mxu0 0.0
    %5172 = vmatpush1.msra.mxu0 0.0
    %5173 = vmatprep.subr.mxu0 0.0
    %5174 = vmatpush1.msra.mxu0 0.0
    %5175 = vmatprep.subr.mxu0 0.0
    %5176 = vmatpush1.msra.mxu0 0.0
    %5177 = vmatprep.subr.mxu0 0.0
    %5178 = vmatpush1.msra.mxu0 0.0
    %5179 = vmatprep.subr.mxu0 0.0
    %5180 = vmatpush1.msra.mxu0 0.0
    %5181 = vmatprep.subr.mxu0 0.0
    %5182 = vmatpush1.msra.mxu0 0.0
    %5183 = vmatprep.subr.mxu0 0.0
    %5184 = vmatpush1.msra.mxu0 0.0
    %5185 = vmatprep.subr.mxu0 0.0
    %5186 = vmatpush1.msra.mxu0 0.0
    %5187 = vmatprep.subr.mxu0 0.0
    %5188 = vmatpush1.msra.mxu0 0.0
    %5189 = vmatprep.subr.mxu0 0.0
    %5190 = vmatpush1.msra.mxu0 0.0
    %5191 = vmatprep.subr.mxu0 0.0
    %5192 = vmatpush1.msra.mxu0 0.0
    %5193 = vmatprep.subr.mxu0 0.0
    %5194 = vmatpush1.msra.mxu0 0.0
    %5195 = vmatprep.subr.mxu0 0.0
    %5196 = vmatpush1.msra.mxu0 0.0
    %5197 = vmatprep.subr.mxu0 0.0
    %5198 = vmatpush1.msra.mxu0 0.0
    %5199 = vmatprep.subr.mxu0 0.0
    %5200 = vmatpush1.msra.mxu0 0.0
    %5201 = vmatprep.subr.mxu0 0.0
    %5202 = vmatpush1.msra.mxu0 0.0
    %5203 = vmatprep.subr.mxu0 0.0
    %5204 = vmatpush1.msra.mxu0 0.0
    %5205 = vmatprep.subr.mxu0 0.0
    %5206 = vmatpush1.msra.mxu0 0.0
    %5207 = vmatprep.mubr.f32.mxu0 0.0
    %5208 = vmatmul.mubr.f32.gmra.mrb[0].mxu0 %v5132
    %v5209 = vpop.f32.mrb[0].mxu0
    %v5210 = vadd.f32 %v5118, %v5209
    %v5211 = vpop.f32.mrb[0].mxu0
    %5212 = vmatprep.mubr.f32.mxu0 0.0
    %5213 = vmatmul.mubr.f32.gmra.mrb[0].mxu0 %v5135
    %v5214 = vpop.f32.mrb[0].mxu0
    %v5215 = vadd.f32 %v5123, %v5214
    %v5216 = vpop.f32.mrb[0].mxu0
    %5217 = vmatprep.mubr.f32.mxu0 0.0
    %5218 = vmatmul.mubr.f32.gmra.mrb[0].mxu0 %v5138
    %v5219 = vpop.f32.mrb[0].mxu0
    %v5220 = vadd.f32 %v5128, %v5219
    %v5221 = vpop.f32.mrb[0].mxu0
    %5222 = vdwg.mxu0
    %v5223 = vtanh.pop %v5210
    %v5224 = vtanh.pop %v5215
    %v5225 = vtanh.pop %v5220
    %v5226 = vld [vmem:[%s1 + $0x260] sm:$0x1f]
    %v5227 = vld [vmem:[%s2 + $0x810] sm:$0x1f]
    %5229 = vset.pattern.permute.xlu0 0
    %5230 = vperm.xlu0 %5229, %v5227
    %v5231 = vpop.permute.xlu0 %5230
    %v5234 = vsel %vm176, %v5226, 0
    %v5237 = vsel %vm180, %v5225, 0
    %5239 = vmatprep.subr.mxu0 0.0
    %5240 = vmatpush1.msra.mxu0 %v5223
    %5241 = vmatprep.subr.mxu0 0.0
    %5242 = vmatpush1.msra.mxu0 %v5224
    %5243 = vmatprep.subr.mxu0 0.0
    %5244 = vmatpush1.msra.mxu0 %v5237
    %5245 = vmatprep.subr.mxu0 0.0
    %5246 = vmatpush1.msra.mxu0 0.0
    %5247 = vmatprep.subr.mxu0 0.0
    %5248 = vmatpush1.msra.mxu0 0.0
    %5249 = vmatprep.subr.mxu0 0.0
    %5250 = vmatpush1.msra.mxu0 0.0
    %5251 = vmatprep.subr.mxu0 0.0
    %5252 = vmatpush1.msra.mxu0 0.0
    %5253 = vmatprep.subr.mxu0 0.0
    %5254 = vmatpush1.msra.mxu0 0.0
    %5255 = vmatprep.subr.mxu0 0.0
    %5256 = vmatpush1.msra.mxu0 0.0
    %5257 = vmatprep.subr.mxu0 0.0
    %5258 = vmatpush1.msra.mxu0 0.0
    %5259 = vmatprep.subr.mxu0 0.0
    %5260 = vmatpush1.msra.mxu0 0.0
    %5261 = vmatprep.subr.mxu0 0.0
    %5262 = vmatpush1.msra.mxu0 0.0
    %5263 = vmatprep.subr.mxu0 0.0
    %5264 = vmatpush1.msra.mxu0 0.0
    %5265 = vmatprep.subr.mxu0 0.0
    %5266 = vmatpush1.msra.mxu0 0.0
    %5267 = vmatprep.subr.mxu0 0.0
    %5268 = vmatpush1.msra.mxu0 0.0
    %5269 = vmatprep.subr.mxu0 0.0
    %5270 = vmatpush1.msra.mxu0 0.0
    %5271 = vmatprep.subr.mxu0 0.0
    %5272 = vmatpush1.msra.mxu0 0.0
    %5273 = vmatprep.subr.mxu0 0.0
    %5274 = vmatpush1.msra.mxu0 0.0
    %5275 = vmatprep.subr.mxu0 0.0
    %5276 = vmatpush1.msra.mxu0 0.0
    %5277 = vmatprep.subr.mxu0 0.0
    %5278 = vmatpush1.msra.mxu0 0.0
    %5279 = vmatprep.subr.mxu0 0.0
    %5280 = vmatpush1.msra.mxu0 0.0
    %5281 = vmatprep.subr.mxu0 0.0
    %5282 = vmatpush1.msra.mxu0 0.0
    %5283 = vmatprep.subr.mxu0 0.0
    %5284 = vmatpush1.msra.mxu0 0.0
    %5285 = vmatprep.subr.mxu0 0.0
    %5286 = vmatpush1.msra.mxu0 0.0
    %5287 = vmatprep.subr.mxu0 0.0
    %5288 = vmatpush1.msra.mxu0 0.0
    %5289 = vmatprep.subr.mxu0 0.0
    %5290 = vmatpush1.msra.mxu0 0.0
    %5291 = vmatprep.subr.mxu0 0.0
    %5292 = vmatpush1.msra.mxu0 0.0
    %5293 = vmatprep.subr.mxu0 0.0
    %5294 = vmatpush1.msra.mxu0 0.0
    %5295 = vmatprep.subr.mxu0 0.0
    %5296 = vmatpush1.msra.mxu0 0.0
    %5297 = vmatprep.subr.mxu0 0.0
    %5298 = vmatpush1.msra.mxu0 0.0
    %5299 = vmatprep.subr.mxu0 0.0
    %5300 = vmatpush1.msra.mxu0 0.0
    %5301 = vmatprep.subr.mxu0 0.0
    %5302 = vmatpush1.msra.mxu0 0.0
    %5303 = vmatprep.mubr.f32.mxu0 0.0
    %5304 = vmatmul.mubr.f32.gmra.mrb[0].mxu0 %v5234
    %v5305 = vpop.f32.mrb[0].mxu0
    %v5306 = vadd.f32 %v5231, %v5305
    %v5307 = vpop.f32.mrb[0].mxu0
    %5308 = vdwg.mxu0
    %5309 = vst [vmem:[#allocation2 + $0x3a] sm:$0x1f] %v5306
    %v5310 = vld [vmem:[#allocation2] sm:$0xff]
    %v5311 = vld [vmem:[#allocation2 + $0x8] sm:$0xff]
    %v5312 = vld [vmem:[#allocation2 + $0x10] sm:$0xff]
    %v5313 = vld [vmem:[#allocation2 + $0x18] sm:$0xff]
    %v5314 = vld [vmem:[#allocation2 + $0x20] sm:$0xff]
    %v5315 = vld [vmem:[#allocation2 + $0x28] sm:$0xff]
    %v5316 = vld [vmem:[#allocation2 + $0x30] sm:$0xff]
    %v5317 = vld [vmem:[#allocation2 + $0x38] sm:$0x7f]
    %v5318 = vld [vmem:[%s1 + $0x268] sm:$0x1]
    %v5319 = vld [vmem:[%s2 + $0x818] sm:$0x1]
    %5321 = vset.pattern.permute.xlu0 0
    %5322 = vperm.xlu0 %5321, %v5319
    %v5323 = vpop.permute.xlu0 %5322
    %vm5325 = vcmask 515072
    %v5327 = vsel %vm5325, %v5318, 0
    %v5330 = vsel %vm584, %v5317, 0
    %5332 = vmatprep.subr.mxu0 0.0
    %5333 = vmatpush1.msra.mxu0 %v5310
    %5334 = vmatprep.subr.mxu0 0.0
    %5335 = vmatpush1.msra.mxu0 %v5311
    %5336 = vmatprep.subr.mxu0 0.0
    %5337 = vmatpush1.msra.mxu0 %v5312
    %5338 = vmatprep.subr.mxu0 0.0
    %5339 = vmatpush1.msra.mxu0 %v5313
    %5340 = vmatprep.subr.mxu0 0.0
    %5341 = vmatpush1.msra.mxu0 %v5314
    %5342 = vmatprep.subr.mxu0 0.0
    %5343 = vmatpush1.msra.mxu0 %v5315
    %5344 = vmatprep.subr.mxu0 0.0
    %5345 = vmatpush1.msra.mxu0 %v5316
    %5346 = vmatprep.subr.mxu0 0.0
    %5347 = vmatpush1.msra.mxu0 %v5330
    %5348 = vmatprep.subr.mxu0 0.0
    %5349 = vmatpush1.msra.mxu0 0.0
    %5350 = vmatprep.subr.mxu0 0.0
    %5351 = vmatpush1.msra.mxu0 0.0
    %5352 = vmatprep.subr.mxu0 0.0
    %5353 = vmatpush1.msra.mxu0 0.0
    %5354 = vmatprep.subr.mxu0 0.0
    %5355 = vmatpush1.msra.mxu0 0.0
    %5356 = vmatprep.subr.mxu0 0.0
    %5357 = vmatpush1.msra.mxu0 0.0
    %5358 = vmatprep.subr.mxu0 0.0
    %5359 = vmatpush1.msra.mxu0 0.0
    %5360 = vmatprep.subr.mxu0 0.0
    %5361 = vmatpush1.msra.mxu0 0.0
    %5362 = vmatprep.subr.mxu0 0.0
    %5363 = vmatpush1.msra.mxu0 0.0
    %5364 = vmatprep.subr.mxu0 0.0
    %5365 = vmatpush1.msra.mxu0 0.0
    %5366 = vmatprep.subr.mxu0 0.0
    %5367 = vmatpush1.msra.mxu0 0.0
    %5368 = vmatprep.subr.mxu0 0.0
    %5369 = vmatpush1.msra.mxu0 0.0
    %5370 = vmatprep.subr.mxu0 0.0
    %5371 = vmatpush1.msra.mxu0 0.0
    %5372 = vmatprep.subr.mxu0 0.0
    %5373 = vmatpush1.msra.mxu0 0.0
    %5374 = vmatprep.subr.mxu0 0.0
    %5375 = vmatpush1.msra.mxu0 0.0
    %5376 = vmatprep.subr.mxu0 0.0
    %5377 = vmatpush1.msra.mxu0 0.0
    %5378 = vmatprep.subr.mxu0 0.0
    %5379 = vmatpush1.msra.mxu0 0.0
    %5380 = vmatprep.subr.mxu0 0.0
    %5381 = vmatpush1.msra.mxu0 0.0
    %5382 = vmatprep.subr.mxu0 0.0
    %5383 = vmatpush1.msra.mxu0 0.0
    %5384 = vmatprep.subr.mxu0 0.0
    %5385 = vmatpush1.msra.mxu0 0.0
    %5386 = vmatprep.subr.mxu0 0.0
    %5387 = vmatpush1.msra.mxu0 0.0
    %5388 = vmatprep.subr.mxu0 0.0
    %5389 = vmatpush1.msra.mxu0 0.0
    %5390 = vmatprep.subr.mxu0 0.0
    %5391 = vmatpush1.msra.mxu0 0.0
    %5392 = vmatprep.subr.mxu0 0.0
    %5393 = vmatpush1.msra.mxu0 0.0
    %5394 = vmatprep.subr.mxu0 0.0
    %5395 = vmatpush1.msra.mxu0 0.0
    %5396 = vmatprep.mubr.f32.mxu0 0.0
    %5397 = vmatmul.mubr.f32.gmra.mrb[0].mxu0 %v5327
    %v5398 = vpop.f32.mrb[0].mxu0
    %v5399 = vadd.f32 %v5323, %v5398
    %v5400 = vpop.f32.mrb[0].mxu0
    %5401 = vdwg.mxu0
    %5402 = vst [vmem:[#allocation3] sm:$0x1] %v5399
    // Predicated region
    $region14: #{tpu_custom_call.1} parent=1 // pred_check
      _
    $region15: #{tpu_custom_call.1} parent=1 // pred_check_branch
      %5404 = sbr.rel (0) target = $region17
    $region16: #{tpu_custom_call.1} parent=1 // pred_region
      %s5406 = ssub.s32 16, 16
      %5407 = vsyncadd [#allocation4], %s5406
      %s5409 = sshll.u32 [#allocation3], 4
      %s5410 = int_to_ptr.vmem [resolvable:$true] %s5409
      %5412 = dma.vmem_to_hbm [thread:$0]  %s5410, 16, %s3, [#allocation4]
    $region17: #{tpu_custom_call.1} parent=1 // pred_fallthru
      _
    // Predicated region
    $region18: #{tpu_custom_call.1} parent=1 // pred_check
      _
    $region19: #{tpu_custom_call.1} parent=1 // pred_check_branch
      %5414 = sbr.rel (0) target = $region21
    $region20: #{tpu_custom_call.1} parent=1 // pred_region
      %5415 = dma.done [#allocation4], 16
    $region21: #{tpu_custom_call.1} parent=1 // pred_fallthru
      _
    %5416 = vsyncpa [#allocation4], 1

</llo_original>
